<compile_context>
chip_gen: v7x
topology: tpu7x:2x2x1
jax: 0.10.0
libtpu: 0.0.40
codegen_flags: <defaults>
</compile_context>

<pallas_src>
import functools

import jax
import jax.numpy as jnp
from jax.experimental import pallas as pl
from jax.experimental.pallas import tpu as pltpu

N_DIGITS = 2                      # the module's `N` (digit_1..digit_4 => two 2-digit numbers)
OUTPUT_DIM = N_DIGITS * 99 + 1    # 199 (only used implicitly; marginals computed directly)


def _pick_tile(m, req, align=8):
    """Largest tile <= req that divides m and is a multiple of `align`, else m (full)."""
    t = min(req, m)
    if t >= m:
        return m
    t -= t % align
    while t >= align:
        if m % t == 0:
            return t
        t -= align
    return m


# --------------------------------------------------------------------------- #
# Pallas GEMM (+bias, +activation) kernel — used for conv-as-im2col and FC.
# --------------------------------------------------------------------------- #
def _gemm_kernel(a_ref, w_ref, b_ref, o_ref, *, act):
    acc = jnp.dot(a_ref[...], w_ref[...], preferred_element_type=jnp.float32)
    acc = acc + b_ref[...]                      # (1, N) broadcast over rows
    if act == "relu":
        acc = jnp.maximum(acc, 0.0)
    elif act == "softmax":                      # stable softmax over last dim (f32)
        m = jnp.max(acc, axis=-1, keepdims=True)
        e = jnp.exp(acc - m)
        acc = e / jnp.sum(e, axis=-1, keepdims=True)
    o_ref[...] = acc.astype(o_ref.dtype)


def pallas_linear(x, w, b, act="none", tm=2048):
    """y = act(x @ w + b).  x:(M,K) w:(K,N) -> (M,N) f32.  Inputs fed to MXU as bf16."""
    M, K = x.shape
    K2, N = w.shape
    assert K == K2
    # bf16 inputs need 16-row sublane alignment for non-full row blocks.
    tm = _pick_tile(M, tm, align=16)
    grid = (M // tm,)
    x16 = x.astype(jnp.bfloat16)
    w16 = w.astype(jnp.bfloat16)
    return pl.pallas_call(
        functools.partial(_gemm_kernel, act=act),
        out_shape=jax.ShapeDtypeStruct((M, N), jnp.float32),
        grid=grid,
        in_specs=[
            pl.BlockSpec((tm, K), lambda i: (i, 0)),
            pl.BlockSpec((K, N), lambda i: (0, 0)),
            pl.BlockSpec((1, N), lambda i: (0, 0)),
        ],
        out_specs=pl.BlockSpec((tm, N), lambda i: (i, 0)),
        compiler_params=pltpu.CompilerParams(dimension_semantics=("parallel",)),
    )(x16, w16, b.reshape(1, N).astype(jnp.float32))


# --------------------------------------------------------------------------- #
# Conv / pooling glue — NHWC end-to-end, im2col built in bf16 (glue only;
# the GEMM itself is the Pallas op).
# TODO(synk): fuse the 5x5 window gather into the GEMM kernel to avoid the
# im2col HBM expansion entirely.
# --------------------------------------------------------------------------- #
def _im2col_nhwc(x, kh, kw):
    n, h, w, c = x.shape
    oh, ow = h - kh + 1, w - kw + 1
    cols = []
    for i in range(kh):
        for j in range(kw):
            cols.append(x[:, i:i + oh, j:j + ow, :])      # (n, oh, ow, c)
    p = jnp.stack(cols, axis=3)                           # (n, oh, ow, kh*kw, c)
    return p.reshape(n * oh * ow, kh * kw * c), oh, ow


def conv2d_nhwc(x, w, b, act="none"):
    """NHWC conv, stride 1, no padding, via im2col + Pallas GEMM. w is torch (O,C,KH,KW)."""
    n = x.shape[0]
    o, c, kh, kw = w.shape
    cols, oh, ow = _im2col_nhwc(x.astype(jnp.bfloat16), kh, kw)
    wmat = w.transpose(2, 3, 1, 0).reshape(kh * kw * c, o)   # (kh*kw*c, o), matches col order
    y = pallas_linear(cols, wmat, b, act=act)
    return y.reshape(n, oh, ow, o)                            # stays NHWC


def maxpool2x2_nhwc(x):
    n, h, w, c = x.shape
    return x.reshape(n, h // 2, 2, w // 2, 2, c).max(axis=(2, 4))


def mnist_net(params, imgs):
    """imgs: (M, 1, 28, 28) NCHW -> (M, 10) digit probabilities."""
    h = imgs.reshape(imgs.shape[0], 28, 28, 1)                       # C==1: NCHW->NHWC is a reshape
    h = conv2d_nhwc(h, params["c1_w"], params["c1_b"], act="relu")   # (M,24,24,6)
    h = maxpool2x2_nhwc(h)                                           # (M,12,12,6)
    h = conv2d_nhwc(h, params["c2_w"], params["c2_b"], act="relu")   # (M,8,8,16)
    h = maxpool2x2_nhwc(h)                                           # (M,4,4,16)
    # match torch's .view(-1, 256) flatten order (C, H, W)
    h = h.transpose(0, 3, 1, 2).reshape(h.shape[0], 16 * 4 * 4)
    h = pallas_linear(h, params["f1_w"], params["f1_b"], act="relu")
    h = pallas_linear(h, params["f2_w"], params["f2_b"], act="relu")
    return pallas_linear(h, params["f3_w"], params["f3_b"], act="softmax")


# --------------------------------------------------------------------------- #
# Scallop sum-of-two-2-digit-numbers + digit-marginal scatter_add, one kernel.
# Carry decomposition of e = 10*(a+c) + (b+d):
#   u = b+d in [0,18], v = a+c in [0,18], carry = u//10 in {0,1}
#   units   = u % 10
#   tens    = (v + carry) % 10
#   hundreds= (v + carry) // 10
# Exact sum-product semantics; all constants are tiny one-hots (<20 KB).
# --------------------------------------------------------------------------- #
def _scallop_kernel(p1_ref, p2_ref, p3_ref, p4_ref,
                    ea_ref, eb_ref, s_ref, u_ref, v1_ref, cm_ref, w1_ref,
                    t0_ref, t1_ref, t2_ref):
    dot = lambda a, b: jnp.dot(a, b, preferred_element_type=jnp.float32)
    ea, eb = ea_ref[...], eb_ref[...]
    s_mat, u_mat, v1_mat, cm, w1 = (s_ref[...], u_ref[...], v1_ref[...],
                                    cm_ref[...], w1_ref[...])
    # qu[b, t] = sum_{i+j==t} p2[b,i] * p4[b,j]   (distribution of b + d)
    qu = dot(dot(p2_ref[...], ea) * dot(p4_ref[...], eb), s_mat)     # (tb, 19)
    # qv[b, t] = sum_{i+j==t} p1[b,i] * p3[b,j]   (distribution of a + c)
    qv = dot(dot(p1_ref[...], ea) * dot(p3_ref[...], eb), s_mat)     # (tb, 19)
    sv = jnp.sum(qv, axis=-1, keepdims=True)                         # total qv mass (== sum(p1)*sum(p3))
    pc = dot(qu, cm)                                                 # (tb, 2): carry distribution
    pc0, pc1 = pc[:, 0:1], pc[:, 1:2]
    # units digit marginal: depends only on u
    t0_ref[...] = sv * dot(qu, u_mat)                                # (tb, 10)
    # tens digit marginal: (v + carry) % 10
    t1_ref[...] = pc0 * dot(qv, u_mat) + pc1 * dot(qv, v1_mat)       # (tb, 10)
    # hundreds marginal: (v + carry) // 10
    t2_ref[...] = pc0 * dot(qv, cm) + pc1 * dot(qv, w1)              # (tb, 2)


def scallop_constants():
    """Tiny one-hot matrices for the carry-decomposed exact sum-product."""
    f32 = jnp.float32
    i10 = jnp.arange(10)
    m = jnp.arange(100)
    u = jnp.arange(19)
    c2 = jnp.arange(2)
    ea = (m[None, :] // 10 == i10[:, None]).astype(f32)                     # (10,100) expand hi digit
    eb = (m[None, :] % 10 == i10[:, None]).astype(f32)                      # (10,100) expand lo digit
    s = ((m[:, None] // 10 + m[:, None] % 10) == u[None, :]).astype(f32)    # (100,19) pair -> digit sum
    u0 = ((u[:, None] % 10) == i10[None, :]).astype(f32)                    # (19,10)  sum -> digit (no carry)
    v1 = (((u[:, None] + 1) % 10) == i10[None, :]).astype(f32)              # (19,10)  sum+1 -> digit
    cm = ((u[:, None] // 10) == c2[None, :]).astype(f32)                    # (19,2)   sum -> carry bit
    w1 = (((u[:, None] + 1) // 10) == c2[None, :]).astype(f32)              # (19,2)   sum+1 -> carry bit
    return (ea, eb, s, u0, v1, cm, w1)


def scallop_add(p1, p2, p3, p4, consts, tb_req=256):
    bsz = p1.shape[0]
    tb = _pick_tile(bsz, tb_req, align=8)
    grid = (bsz // tb,)
    p_spec = pl.BlockSpec((tb, 10), lambda i: (i, 0))
    const_specs = [pl.BlockSpec(c.shape, lambda i: (0, 0)) for c in consts]
    return pl.pallas_call(
        _scallop_kernel,
        out_shape=(
            jax.ShapeDtypeStruct((bsz, 10), jnp.float32),
            jax.ShapeDtypeStruct((bsz, 10), jnp.float32),
            jax.ShapeDtypeStruct((bsz, 2), jnp.float32),
        ),
        grid=grid,
        in_specs=[p_spec, p_spec, p_spec, p_spec] + const_specs,
        out_specs=(pl.BlockSpec((tb, 10), lambda i: (i, 0)),
                   pl.BlockSpec((tb, 10), lambda i: (i, 0)),
                   pl.BlockSpec((tb, 2), lambda i: (i, 0))),
        compiler_params=pltpu.CompilerParams(dimension_semantics=("parallel",)),
    )(p1, p2, p3, p4, *consts)


# --------------------------------------------------------------------------- #
# Full ScallopAddNNet forward
# --------------------------------------------------------------------------- #
def scallop_add_n_net_forward(params, consts, x):
    # x: (B, 4, 1, 28, 28) NCHW.  Returns [ (B,10), (B,10), (B,2) ] like the torch module.
    b = x.shape[0]
    imgs = x.reshape(b * 4, 1, 28, 28)
    probs = mnist_net(params, imgs)            # (B*4, 10)
    logits = probs.reshape(b, 4, 10)
    p1, p2, p3, p4 = (logits[:, i, :] for i in range(4))
    t0, t1, t2 = scallop_add(p1, p2, p3, p4, consts)
    return [t0, t1, t2]


def init_params(key):
    # Deterministic synthetic init (PyTorch Linear weights are (out,in); we store (in,out)).
    ks = jax.random.split(key, 5)
    norm = lambda k, shape, fan_in: (jax.random.normal(k, shape, jnp.float32)
                                     / jnp.sqrt(jnp.float32(fan_in)))
    return {
        "c1_w": norm(ks[0], (6, 1, 5, 5), 25),   "c1_b": jnp.zeros((6,), jnp.float32),
        "c2_w": norm(ks[1], (16, 6, 5, 5), 150), "c2_b": jnp.zeros((16,), jnp.float32),
        "f1_w": norm(ks[2], (256, 120), 256),    "f1_b": jnp.zeros((120,), jnp.float32),
        "f2_w": norm(ks[3], (120, 84), 120),     "f2_b": jnp.zeros((84,), jnp.float32),
        "f3_w": norm(ks[4], (84, 10), 84),       "f3_b": jnp.zeros((10,), jnp.float32),
    }


if __name__ == "__main__":
    key = jax.random.PRNGKey(0)
    kp, kx = jax.random.split(key)
    params = init_params(kp)
    consts = scallop_constants()
    # batch=2, 4 digit images per sample, NCHW per image
    x = jax.random.normal(kx, (2, 4, 1, 28, 28), jnp.float32)

    fwd = jax.jit(lambda xx: scallop_add_n_net_forward(params, consts, xx))
    ts = fwd(x)
    ts = jax.block_until_ready(ts)

    assert ts[0].shape == (2, 10) and ts[0].dtype == jnp.float32
    assert ts[1].shape == (2, 10) and ts[1].dtype == jnp.float32
    assert ts[2].shape == (2, 2) and ts[2].dtype == jnp.float32
    # each marginal distribution should sum to ~1 per batch element
    for t in ts:
        assert bool(jnp.all(jnp.abs(jnp.sum(t, axis=-1) - 1.0) < 1e-3))
    print("KERNEL_OK")
</pallas_src>

<mosaic_0001>
module attributes {stable_mosaic.version = 11 : i64} {
  func.func @_gemm_kernel(%arg0: i32, %arg1: memref<1536x25xbf16, #tpu.memory_space<vmem>>, %arg2: memref<25x6xbf16, #tpu.memory_space<vmem>>, %arg3: memref<1x6xf32, #tpu.memory_space<vmem>>, %arg4: memref<1536x6xf32, #tpu.memory_space<vmem>>) attributes {dimension_semantics = [#tpu.dimension_semantics<parallel>], iteration_bounds = array<i64: 3>, scalar_prefetch = 0 : i64, scratch_operands = 0 : i64, tpu.core_type = #tpu.core_type<tc>, window_params = [{transform_indices = @transform_0, window_bounds = array<i64: 1536, 25>}, {pipeline_mode = #tpu.pipeline_mode<synchronous>, transform_indices = @transform_1, window_bounds = array<i64: 25, 6>}, {pipeline_mode = #tpu.pipeline_mode<synchronous>, transform_indices = @transform_2, window_bounds = array<i64: 1, 6>}, {transform_indices = @transform_3, window_bounds = array<i64: 1536, 6>}]} {
    %c0 = arith.constant 0 : index
    %c0_0 = arith.constant 0 : index
    %0 = vector.load %arg1[%c0, %c0_0] : memref<1536x25xbf16, #tpu.memory_space<vmem>>, vector<1536x25xbf16>
    %c0_1 = arith.constant 0 : index
    %c0_2 = arith.constant 0 : index
    %1 = vector.load %arg2[%c0_1, %c0_2] : memref<25x6xbf16, #tpu.memory_space<vmem>>, vector<25x6xbf16>
    %cst = arith.constant dense<0.000000e+00> : vector<1536x6xf32>
    %2 = tpu.matmul %0, %1, %cst {dimension_numbers = #tpu.dot_dimension_numbers<[1], [0], [0], [1], [0, 0, 1, 1], [], []>} : vector<1536x25xbf16>, vector<25x6xbf16>, vector<1536x6xf32> -> vector<1536x6xf32>
    %c0_3 = arith.constant 0 : index
    %c0_4 = arith.constant 0 : index
    %3 = vector.load %arg3[%c0_3, %c0_4] : memref<1x6xf32, #tpu.memory_space<vmem>>, vector<1x6xf32>
    %4 = vector.broadcast %3 : vector<1x6xf32> to vector<1536x6xf32>
    %5 = arith.addf %2, %4 : vector<1536x6xf32>
    %cst_5 = arith.constant 0.000000e+00 : f32
    %6 = vector.broadcast %cst_5 : f32 to vector<1536x6xf32>
    %7 = arith.maximumf %5, %6 : vector<1536x6xf32>
    %c0_6 = arith.constant 0 : index
    %c0_7 = arith.constant 0 : index
    %8 = vector.load %arg4[%c0_6, %c0_7] : memref<1536x6xf32, #tpu.memory_space<vmem>>, vector<1536x6xf32>
    tpu.vector_store %arg4[%c0_6, %c0_7], %7 {strides = array<i32>} : memref<1536x6xf32, #tpu.memory_space<vmem>>, vector<1536x6xf32>,
    return
  }
  func.func @transform_0(%arg0: i32) -> (i32, i32) {
    %c0_i32 = arith.constant 0 : i32
    %c0_i32_0 = arith.constant 0 : i32
    return %arg0, %c0_i32 : i32, i32
  }
  func.func @transform_1(%arg0: i32) -> (i32, i32) {
    %c0_i32 = arith.constant 0 : i32
    %c0_i32_0 = arith.constant 0 : i32
    %c0_i32_1 = arith.constant 0 : i32
    return %c0_i32, %c0_i32_0 : i32, i32
  }
  func.func @transform_2(%arg0: i32) -> (i32, i32) {
    %c0_i32 = arith.constant 0 : i32
    %c0_i32_0 = arith.constant 0 : i32
    %c0_i32_1 = arith.constant 0 : i32
    return %c0_i32, %c0_i32_0 : i32, i32
  }
  func.func @transform_3(%arg0: i32) -> (i32, i32) {
    %c0_i32 = arith.constant 0 : i32
    %c0_i32_0 = arith.constant 0 : i32
    return %arg0, %c0_i32 : i32, i32
  }
}

module attributes {stable_mosaic.version = 11 : i64} {
  func.func @_gemm_kernel(%arg0: i32, %arg1: memref<512x150xbf16, #tpu.memory_space<vmem>>, %arg2: memref<150x16xbf16, #tpu.memory_space<vmem>>, %arg3: memref<1x16xf32, #tpu.memory_space<vmem>>, %arg4: memref<512x16xf32, #tpu.memory_space<vmem>>) attributes {dimension_semantics = [#tpu.dimension_semantics<parallel>], iteration_bounds = array<i64: 1>, scalar_prefetch = 0 : i64, scratch_operands = 0 : i64, tpu.core_type = #tpu.core_type<tc>, window_params = [{transform_indices = @transform_0, window_bounds = array<i64: 512, 150>}, {pipeline_mode = #tpu.pipeline_mode<synchronous>, transform_indices = @transform_1, window_bounds = array<i64: 150, 16>}, {pipeline_mode = #tpu.pipeline_mode<synchronous>, transform_indices = @transform_2, window_bounds = array<i64: 1, 16>}, {transform_indices = @transform_3, window_bounds = array<i64: 512, 16>}]} {
    %c0 = arith.constant 0 : index
    %c0_0 = arith.constant 0 : index
    %0 = vector.load %arg1[%c0, %c0_0] : memref<512x150xbf16, #tpu.memory_space<vmem>>, vector<512x150xbf16>
    %c0_1 = arith.constant 0 : index
    %c0_2 = arith.constant 0 : index
    %1 = vector.load %arg2[%c0_1, %c0_2] : memref<150x16xbf16, #tpu.memory_space<vmem>>, vector<150x16xbf16>
    %cst = arith.constant dense<0.000000e+00> : vector<512x16xf32>
    %2 = tpu.matmul %0, %1, %cst {dimension_numbers = #tpu.dot_dimension_numbers<[1], [0], [0], [1], [0, 0, 1, 1], [], []>} : vector<512x150xbf16>, vector<150x16xbf16>, vector<512x16xf32> -> vector<512x16xf32>
    %c0_3 = arith.constant 0 : index
    %c0_4 = arith.constant 0 : index
    %3 = vector.load %arg3[%c0_3, %c0_4] : memref<1x16xf32, #tpu.memory_space<vmem>>, vector<1x16xf32>
    %4 = vector.broadcast %3 : vector<1x16xf32> to vector<512x16xf32>
    %5 = arith.addf %2, %4 : vector<512x16xf32>
    %cst_5 = arith.constant 0.000000e+00 : f32
    %6 = vector.broadcast %cst_5 : f32 to vector<512x16xf32>
    %7 = arith.maximumf %5, %6 : vector<512x16xf32>
    %c0_6 = arith.constant 0 : index
    %c0_7 = arith.constant 0 : index
    %8 = vector.load %arg4[%c0_6, %c0_7] : memref<512x16xf32, #tpu.memory_space<vmem>>, vector<512x16xf32>
    tpu.vector_store %arg4[%c0_6, %c0_7], %7 {strides = array<i32>} : memref<512x16xf32, #tpu.memory_space<vmem>>, vector<512x16xf32>,
    return
  }
  func.func @transform_0(%arg0: i32) -> (i32, i32) {
    %c0_i32 = arith.constant 0 : i32
    %c0_i32_0 = arith.constant 0 : i32
    return %arg0, %c0_i32 : i32, i32
  }
  func.func @transform_1(%arg0: i32) -> (i32, i32) {
    %c0_i32 = arith.constant 0 : i32
    %c0_i32_0 = arith.constant 0 : i32
    %c0_i32_1 = arith.constant 0 : i32
    return %c0_i32, %c0_i32_0 : i32, i32
  }
  func.func @transform_2(%arg0: i32) -> (i32, i32) {
    %c0_i32 = arith.constant 0 : i32
    %c0_i32_0 = arith.constant 0 : i32
    %c0_i32_1 = arith.constant 0 : i32
    return %c0_i32, %c0_i32_0 : i32, i32
  }
  func.func @transform_3(%arg0: i32) -> (i32, i32) {
    %c0_i32 = arith.constant 0 : i32
    %c0_i32_0 = arith.constant 0 : i32
    return %arg0, %c0_i32 : i32, i32
  }
}

module attributes {stable_mosaic.version = 11 : i64} {
  func.func @_gemm_kernel(%arg0: i32, %arg1: memref<8x256xbf16, #tpu.memory_space<vmem>>, %arg2: memref<256x120xbf16, #tpu.memory_space<vmem>>, %arg3: memref<1x120xf32, #tpu.memory_space<vmem>>, %arg4: memref<8x120xf32, #tpu.memory_space<vmem>>) attributes {dimension_semantics = [#tpu.dimension_semantics<parallel>], iteration_bounds = array<i64: 1>, scalar_prefetch = 0 : i64, scratch_operands = 0 : i64, tpu.core_type = #tpu.core_type<tc>, window_params = [{transform_indices = @transform_0, window_bounds = array<i64: 8, 256>}, {pipeline_mode = #tpu.pipeline_mode<synchronous>, transform_indices = @transform_1, window_bounds = array<i64: 256, 120>}, {pipeline_mode = #tpu.pipeline_mode<synchronous>, transform_indices = @transform_2, window_bounds = array<i64: 1, 120>}, {transform_indices = @transform_3, window_bounds = array<i64: 8, 120>}]} {
    %c0 = arith.constant 0 : index
    %c0_0 = arith.constant 0 : index
    %0 = vector.load %arg1[%c0, %c0_0] : memref<8x256xbf16, #tpu.memory_space<vmem>>, vector<8x256xbf16>
    %c0_1 = arith.constant 0 : index
    %c0_2 = arith.constant 0 : index
    %1 = vector.load %arg2[%c0_1, %c0_2] : memref<256x120xbf16, #tpu.memory_space<vmem>>, vector<256x120xbf16>
    %cst = arith.constant dense<0.000000e+00> : vector<8x120xf32>
    %2 = tpu.matmul %0, %1, %cst {dimension_numbers = #tpu.dot_dimension_numbers<[1], [0], [0], [1], [0, 0, 1, 1], [], []>} : vector<8x256xbf16>, vector<256x120xbf16>, vector<8x120xf32> -> vector<8x120xf32>
    %c0_3 = arith.constant 0 : index
    %c0_4 = arith.constant 0 : index
    %3 = vector.load %arg3[%c0_3, %c0_4] : memref<1x120xf32, #tpu.memory_space<vmem>>, vector<1x120xf32>
    %4 = vector.broadcast %3 : vector<1x120xf32> to vector<8x120xf32>
    %5 = arith.addf %2, %4 : vector<8x120xf32>
    %cst_5 = arith.constant 0.000000e+00 : f32
    %6 = vector.broadcast %cst_5 : f32 to vector<8x120xf32>
    %7 = arith.maximumf %5, %6 : vector<8x120xf32>
    %c0_6 = arith.constant 0 : index
    %c0_7 = arith.constant 0 : index
    %8 = vector.load %arg4[%c0_6, %c0_7] : memref<8x120xf32, #tpu.memory_space<vmem>>, vector<8x120xf32>
    tpu.vector_store %arg4[%c0_6, %c0_7], %7 {strides = array<i32>} : memref<8x120xf32, #tpu.memory_space<vmem>>, vector<8x120xf32>,
    return
  }
  func.func @transform_0(%arg0: i32) -> (i32, i32) {
    %c0_i32 = arith.constant 0 : i32
    %c0_i32_0 = arith.constant 0 : i32
    return %arg0, %c0_i32 : i32, i32
  }
  func.func @transform_1(%arg0: i32) -> (i32, i32) {
    %c0_i32 = arith.constant 0 : i32
    %c0_i32_0 = arith.constant 0 : i32
    %c0_i32_1 = arith.constant 0 : i32
    return %c0_i32, %c0_i32_0 : i32, i32
  }
  func.func @transform_2(%arg0: i32) -> (i32, i32) {
    %c0_i32 = arith.constant 0 : i32
    %c0_i32_0 = arith.constant 0 : i32
    %c0_i32_1 = arith.constant 0 : i32
    return %c0_i32, %c0_i32_0 : i32, i32
  }
  func.func @transform_3(%arg0: i32) -> (i32, i32) {
    %c0_i32 = arith.constant 0 : i32
    %c0_i32_0 = arith.constant 0 : i32
    return %arg0, %c0_i32 : i32, i32
  }
}

module attributes {stable_mosaic.version = 11 : i64} {
  func.func @_gemm_kernel(%arg0: i32, %arg1: memref<8x120xbf16, #tpu.memory_space<vmem>>, %arg2: memref<120x84xbf16, #tpu.memory_space<vmem>>, %arg3: memref<1x84xf32, #tpu.memory_space<vmem>>, %arg4: memref<8x84xf32, #tpu.memory_space<vmem>>) attributes {dimension_semantics = [#tpu.dimension_semantics<parallel>], iteration_bounds = array<i64: 1>, scalar_prefetch = 0 : i64, scratch_operands = 0 : i64, tpu.core_type = #tpu.core_type<tc>, window_params = [{transform_indices = @transform_0, window_bounds = array<i64: 8, 120>}, {pipeline_mode = #tpu.pipeline_mode<synchronous>, transform_indices = @transform_1, window_bounds = array<i64: 120, 84>}, {pipeline_mode = #tpu.pipeline_mode<synchronous>, transform_indices = @transform_2, window_bounds = array<i64: 1, 84>}, {transform_indices = @transform_3, window_bounds = array<i64: 8, 84>}]} {
    %c0 = arith.constant 0 : index
    %c0_0 = arith.constant 0 : index
    %0 = vector.load %arg1[%c0, %c0_0] : memref<8x120xbf16, #tpu.memory_space<vmem>>, vector<8x120xbf16>
    %c0_1 = arith.constant 0 : index
    %c0_2 = arith.constant 0 : index
    %1 = vector.load %arg2[%c0_1, %c0_2] : memref<120x84xbf16, #tpu.memory_space<vmem>>, vector<120x84xbf16>
    %cst = arith.constant dense<0.000000e+00> : vector<8x84xf32>
    %2 = tpu.matmul %0, %1, %cst {dimension_numbers = #tpu.dot_dimension_numbers<[1], [0], [0], [1], [0, 0, 1, 1], [], []>} : vector<8x120xbf16>, vector<120x84xbf16>, vector<8x84xf32> -> vector<8x84xf32>
    %c0_3 = arith.constant 0 : index
    %c0_4 = arith.constant 0 : index
    %3 = vector.load %arg3[%c0_3, %c0_4] : memref<1x84xf32, #tpu.memory_space<vmem>>, vector<1x84xf32>
    %4 = vector.broadcast %3 : vector<1x84xf32> to vector<8x84xf32>
    %5 = arith.addf %2, %4 : vector<8x84xf32>
    %cst_5 = arith.constant 0.000000e+00 : f32
    %6 = vector.broadcast %cst_5 : f32 to vector<8x84xf32>
    %7 = arith.maximumf %5, %6 : vector<8x84xf32>
    %c0_6 = arith.constant 0 : index
    %c0_7 = arith.constant 0 : index
    %8 = vector.load %arg4[%c0_6, %c0_7] : memref<8x84xf32, #tpu.memory_space<vmem>>, vector<8x84xf32>
    tpu.vector_store %arg4[%c0_6, %c0_7], %7 {strides = array<i32>} : memref<8x84xf32, #tpu.memory_space<vmem>>, vector<8x84xf32>,
    return
  }
  func.func @transform_0(%arg0: i32) -> (i32, i32) {
    %c0_i32 = arith.constant 0 : i32
    %c0_i32_0 = arith.constant 0 : i32
    return %arg0, %c0_i32 : i32, i32
  }
  func.func @transform_1(%arg0: i32) -> (i32, i32) {
    %c0_i32 = arith.constant 0 : i32
    %c0_i32_0 = arith.constant 0 : i32
    %c0_i32_1 = arith.constant 0 : i32
    return %c0_i32, %c0_i32_0 : i32, i32
  }
  func.func @transform_2(%arg0: i32) -> (i32, i32) {
    %c0_i32 = arith.constant 0 : i32
    %c0_i32_0 = arith.constant 0 : i32
    %c0_i32_1 = arith.constant 0 : i32
    return %c0_i32, %c0_i32_0 : i32, i32
  }
  func.func @transform_3(%arg0: i32) -> (i32, i32) {
    %c0_i32 = arith.constant 0 : i32
    %c0_i32_0 = arith.constant 0 : i32
    return %arg0, %c0_i32 : i32, i32
  }
}

module attributes {stable_mosaic.version = 11 : i64} {
  func.func @_gemm_kernel(%arg0: i32, %arg1: memref<8x84xbf16, #tpu.memory_space<vmem>>, %arg2: memref<84x10xbf16, #tpu.memory_space<vmem>>, %arg3: memref<1x10xf32, #tpu.memory_space<vmem>>, %arg4: memref<8x10xf32, #tpu.memory_space<vmem>>) attributes {dimension_semantics = [#tpu.dimension_semantics<parallel>], iteration_bounds = array<i64: 1>, scalar_prefetch = 0 : i64, scratch_operands = 0 : i64, tpu.core_type = #tpu.core_type<tc>, window_params = [{transform_indices = @transform_0, window_bounds = array<i64: 8, 84>}, {pipeline_mode = #tpu.pipeline_mode<synchronous>, transform_indices = @transform_1, window_bounds = array<i64: 84, 10>}, {pipeline_mode = #tpu.pipeline_mode<synchronous>, transform_indices = @transform_2, window_bounds = array<i64: 1, 10>}, {transform_indices = @transform_3, window_bounds = array<i64: 8, 10>}]} {
    %c0 = arith.constant 0 : index
    %c0_0 = arith.constant 0 : index
    %0 = vector.load %arg1[%c0, %c0_0] : memref<8x84xbf16, #tpu.memory_space<vmem>>, vector<8x84xbf16>
    %c0_1 = arith.constant 0 : index
    %c0_2 = arith.constant 0 : index
    %1 = vector.load %arg2[%c0_1, %c0_2] : memref<84x10xbf16, #tpu.memory_space<vmem>>, vector<84x10xbf16>
    %cst = arith.constant dense<0.000000e+00> : vector<8x10xf32>
    %2 = tpu.matmul %0, %1, %cst {dimension_numbers = #tpu.dot_dimension_numbers<[1], [0], [0], [1], [0, 0, 1, 1], [], []>} : vector<8x84xbf16>, vector<84x10xbf16>, vector<8x10xf32> -> vector<8x10xf32>
    %c0_3 = arith.constant 0 : index
    %c0_4 = arith.constant 0 : index
    %3 = vector.load %arg3[%c0_3, %c0_4] : memref<1x10xf32, #tpu.memory_space<vmem>>, vector<1x10xf32>
    %4 = vector.broadcast %3 : vector<1x10xf32> to vector<8x10xf32>
    %5 = arith.addf %2, %4 : vector<8x10xf32>
    %cst_5 = arith.constant dense<0xFF800000> : vector<8xf32>
    %6 = vector.multi_reduction <maximumf>, %5, %cst_5 [1] : vector<8x10xf32> to vector<8xf32>
    %7 = vector.shape_cast %6 : vector<8xf32> to vector<8x1xf32>
    %8 = vector.broadcast %7 : vector<8x1xf32> to vector<8x10xf32>
    %9 = arith.subf %5, %8 : vector<8x10xf32>
    %10 = math.exp %9 : vector<8x10xf32>
    %cst_6 = arith.constant dense<0.000000e+00> : vector<8xf32>
    %11 = vector.multi_reduction <add>, %10, %cst_6 [1] : vector<8x10xf32> to vector<8xf32>
    %12 = vector.shape_cast %11 : vector<8xf32> to vector<8x1xf32>
    %13 = vector.broadcast %12 : vector<8x1xf32> to vector<8x10xf32>
    %14 = arith.divf %10, %13 : vector<8x10xf32>
    %c0_7 = arith.constant 0 : index
    %c0_8 = arith.constant 0 : index
    %15 = vector.load %arg4[%c0_7, %c0_8] : memref<8x10xf32, #tpu.memory_space<vmem>>, vector<8x10xf32>
    tpu.vector_store %arg4[%c0_7, %c0_8], %14 {strides = array<i32>} : memref<8x10xf32, #tpu.memory_space<vmem>>, vector<8x10xf32>,
    return
  }
  func.func @transform_0(%arg0: i32) -> (i32, i32) {
    %c0_i32 = arith.constant 0 : i32
    %c0_i32_0 = arith.constant 0 : i32
    return %arg0, %c0_i32 : i32, i32
  }
  func.func @transform_1(%arg0: i32) -> (i32, i32) {
    %c0_i32 = arith.constant 0 : i32
    %c0_i32_0 = arith.constant 0 : i32
    %c0_i32_1 = arith.constant 0 : i32
    return %c0_i32, %c0_i32_0 : i32, i32
  }
  func.func @transform_2(%arg0: i32) -> (i32, i32) {
    %c0_i32 = arith.constant 0 : i32
    %c0_i32_0 = arith.constant 0 : i32
    %c0_i32_1 = arith.constant 0 : i32
    return %c0_i32, %c0_i32_0 : i32, i32
  }
  func.func @transform_3(%arg0: i32) -> (i32, i32) {
    %c0_i32 = arith.constant 0 : i32
    %c0_i32_0 = arith.constant 0 : i32
    return %arg0, %c0_i32 : i32, i32
  }
}

module attributes {stable_mosaic.version = 11 : i64} {
  func.func @_scallop_kernel(%arg0: i32, %arg1: memref<2x10xf32, #tpu.memory_space<vmem>>, %arg2: memref<2x10xf32, #tpu.memory_space<vmem>>, %arg3: memref<2x10xf32, #tpu.memory_space<vmem>>, %arg4: memref<2x10xf32, #tpu.memory_space<vmem>>, %arg5: memref<10x100xf32, #tpu.memory_space<vmem>>, %arg6: memref<10x100xf32, #tpu.memory_space<vmem>>, %arg7: memref<100x19xf32, #tpu.memory_space<vmem>>, %arg8: memref<19x10xf32, #tpu.memory_space<vmem>>, %arg9: memref<19x10xf32, #tpu.memory_space<vmem>>, %arg10: memref<19x2xf32, #tpu.memory_space<vmem>>, %arg11: memref<19x2xf32, #tpu.memory_space<vmem>>, %arg12: memref<2x10xf32, #tpu.memory_space<vmem>>, %arg13: memref<2x10xf32, #tpu.memory_space<vmem>>, %arg14: memref<2x2xf32, #tpu.memory_space<vmem>>) attributes {dimension_semantics = [#tpu.dimension_semantics<parallel>], iteration_bounds = array<i64: 1>, scalar_prefetch = 0 : i64, scratch_operands = 0 : i64, tpu.core_type = #tpu.core_type<tc>, window_params = [{transform_indices = @transform_0, window_bounds = array<i64: 2, 10>}, {transform_indices = @transform_1, window_bounds = array<i64: 2, 10>}, {transform_indices = @transform_2, window_bounds = array<i64: 2, 10>}, {transform_indices = @transform_3, window_bounds = array<i64: 2, 10>}, {pipeline_mode = #tpu.pipeline_mode<synchronous>, transform_indices = @transform_4, window_bounds = array<i64: 10, 100>}, {pipeline_mode = #tpu.pipeline_mode<synchronous>, transform_indices = @transform_5, window_bounds = array<i64: 10, 100>}, {pipeline_mode = #tpu.pipeline_mode<synchronous>, transform_indices = @transform_6, window_bounds = array<i64: 100, 19>}, {pipeline_mode = #tpu.pipeline_mode<synchronous>, transform_indices = @transform_7, window_bounds = array<i64: 19, 10>}, {pipeline_mode = #tpu.pipeline_mode<synchronous>, transform_indices = @transform_8, window_bounds = array<i64: 19, 10>}, {pipeline_mode = #tpu.pipeline_mode<synchronous>, transform_indices = @transform_9, window_bounds = array<i64: 19, 2>}, {pipeline_mode = #tpu.pipeline_mode<synchronous>, transform_indices = @transform_10, window_bounds = array<i64: 19, 2>}, {transform_indices = @transform_11, window_bounds = array<i64: 2, 10>}, {transform_indices = @transform_12, window_bounds = array<i64: 2, 10>}, {transform_indices = @transform_13, window_bounds = array<i64: 2, 2>}]} {
    %c0 = arith.constant 0 : index
    %c0_0 = arith.constant 0 : index
    %0 = vector.load %arg5[%c0, %c0_0] : memref<10x100xf32, #tpu.memory_space<vmem>>, vector<10x100xf32>
    %c0_1 = arith.constant 0 : index
    %c0_2 = arith.constant 0 : index
    %1 = vector.load %arg6[%c0_1, %c0_2] : memref<10x100xf32, #tpu.memory_space<vmem>>, vector<10x100xf32>
    %c0_3 = arith.constant 0 : index
    %c0_4 = arith.constant 0 : index
    %2 = vector.load %arg7[%c0_3, %c0_4] : memref<100x19xf32, #tpu.memory_space<vmem>>, vector<100x19xf32>
    %c0_5 = arith.constant 0 : index
    %c0_6 = arith.constant 0 : index
    %3 = vector.load %arg8[%c0_5, %c0_6] : memref<19x10xf32, #tpu.memory_space<vmem>>, vector<19x10xf32>
    %c0_7 = arith.constant 0 : index
    %c0_8 = arith.constant 0 : index
    %4 = vector.load %arg9[%c0_7, %c0_8] : memref<19x10xf32, #tpu.memory_space<vmem>>, vector<19x10xf32>
    %c0_9 = arith.constant 0 : index
    %c0_10 = arith.constant 0 : index
    %5 = vector.load %arg10[%c0_9, %c0_10] : memref<19x2xf32, #tpu.memory_space<vmem>>, vector<19x2xf32>
    %c0_11 = arith.constant 0 : index
    %c0_12 = arith.constant 0 : index
    %6 = vector.load %arg11[%c0_11, %c0_12] : memref<19x2xf32, #tpu.memory_space<vmem>>, vector<19x2xf32>
    %c0_13 = arith.constant 0 : index
    %c0_14 = arith.constant 0 : index
    %7 = vector.load %arg2[%c0_13, %c0_14] : memref<2x10xf32, #tpu.memory_space<vmem>>, vector<2x10xf32>
    %cst = arith.constant dense<0.000000e+00> : vector<2x100xf32>
    %8 = tpu.matmul %7, %0, %cst {dimension_numbers = #tpu.dot_dimension_numbers<[1], [0], [0], [1], [0, 0, 1, 1], [], []>} : vector<2x10xf32>, vector<10x100xf32>, vector<2x100xf32> -> vector<2x100xf32>
    %c0_15 = arith.constant 0 : index
    %c0_16 = arith.constant 0 : index
    %9 = vector.load %arg4[%c0_15, %c0_16] : memref<2x10xf32, #tpu.memory_space<vmem>>, vector<2x10xf32>
    %cst_17 = arith.constant dense<0.000000e+00> : vector<2x100xf32>
    %10 = tpu.matmul %9, %1, %cst_17 {dimension_numbers = #tpu.dot_dimension_numbers<[1], [0], [0], [1], [0, 0, 1, 1], [], []>} : vector<2x10xf32>, vector<10x100xf32>, vector<2x100xf32> -> vector<2x100xf32>
    %11 = arith.mulf %8, %10 : vector<2x100xf32>
    %cst_18 = arith.constant dense<0.000000e+00> : vector<2x19xf32>
    %12 = tpu.matmul %11, %2, %cst_18 {dimension_numbers = #tpu.dot_dimension_numbers<[1], [0], [0], [1], [0, 0, 1, 1], [], []>} : vector<2x100xf32>, vector<100x19xf32>, vector<2x19xf32> -> vector<2x19xf32>
    %c0_19 = arith.constant 0 : index
    %c0_20 = arith.constant 0 : index
    %13 = vector.load %arg1[%c0_19, %c0_20] : memref<2x10xf32, #tpu.memory_space<vmem>>, vector<2x10xf32>
    %cst_21 = arith.constant dense<0.000000e+00> : vector<2x100xf32>
    %14 = tpu.matmul %13, %0, %cst_21 {dimension_numbers = #tpu.dot_dimension_numbers<[1], [0], [0], [1], [0, 0, 1, 1], [], []>} : vector<2x10xf32>, vector<10x100xf32>, vector<2x100xf32> -> vector<2x100xf32>
    %c0_22 = arith.constant 0 : index
    %c0_23 = arith.constant 0 : index
    %15 = vector.load %arg3[%c0_22, %c0_23] : memref<2x10xf32, #tpu.memory_space<vmem>>, vector<2x10xf32>
    %cst_24 = arith.constant dense<0.000000e+00> : vector<2x100xf32>
    %16 = tpu.matmul %15, %1, %cst_24 {dimension_numbers = #tpu.dot_dimension_numbers<[1], [0], [0], [1], [0, 0, 1, 1], [], []>} : vector<2x10xf32>, vector<10x100xf32>, vector<2x100xf32> -> vector<2x100xf32>
    %17 = arith.mulf %14, %16 : vector<2x100xf32>
    %cst_25 = arith.constant dense<0.000000e+00> : vector<2x19xf32>
    %18 = tpu.matmul %17, %2, %cst_25 {dimension_numbers = #tpu.dot_dimension_numbers<[1], [0], [0], [1], [0, 0, 1, 1], [], []>} : vector<2x100xf32>, vector<100x19xf32>, vector<2x19xf32> -> vector<2x19xf32>
    %cst_26 = arith.constant dense<0.000000e+00> : vector<2xf32>
    %19 = vector.multi_reduction <add>, %18, %cst_26 [1] : vector<2x19xf32> to vector<2xf32>
    %20 = vector.shape_cast %19 : vector<2xf32> to vector<2x1xf32>
    %cst_27 = arith.constant dense<0.000000e+00> : vector<2x2xf32>
    %21 = tpu.matmul %12, %5, %cst_27 {dimension_numbers = #tpu.dot_dimension_numbers<[1], [0], [0], [1], [0, 0, 1, 1], [], []>} : vector<2x19xf32>, vector<19x2xf32>, vector<2x2xf32> -> vector<2x2xf32>
    %22 = vector.extract_strided_slice %21 {offsets = [0, 0], sizes = [2, 1], strides = [1, 1]} : vector<2x2xf32> to vector<2x1xf32>
    %23 = vector.extract_strided_slice %21 {offsets = [0, 1], sizes = [2, 1], strides = [1, 1]} : vector<2x2xf32> to vector<2x1xf32>
    %cst_28 = arith.constant dense<0.000000e+00> : vector<2x10xf32>
    %24 = tpu.matmul %12, %3, %cst_28 {dimension_numbers = #tpu.dot_dimension_numbers<[1], [0], [0], [1], [0, 0, 1, 1], [], []>} : vector<2x19xf32>, vector<19x10xf32>, vector<2x10xf32> -> vector<2x10xf32>
    %25 = vector.broadcast %20 : vector<2x1xf32> to vector<2x10xf32>
    %26 = arith.mulf %25, %24 : vector<2x10xf32>
    %c0_29 = arith.constant 0 : index
    %c0_30 = arith.constant 0 : index
    %27 = vector.load %arg12[%c0_29, %c0_30] : memref<2x10xf32, #tpu.memory_space<vmem>>, vector<2x10xf32>
    tpu.vector_store %arg12[%c0_29, %c0_30], %26 {strides = array<i32>} : memref<2x10xf32, #tpu.memory_space<vmem>>, vector<2x10xf32>,
    %cst_31 = arith.constant dense<0.000000e+00> : vector<2x10xf32>
    %28 = tpu.matmul %18, %3, %cst_31 {dimension_numbers = #tpu.dot_dimension_numbers<[1], [0], [0], [1], [0, 0, 1, 1], [], []>} : vector<2x19xf32>, vector<19x10xf32>, vector<2x10xf32> -> vector<2x10xf32>
    %29 = vector.broadcast %22 : vector<2x1xf32> to vector<2x10xf32>
    %30 = arith.mulf %29, %28 : vector<2x10xf32>
    %cst_32 = arith.constant dense<0.000000e+00> : vector<2x10xf32>
    %31 = tpu.matmul %18, %4, %cst_32 {dimension_numbers = #tpu.dot_dimension_numbers<[1], [0], [0], [1], [0, 0, 1, 1], [], []>} : vector<2x19xf32>, vector<19x10xf32>, vector<2x10xf32> -> vector<2x10xf32>
    %32 = vector.broadcast %23 : vector<2x1xf32> to vector<2x10xf32>
    %33 = arith.mulf %32, %31 : vector<2x10xf32>
    %34 = arith.addf %30, %33 : vector<2x10xf32>
    %c0_33 = arith.constant 0 : index
    %c0_34 = arith.constant 0 : index
    %35 = vector.load %arg13[%c0_33, %c0_34] : memref<2x10xf32, #tpu.memory_space<vmem>>, vector<2x10xf32>
    tpu.vector_store %arg13[%c0_33, %c0_34], %34 {strides = array<i32>} : memref<2x10xf32, #tpu.memory_space<vmem>>, vector<2x10xf32>,
    %cst_35 = arith.constant dense<0.000000e+00> : vector<2x2xf32>
    %36 = tpu.matmul %18, %5, %cst_35 {dimension_numbers = #tpu.dot_dimension_numbers<[1], [0], [0], [1], [0, 0, 1, 1], [], []>} : vector<2x19xf32>, vector<19x2xf32>, vector<2x2xf32> -> vector<2x2xf32>
    %37 = vector.broadcast %22 : vector<2x1xf32> to vector<2x2xf32>
    %38 = arith.mulf %37, %36 : vector<2x2xf32>
    %cst_36 = arith.constant dense<0.000000e+00> : vector<2x2xf32>
    %39 = tpu.matmul %18, %6, %cst_36 {dimension_numbers = #tpu.dot_dimension_numbers<[1], [0], [0], [1], [0, 0, 1, 1], [], []>} : vector<2x19xf32>, vector<19x2xf32>, vector<2x2xf32> -> vector<2x2xf32>
    %40 = vector.broadcast %23 : vector<2x1xf32> to vector<2x2xf32>
    %41 = arith.mulf %40, %39 : vector<2x2xf32>
    %42 = arith.addf %38, %41 : vector<2x2xf32>
    %c0_37 = arith.constant 0 : index
    %c0_38 = arith.constant 0 : index
    %43 = vector.load %arg14[%c0_37, %c0_38] : memref<2x2xf32, #tpu.memory_space<vmem>>, vector<2x2xf32>
    tpu.vector_store %arg14[%c0_37, %c0_38], %42 {strides = array<i32>} : memref<2x2xf32, #tpu.memory_space<vmem>>, vector<2x2xf32>,
    return
  }
  func.func @transform_0(%arg0: i32) -> (i32, i32) {
    %c0_i32 = arith.constant 0 : i32
    %c0_i32_0 = arith.constant 0 : i32
    return %arg0, %c0_i32 : i32, i32
  }
  func.func @transform_1(%arg0: i32) -> (i32, i32) {
    %c0_i32 = arith.constant 0 : i32
    %c0_i32_0 = arith.constant 0 : i32
    return %arg0, %c0_i32 : i32, i32
  }
  func.func @transform_2(%arg0: i32) -> (i32, i32) {
    %c0_i32 = arith.constant 0 : i32
    %c0_i32_0 = arith.constant 0 : i32
    return %arg0, %c0_i32 : i32, i32
  }
  func.func @transform_3(%arg0: i32) -> (i32, i32) {
    %c0_i32 = arith.constant 0 : i32
    %c0_i32_0 = arith.constant 0 : i32
    return %arg0, %c0_i32 : i32, i32
  }
  func.func @transform_4(%arg0: i32) -> (i32, i32) {
    %c0_i32 = arith.constant 0 : i32
    %c0_i32_0 = arith.constant 0 : i32
    %c0_i32_1 = arith.constant 0 : i32
    return %c0_i32, %c0_i32_0 : i32, i32
  }
  func.func @transform_5(%arg0: i32) -> (i32, i32) {
    %c0_i32 = arith.constant 0 : i32
    %c0_i32_0 = arith.constant 0 : i32
    %c0_i32_1 = arith.constant 0 : i32
    return %c0_i32, %c0_i32_0 : i32, i32
  }
  func.func @transform_6(%arg0: i32) -> (i32, i32) {
    %c0_i32 = arith.constant 0 : i32
    %c0_i32_0 = arith.constant 0 : i32
    %c0_i32_1 = arith.constant 0 : i32
    return %c0_i32, %c0_i32_0 : i32, i32
  }
  func.func @transform_7(%arg0: i32) -> (i32, i32) {
    %c0_i32 = arith.constant 0 : i32
    %c0_i32_0 = arith.constant 0 : i32
    %c0_i32_1 = arith.constant 0 : i32
    return %c0_i32, %c0_i32_0 : i32, i32
  }
  func.func @transform_8(%arg0: i32) -> (i32, i32) {
    %c0_i32 = arith.constant 0 : i32
    %c0_i32_0 = arith.constant 0 : i32
    %c0_i32_1 = arith.constant 0 : i32
    return %c0_i32, %c0_i32_0 : i32, i32
  }
  func.func @transform_9(%arg0: i32) -> (i32, i32) {
    %c0_i32 = arith.constant 0 : i32
    %c0_i32_0 = arith.constant 0 : i32
    %c0_i32_1 = arith.constant 0 : i32
    return %c0_i32, %c0_i32_0 : i32, i32
  }
  func.func @transform_10(%arg0: i32) -> (i32, i32) {
    %c0_i32 = arith.constant 0 : i32
    %c0_i32_0 = arith.constant 0 : i32
    %c0_i32_1 = arith.constant 0 : i32
    return %c0_i32, %c0_i32_0 : i32, i32
  }
  func.func @transform_11(%arg0: i32) -> (i32, i32) {
    %c0_i32 = arith.constant 0 : i32
    %c0_i32_0 = arith.constant 0 : i32
    return %arg0, %c0_i32 : i32, i32
  }
  func.func @transform_12(%arg0: i32) -> (i32, i32) {
    %c0_i32 = arith.constant 0 : i32
    %c0_i32_0 = arith.constant 0 : i32
    return %arg0, %c0_i32 : i32, i32
  }
  func.func @transform_13(%arg0: i32) -> (i32, i32) {
    %c0_i32 = arith.constant 0 : i32
    %c0_i32_0 = arith.constant 0 : i32
    return %arg0, %c0_i32 : i32, i32
  }
}

</mosaic_0001>

<llo_original>
// kernel: _lambda_.6
$region0: #{_lambda_.6}
  #allocation0 [shape = 'u32[]', space=smem, size = 0x4, offset = 0x4, fixed_abs, tag = 'smem constant byte address 0x4 - core index']
  #allocation1 [shape = 'u32[144,128]{1,0:T(1,128)}', space=vmem, size = 0x12000, scoped, tag = 'internal scratch']
  %s0 = inlined_call_operand.vmem [shape: bf16[4608,25], index: 0, kind: input, shape index: {}]
  %s1 = inlined_call_operand.vmem [shape: bf16[25,6], index: 1, kind: input, shape index: {}]
  %s2 = inlined_call_operand.vmem [shape: f32[1,6], index: 2, kind: input, shape index: {}]
  %s3 = inlined_call_operand.vmem [shape: f32[4608,6], index: 3, kind: output, shape index: {}]
  %s4 = sld [smem:[#allocation0]]
  $region45: #{_lambda_.6} parent=0
    _
  %s6 = ssub.s32 1, %s4
  %s7 = scalar_select 0, %s6, %s4
  loop: start=0, step=1, limit=5
  $region2: #{_lambda_.6} parent=0 // loop_pre_header
    _
  $region3: #{_lambda_.6} parent=0 // loop_header
    %s9 = sphi 0, %s13
    %p10 = scmp.ge.s32.totalorder %s9, 5
    %s19 = sphi 0, %s21
    %s22 = sphi 0, %s19
    %s23 = sphi 0, %s22
    %s39 = sphi 0, %s23
    %s43 = sphi 0, %s43
    %s45 = sphi 0, %s43
    %s46 = sphi 0, %s45
    %s60 = sphi 0, %s46
    %s64 = sphi 0, %s64
    %s66 = sphi 0, %s64
    %s67 = sphi 0, %s66
    %s81 = sphi 0, %s67
    %s87 = sphi 0, %s89
    %s90 = sphi 0, %s87
    %s91 = sphi 0, %s90
    %s107 = sphi 0, %s91
  $region4: #{_lambda_.6} parent=0 // loop_header_branch
    %12 = sbr.rel (%p10) target = $region8
  $region5: #{_lambda_.6} parent=0 // loop_body
    %s14 = ssub.s32 %s9, 1
    %s15 = ssub.s32 %s9, 2
    %s16 = sadd.s32 %s9, 1
    %s17 = ssub.s32 %s9, %s16
    %p18 = scmp.eq.s32.totalorder %s17, 0
    %s20 = sadd.s32 %s19, 1
    %s21 = scalar_select %p18, %s19, %s20
    %p24 = pneg %p18
    %p25 = scmp.eq.s32.totalorder %s9, 2
    %p26 = por %p24, %p25
    %p27 = scmp.ne.s32.totalorder %s19, %s22
    %p28 = scmp.eq.s32.totalorder %s9, 0
    %p29 = por %p27, %p28
    %p30 = scmp.ne.s32.totalorder %s19, %s22
    %p31 = scmp.eq.s32.totalorder %s14, 2
    %p32 = por %p30, %p31
    %p33 = scmp.ne.s32.totalorder %s22, %s23
    %p34 = scmp.eq.s32.totalorder %s14, 0
    %p35 = por %p33, %p34
    %p36 = scmp.ne.s32.totalorder %s22, %s23
    %p37 = scmp.eq.s32.totalorder %s15, 2
    %p38 = por %p36, %p37
    %p40 = scmp.ne.s32.totalorder %s23, %s39
    %p41 = scmp.eq.s32.totalorder %s15, 0
    %p42 = por %p40, %p41
    %s44 = sadd.s32 %s43, 1
    %p47 = scmp.eq.s32.totalorder %s9, 2
    %p48 = scmp.ne.s32.totalorder %s43, %s45
    %p49 = scmp.eq.s32.totalorder %s9, 0
    %p50 = por %p48, %p49
    %p51 = scmp.ne.s32.totalorder %s43, %s45
    %p52 = scmp.eq.s32.totalorder %s14, 2
    %p53 = por %p51, %p52
    %p54 = scmp.ne.s32.totalorder %s45, %s46
    %p55 = scmp.eq.s32.totalorder %s14, 0
    %p56 = por %p54, %p55
    %p57 = scmp.ne.s32.totalorder %s45, %s46
    %p58 = scmp.eq.s32.totalorder %s15, 2
    %p59 = por %p57, %p58
    %p61 = scmp.ne.s32.totalorder %s46, %s60
    %p62 = scmp.eq.s32.totalorder %s15, 0
    %p63 = por %p61, %p62
    %s65 = sadd.s32 %s64, 1
    %p68 = scmp.eq.s32.totalorder %s9, 2
    %p69 = scmp.ne.s32.totalorder %s64, %s66
    %p70 = scmp.eq.s32.totalorder %s9, 0
    %p71 = por %p69, %p70
    %p72 = scmp.ne.s32.totalorder %s64, %s66
    %p73 = scmp.eq.s32.totalorder %s14, 2
    %p74 = por %p72, %p73
    %p75 = scmp.ne.s32.totalorder %s66, %s67
    %p76 = scmp.eq.s32.totalorder %s14, 0
    %p77 = por %p75, %p76
    %p78 = scmp.ne.s32.totalorder %s66, %s67
    %p79 = scmp.eq.s32.totalorder %s15, 2
    %p80 = por %p78, %p79
    %p82 = scmp.ne.s32.totalorder %s67, %s81
    %p83 = scmp.eq.s32.totalorder %s15, 0
    %p84 = por %p82, %p83
    %s85 = ssub.s32 %s9, %s16
    %p86 = scmp.eq.s32.totalorder %s85, 0
    %s88 = sadd.s32 %s87, 1
    %s89 = scalar_select %p86, %s87, %s88
    %p92 = pneg %p86
    %p93 = scmp.eq.s32.totalorder %s9, 2
    %p94 = por %p92, %p93
    %p95 = scmp.ne.s32.totalorder %s87, %s90
    %p96 = scmp.eq.s32.totalorder %s9, 0
    %p97 = por %p95, %p96
    %p98 = scmp.ne.s32.totalorder %s87, %s90
    %p99 = scmp.eq.s32.totalorder %s14, 2
    %p100 = por %p98, %p99
    %p101 = scmp.ne.s32.totalorder %s90, %s91
    %p102 = scmp.eq.s32.totalorder %s14, 0
    %p103 = por %p101, %p102
    %p104 = scmp.ne.s32.totalorder %s90, %s91
    %p105 = scmp.eq.s32.totalorder %s15, 2
    %p106 = por %p104, %p105
    %p108 = scmp.ne.s32.totalorder %s91, %s107
    %p109 = scmp.eq.s32.totalorder %s15, 0
    %p110 = por %p108, %p109
    %p111 = scmp.le.s32.totalorder 1, %s9
    %p112 = scmp.lt.s32.totalorder %s9, 4
    %p113 = pnand %p111, %p112
    %p114 = pneg %p113
    // Predicated region
    $region9: #{_lambda_.6} parent=5 // pred_check
      _
    $region10: #{_lambda_.6} parent=5 // pred_check_branch
      %116 = sbr.rel (%p113) target = $region12
    $region11: #{_lambda_.6} parent=5 // pred_region
      %s117 = ssub.s32 %s9, 1
      // Predicated region
      $region13: #{_lambda_.6} parent=11 // pred_check
        %p118 = pneg %p56
      $region14: #{_lambda_.6} parent=11 // pred_check_branch
        %120 = sbr.rel (%p118) target = $region16
      $region15: #{_lambda_.6} parent=11 // pred_region
        _
      $region16: #{_lambda_.6} parent=11 // pred_fallthru
        _
      // Predicated region
      $region17: #{_lambda_.6} parent=11 // pred_check
        %p121 = pneg %p77
      $region18: #{_lambda_.6} parent=11 // pred_check_branch
        %123 = sbr.rel (%p121) target = $region20
      $region19: #{_lambda_.6} parent=11 // pred_region
        _
      $region20: #{_lambda_.6} parent=11 // pred_fallthru
        _
    $region12: #{_lambda_.6} parent=5 // pred_fallthru
      _
    %p124 = scmp.lt.s32.totalorder %s9, 3
    // Predicated region
    $region21: #{_lambda_.6} parent=5 // pred_check
      %p125 = pneg %p124
    $region22: #{_lambda_.6} parent=5 // pred_check_branch
      %127 = sbr.rel (%p125) target = $region24
    $region23: #{_lambda_.6} parent=5 // pred_region
      // Predicated region
      $region25: #{_lambda_.6} parent=23 // pred_check
        %p128 = pneg %p29
      $region26: #{_lambda_.6} parent=23 // pred_check_branch
        %130 = sbr.rel (%p128) target = $region28
      $region27: #{_lambda_.6} parent=23 // pred_region
        %s131 = smul.u32 192, %s9
        %p132 = scmp.lt.s32.totalorder %s131, 575
        %s133 = scalar_select %p132, %s131, 575
        %s134 = smul.addr %s133, 4
        %s135 = scalar_lea.vmem %s0, %s134
        %s136 = smul.u32 192, %s9
      $region28: #{_lambda_.6} parent=23 // pred_fallthru
        _
    $region24: #{_lambda_.6} parent=5 // pred_fallthru
      _
    %p137 = scmp.le.s32.totalorder 1, %s9
    %p138 = scmp.lt.s32.totalorder %s9, 4
    %p139 = pnand %p137, %p138
    %p140 = pneg %p139
    // Predicated region
    $region29: #{_lambda_.6} parent=5 // pred_check
      _
    $region30: #{_lambda_.6} parent=5 // pred_check_branch
      %142 = sbr.rel (%p139) target = $region32
    $region31: #{_lambda_.6} parent=5 // pred_region
      %s143 = ssub.s32 %s9, 1
      %s144 = smul.u32 192, %s14
      %p145 = scmp.lt.s32.totalorder %s144, 575
      %s146 = scalar_select %p145, %s144, 575
      %s147 = smul.addr %s146, 4
      %s148 = scalar_lea.vmem %s0, %s147
      %p149 = pneg %p35
      %p150 = pneg %p32
      %p151 = pneg %p56
      %p152 = pneg %p53
      %p153 = pneg %p77
      %p154 = pneg %p74
      %p155 = pneg %p103
      %p156 = pneg %p100
      %s157 = smul.u32 192, %s14
      %p158 = scmp.lt.s32.totalorder %s157, 575
      %s159 = scalar_select %p158, %s157, 575
      %s160 = smul.addr %s159, 8
      %s161 = scalar_lea.vmem %s3, %s160
      %s162 = smul.u32 192, %s14
      %p163 = scmp.lt.s32.totalorder %s162, 575
      %s164 = scalar_select %p163, %s162, 575
      %s165 = smul.addr %s164, 4
      %s166 = scalar_lea.vmem %s0, %s165
      %s167 = smul.u32 192, %s14
      %s168 = smul.u32 192, %s14
      %p169 = scmp.lt.s32.totalorder %s168, 575
      %s170 = scalar_select %p169, %s168, 575
      %s171 = smul.addr %s170, 8
      %s172 = scalar_lea.vmem %s3, %s171
      %s173 = smul.u32 192, %s14
      %v175 = vld [vmem:[%s166] sm:$0xf]
      %v176 = vld [vmem:[%s166 + $0x4] sm:$0xf]
      %v177 = vld [vmem:[%s166 + $0x8] sm:$0xf]
      %v178 = vld [vmem:[%s166 + $0xc] sm:$0xf]
      %v179 = vld [vmem:[%s166 + $0x10] sm:$0xf]
      %v180 = vld [vmem:[%s166 + $0x14] sm:$0xf]
      %v181 = vld [vmem:[%s166 + $0x18] sm:$0xf]
      %v182 = vld [vmem:[%s166 + $0x1c] sm:$0xf]
      %v183 = vld [vmem:[%s166 + $0x20] sm:$0xf]
      %v184 = vld [vmem:[%s166 + $0x24] sm:$0xf]
      %v185 = vld [vmem:[%s166 + $0x28] sm:$0xf]
      %v186 = vld [vmem:[%s166 + $0x2c] sm:$0xf]
      %v187 = vld [vmem:[%s166 + $0x30] sm:$0xf]
      %v188 = vld [vmem:[%s166 + $0x34] sm:$0xf]
      %v189 = vld [vmem:[%s166 + $0x38] sm:$0xf]
      %v190 = vld [vmem:[%s166 + $0x3c] sm:$0xf]
      %v191 = vld [vmem:[%s166 + $0x40] sm:$0xf]
      %v192 = vld [vmem:[%s166 + $0x44] sm:$0xf]
      %v193 = vld [vmem:[%s166 + $0x48] sm:$0xf]
      %v194 = vld [vmem:[%s166 + $0x4c] sm:$0xf]
      %v195 = vld [vmem:[%s166 + $0x50] sm:$0xf]
      %v196 = vld [vmem:[%s166 + $0x54] sm:$0xf]
      %v197 = vld [vmem:[%s166 + $0x58] sm:$0xf]
      %v198 = vld [vmem:[%s166 + $0x5c] sm:$0xf]
      %v199 = vld [vmem:[%s166 + $0x60] sm:$0xf]
      %v200 = vld [vmem:[%s166 + $0x64] sm:$0xf]
      %v201 = vld [vmem:[%s166 + $0x68] sm:$0xf]
      %v202 = vld [vmem:[%s166 + $0x6c] sm:$0xf]
      %v203 = vld [vmem:[%s166 + $0x70] sm:$0xf]
      %v204 = vld [vmem:[%s166 + $0x74] sm:$0xf]
      %v205 = vld [vmem:[%s166 + $0x78] sm:$0xf]
      %v206 = vld [vmem:[%s166 + $0x7c] sm:$0xf]
      %v207 = vld [vmem:[%s166 + $0x80] sm:$0xf]
      %v208 = vld [vmem:[%s166 + $0x84] sm:$0xf]
      %v209 = vld [vmem:[%s166 + $0x88] sm:$0xf]
      %v210 = vld [vmem:[%s166 + $0x8c] sm:$0xf]
      %v211 = vld [vmem:[%s166 + $0x90] sm:$0xf]
      %v212 = vld [vmem:[%s166 + $0x94] sm:$0xf]
      %v213 = vld [vmem:[%s166 + $0x98] sm:$0xf]
      %v214 = vld [vmem:[%s166 + $0x9c] sm:$0xf]
      %v215 = vld [vmem:[%s166 + $0xa0] sm:$0xf]
      %v216 = vld [vmem:[%s166 + $0xa4] sm:$0xf]
      %v217 = vld [vmem:[%s166 + $0xa8] sm:$0xf]
      %v218 = vld [vmem:[%s166 + $0xac] sm:$0xf]
      %v219 = vld [vmem:[%s166 + $0xb0] sm:$0xf]
      %v220 = vld [vmem:[%s166 + $0xb4] sm:$0xf]
      %v221 = vld [vmem:[%s166 + $0xb8] sm:$0xf]
      %v222 = vld [vmem:[%s166 + $0xbc] sm:$0xf]
      %v223 = vld [vmem:[%s166 + $0xc0] sm:$0xf]
      %v224 = vld [vmem:[%s166 + $0xc4] sm:$0xf]
      %v225 = vld [vmem:[%s166 + $0xc8] sm:$0xf]
      %v226 = vld [vmem:[%s166 + $0xcc] sm:$0xf]
      %v227 = vld [vmem:[%s166 + $0xd0] sm:$0xf]
      %v228 = vld [vmem:[%s166 + $0xd4] sm:$0xf]
      %v229 = vld [vmem:[%s166 + $0xd8] sm:$0xf]
      %v230 = vld [vmem:[%s166 + $0xdc] sm:$0xf]
      %v231 = vld [vmem:[%s166 + $0xe0] sm:$0xf]
      %v232 = vld [vmem:[%s166 + $0xe4] sm:$0xf]
      %v233 = vld [vmem:[%s166 + $0xe8] sm:$0xf]
      %v234 = vld [vmem:[%s166 + $0xec] sm:$0xf]
      %v235 = vld [vmem:[%s166 + $0xf0] sm:$0xf]
      %v236 = vld [vmem:[%s166 + $0xf4] sm:$0xf]
      %v237 = vld [vmem:[%s166 + $0xf8] sm:$0xf]
      %v238 = vld [vmem:[%s166 + $0xfc] sm:$0xf]
      %v239 = vld [vmem:[%s166 + $0x100] sm:$0xf]
      %v240 = vld [vmem:[%s166 + $0x104] sm:$0xf]
      %v241 = vld [vmem:[%s166 + $0x108] sm:$0xf]
      %v242 = vld [vmem:[%s166 + $0x10c] sm:$0xf]
      %v243 = vld [vmem:[%s166 + $0x110] sm:$0xf]
      %v244 = vld [vmem:[%s166 + $0x114] sm:$0xf]
      %v245 = vld [vmem:[%s166 + $0x118] sm:$0xf]
      %v246 = vld [vmem:[%s166 + $0x11c] sm:$0xf]
      %v247 = vld [vmem:[%s166 + $0x120] sm:$0xf]
      %v248 = vld [vmem:[%s166 + $0x124] sm:$0xf]
      %v249 = vld [vmem:[%s166 + $0x128] sm:$0xf]
      %v250 = vld [vmem:[%s166 + $0x12c] sm:$0xf]
      %v251 = vld [vmem:[%s166 + $0x130] sm:$0xf]
      %v252 = vld [vmem:[%s166 + $0x134] sm:$0xf]
      %v253 = vld [vmem:[%s166 + $0x138] sm:$0xf]
      %v254 = vld [vmem:[%s166 + $0x13c] sm:$0xf]
      %v255 = vld [vmem:[%s166 + $0x140] sm:$0xf]
      %v256 = vld [vmem:[%s166 + $0x144] sm:$0xf]
      %v257 = vld [vmem:[%s166 + $0x148] sm:$0xf]
      %v258 = vld [vmem:[%s166 + $0x14c] sm:$0xf]
      %v259 = vld [vmem:[%s166 + $0x150] sm:$0xf]
      %v260 = vld [vmem:[%s166 + $0x154] sm:$0xf]
      %v261 = vld [vmem:[%s166 + $0x158] sm:$0xf]
      %v262 = vld [vmem:[%s166 + $0x15c] sm:$0xf]
      %v263 = vld [vmem:[%s166 + $0x160] sm:$0xf]
      %v264 = vld [vmem:[%s166 + $0x164] sm:$0xf]
      %v265 = vld [vmem:[%s166 + $0x168] sm:$0xf]
      %v266 = vld [vmem:[%s166 + $0x16c] sm:$0xf]
      %v267 = vld [vmem:[%s166 + $0x170] sm:$0xf]
      %v268 = vld [vmem:[%s166 + $0x174] sm:$0xf]
      %v269 = vld [vmem:[%s166 + $0x178] sm:$0xf]
      %v270 = vld [vmem:[%s166 + $0x17c] sm:$0xf]
      %v271 = vld [vmem:[%s166 + $0x180] sm:$0xf]
      %v272 = vld [vmem:[%s166 + $0x184] sm:$0xf]
      %v273 = vld [vmem:[%s166 + $0x188] sm:$0xf]
      %v274 = vld [vmem:[%s166 + $0x18c] sm:$0xf]
      %v275 = vld [vmem:[%s166 + $0x190] sm:$0xf]
      %v276 = vld [vmem:[%s166 + $0x194] sm:$0xf]
      %v277 = vld [vmem:[%s166 + $0x198] sm:$0xf]
      %v278 = vld [vmem:[%s166 + $0x19c] sm:$0xf]
      %v279 = vld [vmem:[%s166 + $0x1a0] sm:$0xf]
      %v280 = vld [vmem:[%s166 + $0x1a4] sm:$0xf]
      %v281 = vld [vmem:[%s166 + $0x1a8] sm:$0xf]
      %v282 = vld [vmem:[%s166 + $0x1ac] sm:$0xf]
      %v283 = vld [vmem:[%s166 + $0x1b0] sm:$0xf]
      %v284 = vld [vmem:[%s166 + $0x1b4] sm:$0xf]
      %v285 = vld [vmem:[%s166 + $0x1b8] sm:$0xf]
      %v286 = vld [vmem:[%s166 + $0x1bc] sm:$0xf]
      %v287 = vld [vmem:[%s166 + $0x1c0] sm:$0xf]
      %v288 = vld [vmem:[%s166 + $0x1c4] sm:$0xf]
      %v289 = vld [vmem:[%s166 + $0x1c8] sm:$0xf]
      %v290 = vld [vmem:[%s166 + $0x1cc] sm:$0xf]
      %v291 = vld [vmem:[%s166 + $0x1d0] sm:$0xf]
      %v292 = vld [vmem:[%s166 + $0x1d4] sm:$0xf]
      %v293 = vld [vmem:[%s166 + $0x1d8] sm:$0xf]
      %v294 = vld [vmem:[%s166 + $0x1dc] sm:$0xf]
      %v295 = vld [vmem:[%s166 + $0x1e0] sm:$0xf]
      %v296 = vld [vmem:[%s166 + $0x1e4] sm:$0xf]
      %v297 = vld [vmem:[%s166 + $0x1e8] sm:$0xf]
      %v298 = vld [vmem:[%s166 + $0x1ec] sm:$0xf]
      %v299 = vld [vmem:[%s166 + $0x1f0] sm:$0xf]
      %v300 = vld [vmem:[%s166 + $0x1f4] sm:$0xf]
      %v301 = vld [vmem:[%s166 + $0x1f8] sm:$0xf]
      %v302 = vld [vmem:[%s166 + $0x1fc] sm:$0xf]
      %v303 = vld [vmem:[%s166 + $0x200] sm:$0xf]
      %v304 = vld [vmem:[%s166 + $0x204] sm:$0xf]
      %v305 = vld [vmem:[%s166 + $0x208] sm:$0xf]
      %v306 = vld [vmem:[%s166 + $0x20c] sm:$0xf]
      %v307 = vld [vmem:[%s166 + $0x210] sm:$0xf]
      %v308 = vld [vmem:[%s166 + $0x214] sm:$0xf]
      %v309 = vld [vmem:[%s166 + $0x218] sm:$0xf]
      %v310 = vld [vmem:[%s166 + $0x21c] sm:$0xf]
      %v311 = vld [vmem:[%s166 + $0x220] sm:$0xf]
      %v312 = vld [vmem:[%s166 + $0x224] sm:$0xf]
      %v313 = vld [vmem:[%s166 + $0x228] sm:$0xf]
      %v314 = vld [vmem:[%s166 + $0x22c] sm:$0xf]
      %v315 = vld [vmem:[%s166 + $0x230] sm:$0xf]
      %v316 = vld [vmem:[%s166 + $0x234] sm:$0xf]
      %v317 = vld [vmem:[%s166 + $0x238] sm:$0xf]
      %v318 = vld [vmem:[%s166 + $0x23c] sm:$0xf]
      %v319 = vld [vmem:[%s166 + $0x240] sm:$0xf]
      %v320 = vld [vmem:[%s166 + $0x244] sm:$0xf]
      %v321 = vld [vmem:[%s166 + $0x248] sm:$0xf]
      %v322 = vld [vmem:[%s166 + $0x24c] sm:$0xf]
      %v323 = vld [vmem:[%s166 + $0x250] sm:$0xf]
      %v324 = vld [vmem:[%s166 + $0x254] sm:$0xf]
      %v325 = vld [vmem:[%s166 + $0x258] sm:$0xf]
      %v326 = vld [vmem:[%s166 + $0x25c] sm:$0xf]
      %v327 = vld [vmem:[%s166 + $0x260] sm:$0xf]
      %v328 = vld [vmem:[%s166 + $0x264] sm:$0xf]
      %v329 = vld [vmem:[%s166 + $0x268] sm:$0xf]
      %v330 = vld [vmem:[%s166 + $0x26c] sm:$0xf]
      %v331 = vld [vmem:[%s166 + $0x270] sm:$0xf]
      %v332 = vld [vmem:[%s166 + $0x274] sm:$0xf]
      %v333 = vld [vmem:[%s166 + $0x278] sm:$0xf]
      %v334 = vld [vmem:[%s166 + $0x27c] sm:$0xf]
      %v335 = vld [vmem:[%s166 + $0x280] sm:$0xf]
      %v336 = vld [vmem:[%s166 + $0x284] sm:$0xf]
      %v337 = vld [vmem:[%s166 + $0x288] sm:$0xf]
      %v338 = vld [vmem:[%s166 + $0x28c] sm:$0xf]
      %v339 = vld [vmem:[%s166 + $0x290] sm:$0xf]
      %v340 = vld [vmem:[%s166 + $0x294] sm:$0xf]
      %v341 = vld [vmem:[%s166 + $0x298] sm:$0xf]
      %v342 = vld [vmem:[%s166 + $0x29c] sm:$0xf]
      %v343 = vld [vmem:[%s166 + $0x2a0] sm:$0xf]
      %v344 = vld [vmem:[%s166 + $0x2a4] sm:$0xf]
      %v345 = vld [vmem:[%s166 + $0x2a8] sm:$0xf]
      %v346 = vld [vmem:[%s166 + $0x2ac] sm:$0xf]
      %v347 = vld [vmem:[%s166 + $0x2b0] sm:$0xf]
      %v348 = vld [vmem:[%s166 + $0x2b4] sm:$0xf]
      %v349 = vld [vmem:[%s166 + $0x2b8] sm:$0xf]
      %v350 = vld [vmem:[%s166 + $0x2bc] sm:$0xf]
      %v351 = vld [vmem:[%s166 + $0x2c0] sm:$0xf]
      %v352 = vld [vmem:[%s166 + $0x2c4] sm:$0xf]
      %v353 = vld [vmem:[%s166 + $0x2c8] sm:$0xf]
      %v354 = vld [vmem:[%s166 + $0x2cc] sm:$0xf]
      %v355 = vld [vmem:[%s166 + $0x2d0] sm:$0xf]
      %v356 = vld [vmem:[%s166 + $0x2d4] sm:$0xf]
      %v357 = vld [vmem:[%s166 + $0x2d8] sm:$0xf]
      %v358 = vld [vmem:[%s166 + $0x2dc] sm:$0xf]
      %v359 = vld [vmem:[%s166 + $0x2e0] sm:$0xf]
      %v360 = vld [vmem:[%s166 + $0x2e4] sm:$0xf]
      %v361 = vld [vmem:[%s166 + $0x2e8] sm:$0xf]
      %v362 = vld [vmem:[%s166 + $0x2ec] sm:$0xf]
      %v363 = vld [vmem:[%s166 + $0x2f0] sm:$0xf]
      %v364 = vld [vmem:[%s166 + $0x2f4] sm:$0xf]
      %v365 = vld [vmem:[%s166 + $0x2f8] sm:$0xf]
      %v366 = vld [vmem:[%s166 + $0x2fc] sm:$0xf]
      %v367 = vld [vmem:[%s1] sm:$0xf]
      %v368 = vld [vmem:[%s1 + $0x4] sm:$0xf]
      %v369 = vld [vmem:[%s1 + $0x8] sm:$0xf]
      %v370 = vld [vmem:[%s1 + $0xc] sm:$0x1]
      %v371 = vld [vmem:[%s2] sm:$0x1]
      %v373 = vlaneseq
      %v374 = vshrl.u32 %v373, 7
      %v375 = vsub.s32 0, %v374
      %v376 = vrot.slane %v371, %v375
      %v570 = vunpack.c.l.b16 %v175
      %v571 = vunpack.c.l.b16 %v176
      %v572 = vunpack.c.l.b16 %v177
      %v573 = vunpack.c.l.b16 %v178
      %v574 = vunpack.c.l.b16 %v179
      %v575 = vunpack.c.l.b16 %v180
      %v576 = vunpack.c.l.b16 %v181
      %v577 = vunpack.c.l.b16 %v182
      %v578 = vunpack.c.l.b16 %v183
      %v579 = vunpack.c.l.b16 %v184
      %v580 = vunpack.c.l.b16 %v185
      %v581 = vunpack.c.l.b16 %v186
      %v582 = vunpack.c.l.b16 %v187
      %v583 = vunpack.c.l.b16 %v188
      %v584 = vunpack.c.l.b16 %v189
      %v585 = vunpack.c.l.b16 %v190
      %v586 = vunpack.c.l.b16 %v191
      %v587 = vunpack.c.l.b16 %v192
      %v588 = vunpack.c.l.b16 %v193
      %v589 = vunpack.c.l.b16 %v194
      %v590 = vunpack.c.l.b16 %v195
      %v591 = vunpack.c.l.b16 %v196
      %v592 = vunpack.c.l.b16 %v197
      %v593 = vunpack.c.l.b16 %v198
      %v594 = vunpack.c.l.b16 %v199
      %v595 = vunpack.c.l.b16 %v200
      %v596 = vunpack.c.l.b16 %v201
      %v597 = vunpack.c.l.b16 %v202
      %v598 = vunpack.c.l.b16 %v203
      %v599 = vunpack.c.l.b16 %v204
      %v600 = vunpack.c.l.b16 %v205
      %v601 = vunpack.c.l.b16 %v206
      %v602 = vunpack.c.l.b16 %v207
      %v603 = vunpack.c.l.b16 %v208
      %v604 = vunpack.c.l.b16 %v209
      %v605 = vunpack.c.l.b16 %v210
      %v606 = vunpack.c.l.b16 %v211
      %v607 = vunpack.c.l.b16 %v212
      %v608 = vunpack.c.l.b16 %v213
      %v609 = vunpack.c.l.b16 %v214
      %v610 = vunpack.c.l.b16 %v215
      %v611 = vunpack.c.l.b16 %v216
      %v612 = vunpack.c.l.b16 %v217
      %v613 = vunpack.c.l.b16 %v218
      %v614 = vunpack.c.l.b16 %v219
      %v615 = vunpack.c.l.b16 %v220
      %v616 = vunpack.c.l.b16 %v221
      %v617 = vunpack.c.l.b16 %v222
      %v618 = vunpack.c.l.b16 %v223
      %v619 = vunpack.c.l.b16 %v224
      %v620 = vunpack.c.l.b16 %v225
      %v621 = vunpack.c.l.b16 %v226
      %v622 = vunpack.c.l.b16 %v227
      %v623 = vunpack.c.l.b16 %v228
      %v624 = vunpack.c.l.b16 %v229
      %v625 = vunpack.c.l.b16 %v230
      %v626 = vunpack.c.l.b16 %v231
      %v627 = vunpack.c.l.b16 %v232
      %v628 = vunpack.c.l.b16 %v233
      %v629 = vunpack.c.l.b16 %v234
      %v630 = vunpack.c.l.b16 %v235
      %v631 = vunpack.c.l.b16 %v236
      %v632 = vunpack.c.l.b16 %v237
      %v633 = vunpack.c.l.b16 %v238
      %v634 = vunpack.c.l.b16 %v239
      %v635 = vunpack.c.l.b16 %v240
      %v636 = vunpack.c.l.b16 %v241
      %v637 = vunpack.c.l.b16 %v242
      %v638 = vunpack.c.l.b16 %v243
      %v639 = vunpack.c.l.b16 %v244
      %v640 = vunpack.c.l.b16 %v245
      %v641 = vunpack.c.l.b16 %v246
      %v642 = vunpack.c.l.b16 %v247
      %v643 = vunpack.c.l.b16 %v248
      %v644 = vunpack.c.l.b16 %v249
      %v645 = vunpack.c.l.b16 %v250
      %v646 = vunpack.c.l.b16 %v251
      %v647 = vunpack.c.l.b16 %v252
      %v648 = vunpack.c.l.b16 %v253
      %v649 = vunpack.c.l.b16 %v254
      %v650 = vunpack.c.l.b16 %v255
      %v651 = vunpack.c.l.b16 %v256
      %v652 = vunpack.c.l.b16 %v257
      %v653 = vunpack.c.l.b16 %v258
      %v654 = vunpack.c.l.b16 %v259
      %v655 = vunpack.c.l.b16 %v260
      %v656 = vunpack.c.l.b16 %v261
      %v657 = vunpack.c.l.b16 %v262
      %v658 = vunpack.c.l.b16 %v263
      %v659 = vunpack.c.l.b16 %v264
      %v660 = vunpack.c.l.b16 %v265
      %v661 = vunpack.c.l.b16 %v266
      %v662 = vunpack.c.l.b16 %v267
      %v663 = vunpack.c.l.b16 %v268
      %v664 = vunpack.c.l.b16 %v269
      %v665 = vunpack.c.l.b16 %v270
      %v666 = vunpack.c.l.b16 %v271
      %v667 = vunpack.c.l.b16 %v272
      %v668 = vunpack.c.l.b16 %v273
      %v669 = vunpack.c.l.b16 %v274
      %v670 = vunpack.c.l.b16 %v275
      %v671 = vunpack.c.l.b16 %v276
      %v672 = vunpack.c.l.b16 %v277
      %v673 = vunpack.c.l.b16 %v278
      %v674 = vunpack.c.l.b16 %v279
      %v675 = vunpack.c.l.b16 %v280
      %v676 = vunpack.c.l.b16 %v281
      %v677 = vunpack.c.l.b16 %v282
      %v678 = vunpack.c.l.b16 %v283
      %v679 = vunpack.c.l.b16 %v284
      %v680 = vunpack.c.l.b16 %v285
      %v681 = vunpack.c.l.b16 %v286
      %v682 = vunpack.c.l.b16 %v287
      %v683 = vunpack.c.l.b16 %v288
      %v684 = vunpack.c.l.b16 %v289
      %v685 = vunpack.c.l.b16 %v290
      %v686 = vunpack.c.l.b16 %v291
      %v687 = vunpack.c.l.b16 %v292
      %v688 = vunpack.c.l.b16 %v293
      %v689 = vunpack.c.l.b16 %v294
      %v690 = vunpack.c.l.b16 %v295
      %v691 = vunpack.c.l.b16 %v296
      %v692 = vunpack.c.l.b16 %v297
      %v693 = vunpack.c.l.b16 %v298
      %v694 = vunpack.c.l.b16 %v299
      %v695 = vunpack.c.l.b16 %v300
      %v696 = vunpack.c.l.b16 %v301
      %v697 = vunpack.c.l.b16 %v302
      %v698 = vunpack.c.l.b16 %v303
      %v699 = vunpack.c.l.b16 %v304
      %v700 = vunpack.c.l.b16 %v305
      %v701 = vunpack.c.l.b16 %v306
      %v702 = vunpack.c.l.b16 %v307
      %v703 = vunpack.c.l.b16 %v308
      %v704 = vunpack.c.l.b16 %v309
      %v705 = vunpack.c.l.b16 %v310
      %v706 = vunpack.c.l.b16 %v311
      %v707 = vunpack.c.l.b16 %v312
      %v708 = vunpack.c.l.b16 %v313
      %v709 = vunpack.c.l.b16 %v314
      %v710 = vunpack.c.l.b16 %v315
      %v711 = vunpack.c.l.b16 %v316
      %v712 = vunpack.c.l.b16 %v317
      %v713 = vunpack.c.l.b16 %v318
      %v714 = vunpack.c.l.b16 %v319
      %v715 = vunpack.c.l.b16 %v320
      %v716 = vunpack.c.l.b16 %v321
      %v717 = vunpack.c.l.b16 %v322
      %v718 = vunpack.c.l.b16 %v323
      %v719 = vunpack.c.l.b16 %v324
      %v720 = vunpack.c.l.b16 %v325
      %v721 = vunpack.c.l.b16 %v326
      %v722 = vunpack.c.l.b16 %v327
      %v723 = vunpack.c.l.b16 %v328
      %v724 = vunpack.c.l.b16 %v329
      %v725 = vunpack.c.l.b16 %v330
      %v726 = vunpack.c.l.b16 %v331
      %v727 = vunpack.c.l.b16 %v332
      %v728 = vunpack.c.l.b16 %v333
      %v729 = vunpack.c.l.b16 %v334
      %v730 = vunpack.c.l.b16 %v335
      %v731 = vunpack.c.l.b16 %v336
      %v732 = vunpack.c.l.b16 %v337
      %v733 = vunpack.c.l.b16 %v338
      %v734 = vunpack.c.l.b16 %v339
      %v735 = vunpack.c.l.b16 %v340
      %v736 = vunpack.c.l.b16 %v341
      %v737 = vunpack.c.l.b16 %v342
      %v738 = vunpack.c.l.b16 %v343
      %v739 = vunpack.c.l.b16 %v344
      %v740 = vunpack.c.l.b16 %v345
      %v741 = vunpack.c.l.b16 %v346
      %v742 = vunpack.c.l.b16 %v347
      %v743 = vunpack.c.l.b16 %v348
      %v744 = vunpack.c.l.b16 %v349
      %v745 = vunpack.c.l.b16 %v350
      %v746 = vunpack.c.l.b16 %v351
      %v747 = vunpack.c.l.b16 %v352
      %v748 = vunpack.c.l.b16 %v353
      %v749 = vunpack.c.l.b16 %v354
      %v750 = vunpack.c.l.b16 %v355
      %v751 = vunpack.c.l.b16 %v356
      %v752 = vunpack.c.l.b16 %v357
      %v753 = vunpack.c.l.b16 %v358
      %v754 = vunpack.c.l.b16 %v359
      %v755 = vunpack.c.l.b16 %v360
      %v756 = vunpack.c.l.b16 %v361
      %v757 = vunpack.c.l.b16 %v362
      %v758 = vunpack.c.l.b16 %v363
      %v759 = vunpack.c.l.b16 %v364
      %v760 = vunpack.c.l.b16 %v365
      %v761 = vunpack.c.l.b16 %v366
      %v762 = vpack.c.b16 %v571, %v570
      %v763 = vpack.c.b16 %v573, %v572
      %v764 = vpack.c.b16 %v575, %v574
      %v765 = vpack.c.b16 %v577, %v576
      %v766 = vpack.c.b16 %v579, %v578
      %v767 = vpack.c.b16 %v581, %v580
      %v768 = vpack.c.b16 %v583, %v582
      %v769 = vpack.c.b16 %v585, %v584
      %v770 = vpack.c.b16 %v587, %v586
      %v771 = vpack.c.b16 %v589, %v588
      %v772 = vpack.c.b16 %v591, %v590
      %v773 = vpack.c.b16 %v593, %v592
      %v774 = vpack.c.b16 %v595, %v594
      %v775 = vpack.c.b16 %v597, %v596
      %v776 = vpack.c.b16 %v599, %v598
      %v777 = vpack.c.b16 %v601, %v600
      %v778 = vpack.c.b16 %v603, %v602
      %v779 = vpack.c.b16 %v605, %v604
      %v780 = vpack.c.b16 %v607, %v606
      %v781 = vpack.c.b16 %v609, %v608
      %v782 = vpack.c.b16 %v611, %v610
      %v783 = vpack.c.b16 %v613, %v612
      %v784 = vpack.c.b16 %v615, %v614
      %v785 = vpack.c.b16 %v617, %v616
      %v786 = vpack.c.b16 %v619, %v618
      %v787 = vpack.c.b16 %v621, %v620
      %v788 = vpack.c.b16 %v623, %v622
      %v789 = vpack.c.b16 %v625, %v624
      %v790 = vpack.c.b16 %v627, %v626
      %v791 = vpack.c.b16 %v629, %v628
      %v792 = vpack.c.b16 %v631, %v630
      %v793 = vpack.c.b16 %v633, %v632
      %v794 = vpack.c.b16 %v635, %v634
      %v795 = vpack.c.b16 %v637, %v636
      %v796 = vpack.c.b16 %v639, %v638
      %v797 = vpack.c.b16 %v641, %v640
      %v798 = vpack.c.b16 %v643, %v642
      %v799 = vpack.c.b16 %v645, %v644
      %v800 = vpack.c.b16 %v647, %v646
      %v801 = vpack.c.b16 %v649, %v648
      %v802 = vpack.c.b16 %v651, %v650
      %v803 = vpack.c.b16 %v653, %v652
      %v804 = vpack.c.b16 %v655, %v654
      %v805 = vpack.c.b16 %v657, %v656
      %v806 = vpack.c.b16 %v659, %v658
      %v807 = vpack.c.b16 %v661, %v660
      %v808 = vpack.c.b16 %v663, %v662
      %v809 = vpack.c.b16 %v665, %v664
      %v810 = vpack.c.b16 %v667, %v666
      %v811 = vpack.c.b16 %v669, %v668
      %v812 = vpack.c.b16 %v671, %v670
      %v813 = vpack.c.b16 %v673, %v672
      %v814 = vpack.c.b16 %v675, %v674
      %v815 = vpack.c.b16 %v677, %v676
      %v816 = vpack.c.b16 %v679, %v678
      %v817 = vpack.c.b16 %v681, %v680
      %v818 = vpack.c.b16 %v683, %v682
      %v819 = vpack.c.b16 %v685, %v684
      %v820 = vpack.c.b16 %v687, %v686
      %v821 = vpack.c.b16 %v689, %v688
      %v822 = vpack.c.b16 %v691, %v690
      %v823 = vpack.c.b16 %v693, %v692
      %v824 = vpack.c.b16 %v695, %v694
      %v825 = vpack.c.b16 %v697, %v696
      %v826 = vpack.c.b16 %v699, %v698
      %v827 = vpack.c.b16 %v701, %v700
      %v828 = vpack.c.b16 %v703, %v702
      %v829 = vpack.c.b16 %v705, %v704
      %v830 = vpack.c.b16 %v707, %v706
      %v831 = vpack.c.b16 %v709, %v708
      %v832 = vpack.c.b16 %v711, %v710
      %v833 = vpack.c.b16 %v713, %v712
      %v834 = vpack.c.b16 %v715, %v714
      %v835 = vpack.c.b16 %v717, %v716
      %v836 = vpack.c.b16 %v719, %v718
      %v837 = vpack.c.b16 %v721, %v720
      %v838 = vpack.c.b16 %v723, %v722
      %v839 = vpack.c.b16 %v725, %v724
      %v840 = vpack.c.b16 %v727, %v726
      %v841 = vpack.c.b16 %v729, %v728
      %v842 = vpack.c.b16 %v731, %v730
      %v843 = vpack.c.b16 %v733, %v732
      %v844 = vpack.c.b16 %v735, %v734
      %v845 = vpack.c.b16 %v737, %v736
      %v846 = vpack.c.b16 %v739, %v738
      %v847 = vpack.c.b16 %v741, %v740
      %v848 = vpack.c.b16 %v743, %v742
      %v849 = vpack.c.b16 %v745, %v744
      %v850 = vpack.c.b16 %v747, %v746
      %v851 = vpack.c.b16 %v749, %v748
      %v852 = vpack.c.b16 %v751, %v750
      %v853 = vpack.c.b16 %v753, %v752
      %v854 = vpack.c.b16 %v755, %v754
      %v855 = vpack.c.b16 %v757, %v756
      %v856 = vpack.c.b16 %v759, %v758
      %v857 = vpack.c.b16 %v761, %v760
      %v862 = vunpack.c.l.b16 %v367
      %v863 = vunpack.c.l.b16 %v368
      %v864 = vunpack.c.l.b16 %v369
      %v865 = vunpack.c.l.b16 %v370
      %v866 = vpack.c.b16 %v863, %v862
      %v867 = vpack.c.b16 %v865, %v864
      %vm869 = vcmask 203776
      %v871 = vsel %vm869, %v762, 0
      %v874 = vsel %vm869, %v763, 0
      %v877 = vsel %vm869, %v764, 0
      %v880 = vsel %vm869, %v765, 0
      %v883 = vsel %vm869, %v766, 0
      %v886 = vsel %vm869, %v767, 0
      %v889 = vsel %vm869, %v768, 0
      %v892 = vsel %vm869, %v769, 0
      %v895 = vsel %vm869, %v770, 0
      %v898 = vsel %vm869, %v771, 0
      %v901 = vsel %vm869, %v772, 0
      %v904 = vsel %vm869, %v773, 0
      %v907 = vsel %vm869, %v774, 0
      %v910 = vsel %vm869, %v775, 0
      %v913 = vsel %vm869, %v776, 0
      %v916 = vsel %vm869, %v777, 0
      %v919 = vsel %vm869, %v778, 0
      %v922 = vsel %vm869, %v779, 0
      %v925 = vsel %vm869, %v780, 0
      %v928 = vsel %vm869, %v781, 0
      %v931 = vsel %vm869, %v782, 0
      %v934 = vsel %vm869, %v783, 0
      %v937 = vsel %vm869, %v784, 0
      %v940 = vsel %vm869, %v785, 0
      %v943 = vsel %vm869, %v786, 0
      %v946 = vsel %vm869, %v787, 0
      %v949 = vsel %vm869, %v788, 0
      %v952 = vsel %vm869, %v789, 0
      %v955 = vsel %vm869, %v790, 0
      %v958 = vsel %vm869, %v791, 0
      %v961 = vsel %vm869, %v792, 0
      %v964 = vsel %vm869, %v793, 0
      %v967 = vsel %vm869, %v794, 0
      %v970 = vsel %vm869, %v795, 0
      %v973 = vsel %vm869, %v796, 0
      %v976 = vsel %vm869, %v797, 0
      %v979 = vsel %vm869, %v798, 0
      %v982 = vsel %vm869, %v799, 0
      %v985 = vsel %vm869, %v800, 0
      %v988 = vsel %vm869, %v801, 0
      %v991 = vsel %vm869, %v802, 0
      %v994 = vsel %vm869, %v803, 0
      %v997 = vsel %vm869, %v804, 0
      %v1000 = vsel %vm869, %v805, 0
      %v1003 = vsel %vm869, %v806, 0
      %v1006 = vsel %vm869, %v807, 0
      %v1009 = vsel %vm869, %v808, 0
      %v1012 = vsel %vm869, %v809, 0
      %v1015 = vsel %vm869, %v810, 0
      %v1018 = vsel %vm869, %v811, 0
      %v1021 = vsel %vm869, %v812, 0
      %v1024 = vsel %vm869, %v813, 0
      %v1027 = vsel %vm869, %v814, 0
      %v1030 = vsel %vm869, %v815, 0
      %v1033 = vsel %vm869, %v816, 0
      %v1036 = vsel %vm869, %v817, 0
      %v1039 = vsel %vm869, %v818, 0
      %v1042 = vsel %vm869, %v819, 0
      %v1045 = vsel %vm869, %v820, 0
      %v1048 = vsel %vm869, %v821, 0
      %v1051 = vsel %vm869, %v822, 0
      %v1054 = vsel %vm869, %v823, 0
      %v1057 = vsel %vm869, %v824, 0
      %v1060 = vsel %vm869, %v825, 0
      %v1063 = vsel %vm869, %v826, 0
      %v1066 = vsel %vm869, %v827, 0
      %v1069 = vsel %vm869, %v828, 0
      %v1072 = vsel %vm869, %v829, 0
      %v1075 = vsel %vm869, %v830, 0
      %v1078 = vsel %vm869, %v831, 0
      %v1081 = vsel %vm869, %v832, 0
      %v1084 = vsel %vm869, %v833, 0
      %v1087 = vsel %vm869, %v834, 0
      %v1090 = vsel %vm869, %v835, 0
      %v1093 = vsel %vm869, %v836, 0
      %v1096 = vsel %vm869, %v837, 0
      %v1099 = vsel %vm869, %v838, 0
      %v1102 = vsel %vm869, %v839, 0
      %v1105 = vsel %vm869, %v840, 0
      %v1108 = vsel %vm869, %v841, 0
      %v1111 = vsel %vm869, %v842, 0
      %v1114 = vsel %vm869, %v843, 0
      %v1117 = vsel %vm869, %v844, 0
      %v1120 = vsel %vm869, %v845, 0
      %v1123 = vsel %vm869, %v846, 0
      %v1126 = vsel %vm869, %v847, 0
      %v1129 = vsel %vm869, %v848, 0
      %v1132 = vsel %vm869, %v849, 0
      %v1135 = vsel %vm869, %v850, 0
      %v1138 = vsel %vm869, %v851, 0
      %v1141 = vsel %vm869, %v852, 0
      %v1144 = vsel %vm869, %v853, 0
      %v1147 = vsel %vm869, %v854, 0
      %v1150 = vsel %vm869, %v855, 0
      %v1153 = vsel %vm869, %v856, 0
      %v1156 = vsel %vm869, %v857, 0
      %vm1158 = vcmask 1043456
      %vm1159 = vcmask 1044480
      %v1160 = vsel %vm1158, 4294967295, 65535
      %v1161 = vsel %vm1159, %v1160, 0
      %v1163 = vand.u32 %v867, %v1161
      %1165 = vmatprep.subr.bf16.mxu0 0
      %1166 = vmatpush1.bf16.msra.mxu0 %v866
      %1167 = vmatprep.subr.bf16.mxu0 0
      %1168 = vmatpush1.bf16.msra.mxu0 %v1163
      %1169 = vmatprep.subr.bf16.mxu0 0
      %1170 = vmatpush1.bf16.msra.mxu0 0
      %1171 = vmatprep.subr.bf16.mxu0 0
      %1172 = vmatpush1.bf16.msra.mxu0 0
      %1173 = vmatprep.subr.bf16.mxu0 0
      %1174 = vmatpush1.bf16.msra.mxu0 0
      %1175 = vmatprep.subr.bf16.mxu0 0
      %1176 = vmatpush1.bf16.msra.mxu0 0
      %1177 = vmatprep.subr.bf16.mxu0 0
      %1178 = vmatpush1.bf16.msra.mxu0 0
      %1179 = vmatprep.subr.bf16.mxu0 0
      %1180 = vmatpush1.bf16.msra.mxu0 0
      %1181 = vmatprep.subr.bf16.mxu0 0
      %1182 = vmatpush1.bf16.msra.mxu0 0
      %1183 = vmatprep.subr.bf16.mxu0 0
      %1184 = vmatpush1.bf16.msra.mxu0 0
      %1185 = vmatprep.subr.bf16.mxu0 0
      %1186 = vmatpush1.bf16.msra.mxu0 0
      %1187 = vmatprep.subr.bf16.mxu0 0
      %1188 = vmatpush1.bf16.msra.mxu0 0
      %1189 = vmatprep.subr.bf16.mxu0 0
      %1190 = vmatpush1.bf16.msra.mxu0 0
      %1191 = vmatprep.subr.bf16.mxu0 0
      %1192 = vmatpush1.bf16.msra.mxu0 0
      %1193 = vmatprep.subr.bf16.mxu0 0
      %1194 = vmatpush1.bf16.msra.mxu0 0
      %1195 = vmatprep.subr.bf16.mxu0 0
      %1196 = vmatpush1.bf16.msra.mxu0 0
      %1197 = vmatprep.mubr.bf16.mxu0 0
      %1198 = vmatmul.mubr.bf16.gmra.mrb[0].mxu0 %v871
      %v1199 = vpop.f32.mrb[0].mxu0
      %v1200 = vadd.f32 %v376, %v1199
      %v1201 = vpop.f32.mrb[0].mxu0
      %v1202 = vpop.f32.mrb[0].mxu0
      %v1203 = vadd.f32 %v376, %v1202
      %v1204 = vpop.f32.mrb[0].mxu0
      %1205 = vmatprep.mubr.bf16.mxu0 0
      %1206 = vmatmul.mubr.bf16.gmra.mrb[0].mxu0 %v874
      %v1207 = vpop.f32.mrb[0].mxu0
      %v1208 = vadd.f32 %v376, %v1207
      %v1209 = vpop.f32.mrb[0].mxu0
      %v1210 = vpop.f32.mrb[0].mxu0
      %v1211 = vadd.f32 %v376, %v1210
      %v1212 = vpop.f32.mrb[0].mxu0
      %1213 = vmatprep.mubr.bf16.mxu0 0
      %1214 = vmatmul.mubr.bf16.gmra.mrb[0].mxu0 %v877
      %v1215 = vpop.f32.mrb[0].mxu0
      %v1216 = vadd.f32 %v376, %v1215
      %v1217 = vpop.f32.mrb[0].mxu0
      %v1218 = vpop.f32.mrb[0].mxu0
      %v1219 = vadd.f32 %v376, %v1218
      %v1220 = vpop.f32.mrb[0].mxu0
      %1221 = vmatprep.mubr.bf16.mxu0 0
      %1222 = vmatmul.mubr.bf16.gmra.mrb[0].mxu0 %v880
      %v1223 = vpop.f32.mrb[0].mxu0
      %v1224 = vadd.f32 %v376, %v1223
      %v1225 = vpop.f32.mrb[0].mxu0
      %v1226 = vpop.f32.mrb[0].mxu0
      %v1227 = vadd.f32 %v376, %v1226
      %v1228 = vpop.f32.mrb[0].mxu0
      %1229 = vmatprep.mubr.bf16.mxu0 0
      %1230 = vmatmul.mubr.bf16.gmra.mrb[0].mxu0 %v883
      %v1231 = vpop.f32.mrb[0].mxu0
      %v1232 = vadd.f32 %v376, %v1231
      %v1233 = vpop.f32.mrb[0].mxu0
      %v1234 = vpop.f32.mrb[0].mxu0
      %v1235 = vadd.f32 %v376, %v1234
      %v1236 = vpop.f32.mrb[0].mxu0
      %1237 = vmatprep.mubr.bf16.mxu0 0
      %1238 = vmatmul.mubr.bf16.gmra.mrb[0].mxu0 %v886
      %v1239 = vpop.f32.mrb[0].mxu0
      %v1240 = vadd.f32 %v376, %v1239
      %v1241 = vpop.f32.mrb[0].mxu0
      %v1242 = vpop.f32.mrb[0].mxu0
      %v1243 = vadd.f32 %v376, %v1242
      %v1244 = vpop.f32.mrb[0].mxu0
      %1245 = vmatprep.mubr.bf16.mxu0 0
      %1246 = vmatmul.mubr.bf16.gmra.mrb[0].mxu0 %v889
      %v1247 = vpop.f32.mrb[0].mxu0
      %v1248 = vadd.f32 %v376, %v1247
      %v1249 = vpop.f32.mrb[0].mxu0
      %v1250 = vpop.f32.mrb[0].mxu0
      %v1251 = vadd.f32 %v376, %v1250
      %v1252 = vpop.f32.mrb[0].mxu0
      %1253 = vmatprep.mubr.bf16.mxu0 0
      %1254 = vmatmul.mubr.bf16.gmra.mrb[0].mxu0 %v892
      %v1255 = vpop.f32.mrb[0].mxu0
      %v1256 = vadd.f32 %v376, %v1255
      %v1257 = vpop.f32.mrb[0].mxu0
      %v1258 = vpop.f32.mrb[0].mxu0
      %v1259 = vadd.f32 %v376, %v1258
      %v1260 = vpop.f32.mrb[0].mxu0
      %1261 = vmatprep.mubr.bf16.mxu0 0
      %1262 = vmatmul.mubr.bf16.gmra.mrb[0].mxu0 %v895
      %v1263 = vpop.f32.mrb[0].mxu0
      %v1264 = vadd.f32 %v376, %v1263
      %v1265 = vpop.f32.mrb[0].mxu0
      %v1266 = vpop.f32.mrb[0].mxu0
      %v1267 = vadd.f32 %v376, %v1266
      %v1268 = vpop.f32.mrb[0].mxu0
      %1269 = vmatprep.mubr.bf16.mxu0 0
      %1270 = vmatmul.mubr.bf16.gmra.mrb[0].mxu0 %v898
      %v1271 = vpop.f32.mrb[0].mxu0
      %v1272 = vadd.f32 %v376, %v1271
      %v1273 = vpop.f32.mrb[0].mxu0
      %v1274 = vpop.f32.mrb[0].mxu0
      %v1275 = vadd.f32 %v376, %v1274
      %v1276 = vpop.f32.mrb[0].mxu0
      %1277 = vmatprep.mubr.bf16.mxu0 0
      %1278 = vmatmul.mubr.bf16.gmra.mrb[0].mxu0 %v901
      %v1279 = vpop.f32.mrb[0].mxu0
      %v1280 = vadd.f32 %v376, %v1279
      %v1281 = vpop.f32.mrb[0].mxu0
      %v1282 = vpop.f32.mrb[0].mxu0
      %v1283 = vadd.f32 %v376, %v1282
      %v1284 = vpop.f32.mrb[0].mxu0
      %1285 = vmatprep.mubr.bf16.mxu0 0
      %1286 = vmatmul.mubr.bf16.gmra.mrb[0].mxu0 %v904
      %v1287 = vpop.f32.mrb[0].mxu0
      %v1288 = vadd.f32 %v376, %v1287
      %v1289 = vpop.f32.mrb[0].mxu0
      %v1290 = vpop.f32.mrb[0].mxu0
      %v1291 = vadd.f32 %v376, %v1290
      %v1292 = vpop.f32.mrb[0].mxu0
      %1293 = vmatprep.mubr.bf16.mxu0 0
      %1294 = vmatmul.mubr.bf16.gmra.mrb[0].mxu0 %v907
      %v1295 = vpop.f32.mrb[0].mxu0
      %v1296 = vadd.f32 %v376, %v1295
      %v1297 = vpop.f32.mrb[0].mxu0
      %v1298 = vpop.f32.mrb[0].mxu0
      %v1299 = vadd.f32 %v376, %v1298
      %v1300 = vpop.f32.mrb[0].mxu0
      %1301 = vmatprep.mubr.bf16.mxu0 0
      %1302 = vmatmul.mubr.bf16.gmra.mrb[0].mxu0 %v910
      %v1303 = vpop.f32.mrb[0].mxu0
      %v1304 = vadd.f32 %v376, %v1303
      %v1305 = vpop.f32.mrb[0].mxu0
      %v1306 = vpop.f32.mrb[0].mxu0
      %v1307 = vadd.f32 %v376, %v1306
      %v1308 = vpop.f32.mrb[0].mxu0
      %1309 = vmatprep.mubr.bf16.mxu0 0
      %1310 = vmatmul.mubr.bf16.gmra.mrb[0].mxu0 %v913
      %v1311 = vpop.f32.mrb[0].mxu0
      %v1312 = vadd.f32 %v376, %v1311
      %v1313 = vpop.f32.mrb[0].mxu0
      %v1314 = vpop.f32.mrb[0].mxu0
      %v1315 = vadd.f32 %v376, %v1314
      %v1316 = vpop.f32.mrb[0].mxu0
      %1317 = vmatprep.mubr.bf16.mxu0 0
      %1318 = vmatmul.mubr.bf16.gmra.mrb[0].mxu0 %v916
      %v1319 = vpop.f32.mrb[0].mxu0
      %v1320 = vadd.f32 %v376, %v1319
      %v1321 = vpop.f32.mrb[0].mxu0
      %v1322 = vpop.f32.mrb[0].mxu0
      %v1323 = vadd.f32 %v376, %v1322
      %v1324 = vpop.f32.mrb[0].mxu0
      %1325 = vmatprep.mubr.bf16.mxu0 0
      %1326 = vmatmul.mubr.bf16.gmra.mrb[0].mxu0 %v919
      %v1327 = vpop.f32.mrb[0].mxu0
      %v1328 = vadd.f32 %v376, %v1327
      %v1329 = vpop.f32.mrb[0].mxu0
      %v1330 = vpop.f32.mrb[0].mxu0
      %v1331 = vadd.f32 %v376, %v1330
      %v1332 = vpop.f32.mrb[0].mxu0
      %1333 = vmatprep.mubr.bf16.mxu0 0
      %1334 = vmatmul.mubr.bf16.gmra.mrb[0].mxu0 %v922
      %v1335 = vpop.f32.mrb[0].mxu0
      %v1336 = vadd.f32 %v376, %v1335
      %v1337 = vpop.f32.mrb[0].mxu0
      %v1338 = vpop.f32.mrb[0].mxu0
      %v1339 = vadd.f32 %v376, %v1338
      %v1340 = vpop.f32.mrb[0].mxu0
      %1341 = vmatprep.mubr.bf16.mxu0 0
      %1342 = vmatmul.mubr.bf16.gmra.mrb[0].mxu0 %v925
      %v1343 = vpop.f32.mrb[0].mxu0
      %v1344 = vadd.f32 %v376, %v1343
      %v1345 = vpop.f32.mrb[0].mxu0
      %v1346 = vpop.f32.mrb[0].mxu0
      %v1347 = vadd.f32 %v376, %v1346
      %v1348 = vpop.f32.mrb[0].mxu0
      %1349 = vmatprep.mubr.bf16.mxu0 0
      %1350 = vmatmul.mubr.bf16.gmra.mrb[0].mxu0 %v928
      %v1351 = vpop.f32.mrb[0].mxu0
      %v1352 = vadd.f32 %v376, %v1351
      %v1353 = vpop.f32.mrb[0].mxu0
      %v1354 = vpop.f32.mrb[0].mxu0
      %v1355 = vadd.f32 %v376, %v1354
      %v1356 = vpop.f32.mrb[0].mxu0
      %1357 = vmatprep.mubr.bf16.mxu0 0
      %1358 = vmatmul.mubr.bf16.gmra.mrb[0].mxu0 %v931
      %v1359 = vpop.f32.mrb[0].mxu0
      %v1360 = vadd.f32 %v376, %v1359
      %v1361 = vpop.f32.mrb[0].mxu0
      %v1362 = vpop.f32.mrb[0].mxu0
      %v1363 = vadd.f32 %v376, %v1362
      %v1364 = vpop.f32.mrb[0].mxu0
      %1365 = vmatprep.mubr.bf16.mxu0 0
      %1366 = vmatmul.mubr.bf16.gmra.mrb[0].mxu0 %v934
      %v1367 = vpop.f32.mrb[0].mxu0
      %v1368 = vadd.f32 %v376, %v1367
      %v1369 = vpop.f32.mrb[0].mxu0
      %v1370 = vpop.f32.mrb[0].mxu0
      %v1371 = vadd.f32 %v376, %v1370
      %v1372 = vpop.f32.mrb[0].mxu0
      %1373 = vmatprep.mubr.bf16.mxu0 0
      %1374 = vmatmul.mubr.bf16.gmra.mrb[0].mxu0 %v937
      %v1375 = vpop.f32.mrb[0].mxu0
      %v1376 = vadd.f32 %v376, %v1375
      %v1377 = vpop.f32.mrb[0].mxu0
      %v1378 = vpop.f32.mrb[0].mxu0
      %v1379 = vadd.f32 %v376, %v1378
      %v1380 = vpop.f32.mrb[0].mxu0
      %1381 = vmatprep.mubr.bf16.mxu0 0
      %1382 = vmatmul.mubr.bf16.gmra.mrb[0].mxu0 %v940
      %v1383 = vpop.f32.mrb[0].mxu0
      %v1384 = vadd.f32 %v376, %v1383
      %v1385 = vpop.f32.mrb[0].mxu0
      %v1386 = vpop.f32.mrb[0].mxu0
      %v1387 = vadd.f32 %v376, %v1386
      %v1388 = vpop.f32.mrb[0].mxu0
      %1389 = vmatprep.mubr.bf16.mxu0 0
      %1390 = vmatmul.mubr.bf16.gmra.mrb[0].mxu0 %v943
      %v1391 = vpop.f32.mrb[0].mxu0
      %v1392 = vadd.f32 %v376, %v1391
      %v1393 = vpop.f32.mrb[0].mxu0
      %v1394 = vpop.f32.mrb[0].mxu0
      %v1395 = vadd.f32 %v376, %v1394
      %v1396 = vpop.f32.mrb[0].mxu0
      %1397 = vmatprep.mubr.bf16.mxu0 0
      %1398 = vmatmul.mubr.bf16.gmra.mrb[0].mxu0 %v946
      %v1399 = vpop.f32.mrb[0].mxu0
      %v1400 = vadd.f32 %v376, %v1399
      %v1401 = vpop.f32.mrb[0].mxu0
      %v1402 = vpop.f32.mrb[0].mxu0
      %v1403 = vadd.f32 %v376, %v1402
      %v1404 = vpop.f32.mrb[0].mxu0
      %1405 = vmatprep.mubr.bf16.mxu0 0
      %1406 = vmatmul.mubr.bf16.gmra.mrb[0].mxu0 %v949
      %v1407 = vpop.f32.mrb[0].mxu0
      %v1408 = vadd.f32 %v376, %v1407
      %v1409 = vpop.f32.mrb[0].mxu0
      %v1410 = vpop.f32.mrb[0].mxu0
      %v1411 = vadd.f32 %v376, %v1410
      %v1412 = vpop.f32.mrb[0].mxu0
      %1413 = vmatprep.mubr.bf16.mxu0 0
      %1414 = vmatmul.mubr.bf16.gmra.mrb[0].mxu0 %v952
      %v1415 = vpop.f32.mrb[0].mxu0
      %v1416 = vadd.f32 %v376, %v1415
      %v1417 = vpop.f32.mrb[0].mxu0
      %v1418 = vpop.f32.mrb[0].mxu0
      %v1419 = vadd.f32 %v376, %v1418
      %v1420 = vpop.f32.mrb[0].mxu0
      %1421 = vmatprep.mubr.bf16.mxu0 0
      %1422 = vmatmul.mubr.bf16.gmra.mrb[0].mxu0 %v955
      %v1423 = vpop.f32.mrb[0].mxu0
      %v1424 = vadd.f32 %v376, %v1423
      %v1425 = vpop.f32.mrb[0].mxu0
      %v1426 = vpop.f32.mrb[0].mxu0
      %v1427 = vadd.f32 %v376, %v1426
      %v1428 = vpop.f32.mrb[0].mxu0
      %1429 = vmatprep.mubr.bf16.mxu0 0
      %1430 = vmatmul.mubr.bf16.gmra.mrb[0].mxu0 %v958
      %v1431 = vpop.f32.mrb[0].mxu0
      %v1432 = vadd.f32 %v376, %v1431
      %v1433 = vpop.f32.mrb[0].mxu0
      %v1434 = vpop.f32.mrb[0].mxu0
      %v1435 = vadd.f32 %v376, %v1434
      %v1436 = vpop.f32.mrb[0].mxu0
      %1437 = vmatprep.mubr.bf16.mxu0 0
      %1438 = vmatmul.mubr.bf16.gmra.mrb[0].mxu0 %v961
      %v1439 = vpop.f32.mrb[0].mxu0
      %v1440 = vadd.f32 %v376, %v1439
      %v1441 = vpop.f32.mrb[0].mxu0
      %v1442 = vpop.f32.mrb[0].mxu0
      %v1443 = vadd.f32 %v376, %v1442
      %v1444 = vpop.f32.mrb[0].mxu0
      %1445 = vmatprep.mubr.bf16.mxu0 0
      %1446 = vmatmul.mubr.bf16.gmra.mrb[0].mxu0 %v964
      %v1447 = vpop.f32.mrb[0].mxu0
      %v1448 = vadd.f32 %v376, %v1447
      %v1449 = vpop.f32.mrb[0].mxu0
      %v1450 = vpop.f32.mrb[0].mxu0
      %v1451 = vadd.f32 %v376, %v1450
      %v1452 = vpop.f32.mrb[0].mxu0
      %1453 = vmatprep.mubr.bf16.mxu0 0
      %1454 = vmatmul.mubr.bf16.gmra.mrb[0].mxu0 %v967
      %v1455 = vpop.f32.mrb[0].mxu0
      %v1456 = vadd.f32 %v376, %v1455
      %v1457 = vpop.f32.mrb[0].mxu0
      %v1458 = vpop.f32.mrb[0].mxu0
      %v1459 = vadd.f32 %v376, %v1458
      %v1460 = vpop.f32.mrb[0].mxu0
      %1461 = vmatprep.mubr.bf16.mxu0 0
      %1462 = vmatmul.mubr.bf16.gmra.mrb[0].mxu0 %v970
      %v1463 = vpop.f32.mrb[0].mxu0
      %v1464 = vadd.f32 %v376, %v1463
      %v1465 = vpop.f32.mrb[0].mxu0
      %v1466 = vpop.f32.mrb[0].mxu0
      %v1467 = vadd.f32 %v376, %v1466
      %v1468 = vpop.f32.mrb[0].mxu0
      %1469 = vmatprep.mubr.bf16.mxu0 0
      %1470 = vmatmul.mubr.bf16.gmra.mrb[0].mxu0 %v973
      %v1471 = vpop.f32.mrb[0].mxu0
      %v1472 = vadd.f32 %v376, %v1471
      %v1473 = vpop.f32.mrb[0].mxu0
      %v1474 = vpop.f32.mrb[0].mxu0
      %v1475 = vadd.f32 %v376, %v1474
      %v1476 = vpop.f32.mrb[0].mxu0
      %1477 = vmatprep.mubr.bf16.mxu0 0
      %1478 = vmatmul.mubr.bf16.gmra.mrb[0].mxu0 %v976
      %v1479 = vpop.f32.mrb[0].mxu0
      %v1480 = vadd.f32 %v376, %v1479
      %v1481 = vpop.f32.mrb[0].mxu0
      %v1482 = vpop.f32.mrb[0].mxu0
      %v1483 = vadd.f32 %v376, %v1482
      %v1484 = vpop.f32.mrb[0].mxu0
      %1485 = vmatprep.mubr.bf16.mxu0 0
      %1486 = vmatmul.mubr.bf16.gmra.mrb[0].mxu0 %v979
      %v1487 = vpop.f32.mrb[0].mxu0
      %v1488 = vadd.f32 %v376, %v1487
      %v1489 = vpop.f32.mrb[0].mxu0
      %v1490 = vpop.f32.mrb[0].mxu0
      %v1491 = vadd.f32 %v376, %v1490
      %v1492 = vpop.f32.mrb[0].mxu0
      %1493 = vmatprep.mubr.bf16.mxu0 0
      %1494 = vmatmul.mubr.bf16.gmra.mrb[0].mxu0 %v982
      %v1495 = vpop.f32.mrb[0].mxu0
      %v1496 = vadd.f32 %v376, %v1495
      %v1497 = vpop.f32.mrb[0].mxu0
      %v1498 = vpop.f32.mrb[0].mxu0
      %v1499 = vadd.f32 %v376, %v1498
      %v1500 = vpop.f32.mrb[0].mxu0
      %1501 = vmatprep.mubr.bf16.mxu0 0
      %1502 = vmatmul.mubr.bf16.gmra.mrb[0].mxu0 %v985
      %v1503 = vpop.f32.mrb[0].mxu0
      %v1504 = vadd.f32 %v376, %v1503
      %v1505 = vpop.f32.mrb[0].mxu0
      %v1506 = vpop.f32.mrb[0].mxu0
      %v1507 = vadd.f32 %v376, %v1506
      %v1508 = vpop.f32.mrb[0].mxu0
      %1509 = vmatprep.mubr.bf16.mxu0 0
      %1510 = vmatmul.mubr.bf16.gmra.mrb[0].mxu0 %v988
      %v1511 = vpop.f32.mrb[0].mxu0
      %v1512 = vadd.f32 %v376, %v1511
      %v1513 = vpop.f32.mrb[0].mxu0
      %v1514 = vpop.f32.mrb[0].mxu0
      %v1515 = vadd.f32 %v376, %v1514
      %v1516 = vpop.f32.mrb[0].mxu0
      %1517 = vmatprep.mubr.bf16.mxu0 0
      %1518 = vmatmul.mubr.bf16.gmra.mrb[0].mxu0 %v991
      %v1519 = vpop.f32.mrb[0].mxu0
      %v1520 = vadd.f32 %v376, %v1519
      %v1521 = vpop.f32.mrb[0].mxu0
      %v1522 = vpop.f32.mrb[0].mxu0
      %v1523 = vadd.f32 %v376, %v1522
      %v1524 = vpop.f32.mrb[0].mxu0
      %1525 = vmatprep.mubr.bf16.mxu0 0
      %1526 = vmatmul.mubr.bf16.gmra.mrb[0].mxu0 %v994
      %v1527 = vpop.f32.mrb[0].mxu0
      %v1528 = vadd.f32 %v376, %v1527
      %v1529 = vpop.f32.mrb[0].mxu0
      %v1530 = vpop.f32.mrb[0].mxu0
      %v1531 = vadd.f32 %v376, %v1530
      %v1532 = vpop.f32.mrb[0].mxu0
      %1533 = vmatprep.mubr.bf16.mxu0 0
      %1534 = vmatmul.mubr.bf16.gmra.mrb[0].mxu0 %v997
      %v1535 = vpop.f32.mrb[0].mxu0
      %v1536 = vadd.f32 %v376, %v1535
      %v1537 = vpop.f32.mrb[0].mxu0
      %v1538 = vpop.f32.mrb[0].mxu0
      %v1539 = vadd.f32 %v376, %v1538
      %v1540 = vpop.f32.mrb[0].mxu0
      %1541 = vmatprep.mubr.bf16.mxu0 0
      %1542 = vmatmul.mubr.bf16.gmra.mrb[0].mxu0 %v1000
      %v1543 = vpop.f32.mrb[0].mxu0
      %v1544 = vadd.f32 %v376, %v1543
      %v1545 = vpop.f32.mrb[0].mxu0
      %v1546 = vpop.f32.mrb[0].mxu0
      %v1547 = vadd.f32 %v376, %v1546
      %v1548 = vpop.f32.mrb[0].mxu0
      %1549 = vmatprep.mubr.bf16.mxu0 0
      %1550 = vmatmul.mubr.bf16.gmra.mrb[0].mxu0 %v1003
      %v1551 = vpop.f32.mrb[0].mxu0
      %v1552 = vadd.f32 %v376, %v1551
      %v1553 = vpop.f32.mrb[0].mxu0
      %v1554 = vpop.f32.mrb[0].mxu0
      %v1555 = vadd.f32 %v376, %v1554
      %v1556 = vpop.f32.mrb[0].mxu0
      %1557 = vmatprep.mubr.bf16.mxu0 0
      %1558 = vmatmul.mubr.bf16.gmra.mrb[0].mxu0 %v1006
      %v1559 = vpop.f32.mrb[0].mxu0
      %v1560 = vadd.f32 %v376, %v1559
      %v1561 = vpop.f32.mrb[0].mxu0
      %v1562 = vpop.f32.mrb[0].mxu0
      %v1563 = vadd.f32 %v376, %v1562
      %v1564 = vpop.f32.mrb[0].mxu0
      %1565 = vmatprep.mubr.bf16.mxu0 0
      %1566 = vmatmul.mubr.bf16.gmra.mrb[0].mxu0 %v1009
      %v1567 = vpop.f32.mrb[0].mxu0
      %v1568 = vadd.f32 %v376, %v1567
      %v1569 = vpop.f32.mrb[0].mxu0
      %v1570 = vpop.f32.mrb[0].mxu0
      %v1571 = vadd.f32 %v376, %v1570
      %v1572 = vpop.f32.mrb[0].mxu0
      %1573 = vmatprep.mubr.bf16.mxu0 0
      %1574 = vmatmul.mubr.bf16.gmra.mrb[0].mxu0 %v1012
      %v1575 = vpop.f32.mrb[0].mxu0
      %v1576 = vadd.f32 %v376, %v1575
      %v1577 = vpop.f32.mrb[0].mxu0
      %v1578 = vpop.f32.mrb[0].mxu0
      %v1579 = vadd.f32 %v376, %v1578
      %v1580 = vpop.f32.mrb[0].mxu0
      %1581 = vmatprep.mubr.bf16.mxu0 0
      %1582 = vmatmul.mubr.bf16.gmra.mrb[0].mxu0 %v1015
      %v1583 = vpop.f32.mrb[0].mxu0
      %v1584 = vadd.f32 %v376, %v1583
      %v1585 = vpop.f32.mrb[0].mxu0
      %v1586 = vpop.f32.mrb[0].mxu0
      %v1587 = vadd.f32 %v376, %v1586
      %v1588 = vpop.f32.mrb[0].mxu0
      %1589 = vmatprep.mubr.bf16.mxu0 0
      %1590 = vmatmul.mubr.bf16.gmra.mrb[0].mxu0 %v1018
      %v1591 = vpop.f32.mrb[0].mxu0
      %v1592 = vadd.f32 %v376, %v1591
      %v1593 = vpop.f32.mrb[0].mxu0
      %v1594 = vpop.f32.mrb[0].mxu0
      %v1595 = vadd.f32 %v376, %v1594
      %v1596 = vpop.f32.mrb[0].mxu0
      %1597 = vmatprep.mubr.bf16.mxu0 0
      %1598 = vmatmul.mubr.bf16.gmra.mrb[0].mxu0 %v1021
      %v1599 = vpop.f32.mrb[0].mxu0
      %v1600 = vadd.f32 %v376, %v1599
      %v1601 = vpop.f32.mrb[0].mxu0
      %v1602 = vpop.f32.mrb[0].mxu0
      %v1603 = vadd.f32 %v376, %v1602
      %v1604 = vpop.f32.mrb[0].mxu0
      %1605 = vmatprep.mubr.bf16.mxu0 0
      %1606 = vmatmul.mubr.bf16.gmra.mrb[0].mxu0 %v1024
      %v1607 = vpop.f32.mrb[0].mxu0
      %v1608 = vadd.f32 %v376, %v1607
      %v1609 = vpop.f32.mrb[0].mxu0
      %v1610 = vpop.f32.mrb[0].mxu0
      %v1611 = vadd.f32 %v376, %v1610
      %v1612 = vpop.f32.mrb[0].mxu0
      %1613 = vmatprep.mubr.bf16.mxu0 0
      %1614 = vmatmul.mubr.bf16.gmra.mrb[0].mxu0 %v1027
      %v1615 = vpop.f32.mrb[0].mxu0
      %v1616 = vadd.f32 %v376, %v1615
      %v1617 = vpop.f32.mrb[0].mxu0
      %v1618 = vpop.f32.mrb[0].mxu0
      %v1619 = vadd.f32 %v376, %v1618
      %v1620 = vpop.f32.mrb[0].mxu0
      %1621 = vmatprep.mubr.bf16.mxu0 0
      %1622 = vmatmul.mubr.bf16.gmra.mrb[0].mxu0 %v1030
      %v1623 = vpop.f32.mrb[0].mxu0
      %v1624 = vadd.f32 %v376, %v1623
      %v1625 = vpop.f32.mrb[0].mxu0
      %v1626 = vpop.f32.mrb[0].mxu0
      %v1627 = vadd.f32 %v376, %v1626
      %v1628 = vpop.f32.mrb[0].mxu0
      %1629 = vmatprep.mubr.bf16.mxu0 0
      %1630 = vmatmul.mubr.bf16.gmra.mrb[0].mxu0 %v1033
      %v1631 = vpop.f32.mrb[0].mxu0
      %v1632 = vadd.f32 %v376, %v1631
      %v1633 = vpop.f32.mrb[0].mxu0
      %v1634 = vpop.f32.mrb[0].mxu0
      %v1635 = vadd.f32 %v376, %v1634
      %v1636 = vpop.f32.mrb[0].mxu0
      %1637 = vmatprep.mubr.bf16.mxu0 0
      %1638 = vmatmul.mubr.bf16.gmra.mrb[0].mxu0 %v1036
      %v1639 = vpop.f32.mrb[0].mxu0
      %v1640 = vadd.f32 %v376, %v1639
      %v1641 = vpop.f32.mrb[0].mxu0
      %v1642 = vpop.f32.mrb[0].mxu0
      %v1643 = vadd.f32 %v376, %v1642
      %v1644 = vpop.f32.mrb[0].mxu0
      %1645 = vmatprep.mubr.bf16.mxu0 0
      %1646 = vmatmul.mubr.bf16.gmra.mrb[0].mxu0 %v1039
      %v1647 = vpop.f32.mrb[0].mxu0
      %v1648 = vadd.f32 %v376, %v1647
      %v1649 = vpop.f32.mrb[0].mxu0
      %v1650 = vpop.f32.mrb[0].mxu0
      %v1651 = vadd.f32 %v376, %v1650
      %v1652 = vpop.f32.mrb[0].mxu0
      %1653 = vmatprep.mubr.bf16.mxu0 0
      %1654 = vmatmul.mubr.bf16.gmra.mrb[0].mxu0 %v1042
      %v1655 = vpop.f32.mrb[0].mxu0
      %v1656 = vadd.f32 %v376, %v1655
      %v1657 = vpop.f32.mrb[0].mxu0
      %v1658 = vpop.f32.mrb[0].mxu0
      %v1659 = vadd.f32 %v376, %v1658
      %v1660 = vpop.f32.mrb[0].mxu0
      %1661 = vmatprep.mubr.bf16.mxu0 0
      %1662 = vmatmul.mubr.bf16.gmra.mrb[0].mxu0 %v1045
      %v1663 = vpop.f32.mrb[0].mxu0
      %v1664 = vadd.f32 %v376, %v1663
      %v1665 = vpop.f32.mrb[0].mxu0
      %v1666 = vpop.f32.mrb[0].mxu0
      %v1667 = vadd.f32 %v376, %v1666
      %v1668 = vpop.f32.mrb[0].mxu0
      %1669 = vmatprep.mubr.bf16.mxu0 0
      %1670 = vmatmul.mubr.bf16.gmra.mrb[0].mxu0 %v1048
      %v1671 = vpop.f32.mrb[0].mxu0
      %v1672 = vadd.f32 %v376, %v1671
      %v1673 = vpop.f32.mrb[0].mxu0
      %v1674 = vpop.f32.mrb[0].mxu0
      %v1675 = vadd.f32 %v376, %v1674
      %v1676 = vpop.f32.mrb[0].mxu0
      %1677 = vmatprep.mubr.bf16.mxu0 0
      %1678 = vmatmul.mubr.bf16.gmra.mrb[0].mxu0 %v1051
      %v1679 = vpop.f32.mrb[0].mxu0
      %v1680 = vadd.f32 %v376, %v1679
      %v1681 = vpop.f32.mrb[0].mxu0
      %v1682 = vpop.f32.mrb[0].mxu0
      %v1683 = vadd.f32 %v376, %v1682
      %v1684 = vpop.f32.mrb[0].mxu0
      %1685 = vmatprep.mubr.bf16.mxu0 0
      %1686 = vmatmul.mubr.bf16.gmra.mrb[0].mxu0 %v1054
      %v1687 = vpop.f32.mrb[0].mxu0
      %v1688 = vadd.f32 %v376, %v1687
      %v1689 = vpop.f32.mrb[0].mxu0
      %v1690 = vpop.f32.mrb[0].mxu0
      %v1691 = vadd.f32 %v376, %v1690
      %v1692 = vpop.f32.mrb[0].mxu0
      %1693 = vmatprep.mubr.bf16.mxu0 0
      %1694 = vmatmul.mubr.bf16.gmra.mrb[0].mxu0 %v1057
      %v1695 = vpop.f32.mrb[0].mxu0
      %v1696 = vadd.f32 %v376, %v1695
      %v1697 = vpop.f32.mrb[0].mxu0
      %v1698 = vpop.f32.mrb[0].mxu0
      %v1699 = vadd.f32 %v376, %v1698
      %v1700 = vpop.f32.mrb[0].mxu0
      %1701 = vmatprep.mubr.bf16.mxu0 0
      %1702 = vmatmul.mubr.bf16.gmra.mrb[0].mxu0 %v1060
      %v1703 = vpop.f32.mrb[0].mxu0
      %v1704 = vadd.f32 %v376, %v1703
      %v1705 = vpop.f32.mrb[0].mxu0
      %v1706 = vpop.f32.mrb[0].mxu0
      %v1707 = vadd.f32 %v376, %v1706
      %v1708 = vpop.f32.mrb[0].mxu0
      %1709 = vmatprep.mubr.bf16.mxu0 0
      %1710 = vmatmul.mubr.bf16.gmra.mrb[0].mxu0 %v1063
      %v1711 = vpop.f32.mrb[0].mxu0
      %v1712 = vadd.f32 %v376, %v1711
      %v1713 = vpop.f32.mrb[0].mxu0
      %v1714 = vpop.f32.mrb[0].mxu0
      %v1715 = vadd.f32 %v376, %v1714
      %v1716 = vpop.f32.mrb[0].mxu0
      %1717 = vmatprep.mubr.bf16.mxu0 0
      %1718 = vmatmul.mubr.bf16.gmra.mrb[0].mxu0 %v1066
      %v1719 = vpop.f32.mrb[0].mxu0
      %v1720 = vadd.f32 %v376, %v1719
      %v1721 = vpop.f32.mrb[0].mxu0
      %v1722 = vpop.f32.mrb[0].mxu0
      %v1723 = vadd.f32 %v376, %v1722
      %v1724 = vpop.f32.mrb[0].mxu0
      %1725 = vmatprep.mubr.bf16.mxu0 0
      %1726 = vmatmul.mubr.bf16.gmra.mrb[0].mxu0 %v1069
      %v1727 = vpop.f32.mrb[0].mxu0
      %v1728 = vadd.f32 %v376, %v1727
      %v1729 = vpop.f32.mrb[0].mxu0
      %v1730 = vpop.f32.mrb[0].mxu0
      %v1731 = vadd.f32 %v376, %v1730
      %v1732 = vpop.f32.mrb[0].mxu0
      %1733 = vmatprep.mubr.bf16.mxu0 0
      %1734 = vmatmul.mubr.bf16.gmra.mrb[0].mxu0 %v1072
      %v1735 = vpop.f32.mrb[0].mxu0
      %v1736 = vadd.f32 %v376, %v1735
      %v1737 = vpop.f32.mrb[0].mxu0
      %v1738 = vpop.f32.mrb[0].mxu0
      %v1739 = vadd.f32 %v376, %v1738
      %v1740 = vpop.f32.mrb[0].mxu0
      %1741 = vmatprep.mubr.bf16.mxu0 0
      %1742 = vmatmul.mubr.bf16.gmra.mrb[0].mxu0 %v1075
      %v1743 = vpop.f32.mrb[0].mxu0
      %v1744 = vadd.f32 %v376, %v1743
      %v1745 = vpop.f32.mrb[0].mxu0
      %v1746 = vpop.f32.mrb[0].mxu0
      %v1747 = vadd.f32 %v376, %v1746
      %v1748 = vpop.f32.mrb[0].mxu0
      %1749 = vmatprep.mubr.bf16.mxu0 0
      %1750 = vmatmul.mubr.bf16.gmra.mrb[0].mxu0 %v1078
      %v1751 = vpop.f32.mrb[0].mxu0
      %v1752 = vadd.f32 %v376, %v1751
      %v1753 = vpop.f32.mrb[0].mxu0
      %v1754 = vpop.f32.mrb[0].mxu0
      %v1755 = vadd.f32 %v376, %v1754
      %v1756 = vpop.f32.mrb[0].mxu0
      %1757 = vmatprep.mubr.bf16.mxu0 0
      %1758 = vmatmul.mubr.bf16.gmra.mrb[0].mxu0 %v1081
      %v1759 = vpop.f32.mrb[0].mxu0
      %v1760 = vadd.f32 %v376, %v1759
      %v1761 = vpop.f32.mrb[0].mxu0
      %v1762 = vpop.f32.mrb[0].mxu0
      %v1763 = vadd.f32 %v376, %v1762
      %v1764 = vpop.f32.mrb[0].mxu0
      %1765 = vmatprep.mubr.bf16.mxu0 0
      %1766 = vmatmul.mubr.bf16.gmra.mrb[0].mxu0 %v1084
      %v1767 = vpop.f32.mrb[0].mxu0
      %v1768 = vadd.f32 %v376, %v1767
      %v1769 = vpop.f32.mrb[0].mxu0
      %v1770 = vpop.f32.mrb[0].mxu0
      %v1771 = vadd.f32 %v376, %v1770
      %v1772 = vpop.f32.mrb[0].mxu0
      %1773 = vmatprep.mubr.bf16.mxu0 0
      %1774 = vmatmul.mubr.bf16.gmra.mrb[0].mxu0 %v1087
      %v1775 = vpop.f32.mrb[0].mxu0
      %v1776 = vadd.f32 %v376, %v1775
      %v1777 = vpop.f32.mrb[0].mxu0
      %v1778 = vpop.f32.mrb[0].mxu0
      %v1779 = vadd.f32 %v376, %v1778
      %v1780 = vpop.f32.mrb[0].mxu0
      %1781 = vmatprep.mubr.bf16.mxu0 0
      %1782 = vmatmul.mubr.bf16.gmra.mrb[0].mxu0 %v1090
      %v1783 = vpop.f32.mrb[0].mxu0
      %v1784 = vadd.f32 %v376, %v1783
      %v1785 = vpop.f32.mrb[0].mxu0
      %v1786 = vpop.f32.mrb[0].mxu0
      %v1787 = vadd.f32 %v376, %v1786
      %v1788 = vpop.f32.mrb[0].mxu0
      %1789 = vmatprep.mubr.bf16.mxu0 0
      %1790 = vmatmul.mubr.bf16.gmra.mrb[0].mxu0 %v1093
      %v1791 = vpop.f32.mrb[0].mxu0
      %v1792 = vadd.f32 %v376, %v1791
      %v1793 = vpop.f32.mrb[0].mxu0
      %v1794 = vpop.f32.mrb[0].mxu0
      %v1795 = vadd.f32 %v376, %v1794
      %v1796 = vpop.f32.mrb[0].mxu0
      %1797 = vmatprep.mubr.bf16.mxu0 0
      %1798 = vmatmul.mubr.bf16.gmra.mrb[0].mxu0 %v1096
      %v1799 = vpop.f32.mrb[0].mxu0
      %v1800 = vadd.f32 %v376, %v1799
      %v1801 = vpop.f32.mrb[0].mxu0
      %v1802 = vpop.f32.mrb[0].mxu0
      %v1803 = vadd.f32 %v376, %v1802
      %v1804 = vpop.f32.mrb[0].mxu0
      %1805 = vmatprep.mubr.bf16.mxu0 0
      %1806 = vmatmul.mubr.bf16.gmra.mrb[0].mxu0 %v1099
      %v1807 = vpop.f32.mrb[0].mxu0
      %v1808 = vadd.f32 %v376, %v1807
      %v1809 = vpop.f32.mrb[0].mxu0
      %v1810 = vpop.f32.mrb[0].mxu0
      %v1811 = vadd.f32 %v376, %v1810
      %v1812 = vpop.f32.mrb[0].mxu0
      %1813 = vmatprep.mubr.bf16.mxu0 0
      %1814 = vmatmul.mubr.bf16.gmra.mrb[0].mxu0 %v1102
      %v1815 = vpop.f32.mrb[0].mxu0
      %v1816 = vadd.f32 %v376, %v1815
      %v1817 = vpop.f32.mrb[0].mxu0
      %v1818 = vpop.f32.mrb[0].mxu0
      %v1819 = vadd.f32 %v376, %v1818
      %v1820 = vpop.f32.mrb[0].mxu0
      %1821 = vmatprep.mubr.bf16.mxu0 0
      %1822 = vmatmul.mubr.bf16.gmra.mrb[0].mxu0 %v1105
      %v1823 = vpop.f32.mrb[0].mxu0
      %v1824 = vadd.f32 %v376, %v1823
      %v1825 = vpop.f32.mrb[0].mxu0
      %v1826 = vpop.f32.mrb[0].mxu0
      %v1827 = vadd.f32 %v376, %v1826
      %v1828 = vpop.f32.mrb[0].mxu0
      %1829 = vmatprep.mubr.bf16.mxu0 0
      %1830 = vmatmul.mubr.bf16.gmra.mrb[0].mxu0 %v1108
      %v1831 = vpop.f32.mrb[0].mxu0
      %v1832 = vadd.f32 %v376, %v1831
      %v1833 = vpop.f32.mrb[0].mxu0
      %v1834 = vpop.f32.mrb[0].mxu0
      %v1835 = vadd.f32 %v376, %v1834
      %v1836 = vpop.f32.mrb[0].mxu0
      %1837 = vmatprep.mubr.bf16.mxu0 0
      %1838 = vmatmul.mubr.bf16.gmra.mrb[0].mxu0 %v1111
      %v1839 = vpop.f32.mrb[0].mxu0
      %v1840 = vadd.f32 %v376, %v1839
      %v1841 = vpop.f32.mrb[0].mxu0
      %v1842 = vpop.f32.mrb[0].mxu0
      %v1843 = vadd.f32 %v376, %v1842
      %v1844 = vpop.f32.mrb[0].mxu0
      %1845 = vmatprep.mubr.bf16.mxu0 0
      %1846 = vmatmul.mubr.bf16.gmra.mrb[0].mxu0 %v1114
      %v1847 = vpop.f32.mrb[0].mxu0
      %v1848 = vadd.f32 %v376, %v1847
      %v1849 = vpop.f32.mrb[0].mxu0
      %v1850 = vpop.f32.mrb[0].mxu0
      %v1851 = vadd.f32 %v376, %v1850
      %v1852 = vpop.f32.mrb[0].mxu0
      %1853 = vmatprep.mubr.bf16.mxu0 0
      %1854 = vmatmul.mubr.bf16.gmra.mrb[0].mxu0 %v1117
      %v1855 = vpop.f32.mrb[0].mxu0
      %v1856 = vadd.f32 %v376, %v1855
      %v1857 = vpop.f32.mrb[0].mxu0
      %v1858 = vpop.f32.mrb[0].mxu0
      %v1859 = vadd.f32 %v376, %v1858
      %v1860 = vpop.f32.mrb[0].mxu0
      %1861 = vmatprep.mubr.bf16.mxu0 0
      %1862 = vmatmul.mubr.bf16.gmra.mrb[0].mxu0 %v1120
      %v1863 = vpop.f32.mrb[0].mxu0
      %v1864 = vadd.f32 %v376, %v1863
      %v1865 = vpop.f32.mrb[0].mxu0
      %v1866 = vpop.f32.mrb[0].mxu0
      %v1867 = vadd.f32 %v376, %v1866
      %v1868 = vpop.f32.mrb[0].mxu0
      %1869 = vmatprep.mubr.bf16.mxu0 0
      %1870 = vmatmul.mubr.bf16.gmra.mrb[0].mxu0 %v1123
      %v1871 = vpop.f32.mrb[0].mxu0
      %v1872 = vadd.f32 %v376, %v1871
      %v1873 = vpop.f32.mrb[0].mxu0
      %v1874 = vpop.f32.mrb[0].mxu0
      %v1875 = vadd.f32 %v376, %v1874
      %v1876 = vpop.f32.mrb[0].mxu0
      %1877 = vmatprep.mubr.bf16.mxu0 0
      %1878 = vmatmul.mubr.bf16.gmra.mrb[0].mxu0 %v1126
      %v1879 = vpop.f32.mrb[0].mxu0
      %v1880 = vadd.f32 %v376, %v1879
      %v1881 = vpop.f32.mrb[0].mxu0
      %v1882 = vpop.f32.mrb[0].mxu0
      %v1883 = vadd.f32 %v376, %v1882
      %v1884 = vpop.f32.mrb[0].mxu0
      %1885 = vmatprep.mubr.bf16.mxu0 0
      %1886 = vmatmul.mubr.bf16.gmra.mrb[0].mxu0 %v1129
      %v1887 = vpop.f32.mrb[0].mxu0
      %v1888 = vadd.f32 %v376, %v1887
      %v1889 = vpop.f32.mrb[0].mxu0
      %v1890 = vpop.f32.mrb[0].mxu0
      %v1891 = vadd.f32 %v376, %v1890
      %v1892 = vpop.f32.mrb[0].mxu0
      %1893 = vmatprep.mubr.bf16.mxu0 0
      %1894 = vmatmul.mubr.bf16.gmra.mrb[0].mxu0 %v1132
      %v1895 = vpop.f32.mrb[0].mxu0
      %v1896 = vadd.f32 %v376, %v1895
      %v1897 = vpop.f32.mrb[0].mxu0
      %v1898 = vpop.f32.mrb[0].mxu0
      %v1899 = vadd.f32 %v376, %v1898
      %v1900 = vpop.f32.mrb[0].mxu0
      %1901 = vmatprep.mubr.bf16.mxu0 0
      %1902 = vmatmul.mubr.bf16.gmra.mrb[0].mxu0 %v1135
      %v1903 = vpop.f32.mrb[0].mxu0
      %v1904 = vadd.f32 %v376, %v1903
      %v1905 = vpop.f32.mrb[0].mxu0
      %v1906 = vpop.f32.mrb[0].mxu0
      %v1907 = vadd.f32 %v376, %v1906
      %v1908 = vpop.f32.mrb[0].mxu0
      %1909 = vmatprep.mubr.bf16.mxu0 0
      %1910 = vmatmul.mubr.bf16.gmra.mrb[0].mxu0 %v1138
      %v1911 = vpop.f32.mrb[0].mxu0
      %v1912 = vadd.f32 %v376, %v1911
      %v1913 = vpop.f32.mrb[0].mxu0
      %v1914 = vpop.f32.mrb[0].mxu0
      %v1915 = vadd.f32 %v376, %v1914
      %v1916 = vpop.f32.mrb[0].mxu0
      %1917 = vmatprep.mubr.bf16.mxu0 0
      %1918 = vmatmul.mubr.bf16.gmra.mrb[0].mxu0 %v1141
      %v1919 = vpop.f32.mrb[0].mxu0
      %v1920 = vadd.f32 %v376, %v1919
      %v1921 = vpop.f32.mrb[0].mxu0
      %v1922 = vpop.f32.mrb[0].mxu0
      %v1923 = vadd.f32 %v376, %v1922
      %v1924 = vpop.f32.mrb[0].mxu0
      %1925 = vmatprep.mubr.bf16.mxu0 0
      %1926 = vmatmul.mubr.bf16.gmra.mrb[0].mxu0 %v1144
      %v1927 = vpop.f32.mrb[0].mxu0
      %v1928 = vadd.f32 %v376, %v1927
      %v1929 = vpop.f32.mrb[0].mxu0
      %v1930 = vpop.f32.mrb[0].mxu0
      %v1931 = vadd.f32 %v376, %v1930
      %v1932 = vpop.f32.mrb[0].mxu0
      %1933 = vmatprep.mubr.bf16.mxu0 0
      %1934 = vmatmul.mubr.bf16.gmra.mrb[0].mxu0 %v1147
      %v1935 = vpop.f32.mrb[0].mxu0
      %v1936 = vadd.f32 %v376, %v1935
      %v1937 = vpop.f32.mrb[0].mxu0
      %v1938 = vpop.f32.mrb[0].mxu0
      %v1939 = vadd.f32 %v376, %v1938
      %v1940 = vpop.f32.mrb[0].mxu0
      %1941 = vmatprep.mubr.bf16.mxu0 0
      %1942 = vmatmul.mubr.bf16.gmra.mrb[0].mxu0 %v1150
      %v1943 = vpop.f32.mrb[0].mxu0
      %v1944 = vadd.f32 %v376, %v1943
      %v1945 = vpop.f32.mrb[0].mxu0
      %v1946 = vpop.f32.mrb[0].mxu0
      %v1947 = vadd.f32 %v376, %v1946
      %v1948 = vpop.f32.mrb[0].mxu0
      %1949 = vmatprep.mubr.bf16.mxu0 0
      %1950 = vmatmul.mubr.bf16.gmra.mrb[0].mxu0 %v1153
      %v1951 = vpop.f32.mrb[0].mxu0
      %v1952 = vadd.f32 %v376, %v1951
      %v1953 = vpop.f32.mrb[0].mxu0
      %v1954 = vpop.f32.mrb[0].mxu0
      %v1955 = vadd.f32 %v376, %v1954
      %v1956 = vpop.f32.mrb[0].mxu0
      %1957 = vmatprep.mubr.bf16.mxu0 0
      %1958 = vmatmul.mubr.bf16.gmra.mrb[0].mxu0 %v1156
      %v1959 = vpop.f32.mrb[0].mxu0
      %v1960 = vadd.f32 %v376, %v1959
      %v1961 = vpop.f32.mrb[0].mxu0
      %v1962 = vpop.f32.mrb[0].mxu0
      %v1963 = vadd.f32 %v376, %v1962
      %v1964 = vpop.f32.mrb[0].mxu0
      %1965 = vdwg.mxu0
      %v1966 = vmax.f32 %v1200, 0.0
      %v1967 = vmax.f32 %v1203, 0.0
      %v1968 = vmax.f32 %v1208, 0.0
      %v1969 = vmax.f32 %v1211, 0.0
      %v1970 = vmax.f32 %v1216, 0.0
      %v1971 = vmax.f32 %v1219, 0.0
      %v1972 = vmax.f32 %v1224, 0.0
      %v1973 = vmax.f32 %v1227, 0.0
      %v1974 = vmax.f32 %v1232, 0.0
      %v1975 = vmax.f32 %v1235, 0.0
      %v1976 = vmax.f32 %v1240, 0.0
      %v1977 = vmax.f32 %v1243, 0.0
      %v1978 = vmax.f32 %v1248, 0.0
      %v1979 = vmax.f32 %v1251, 0.0
      %v1980 = vmax.f32 %v1256, 0.0
      %v1981 = vmax.f32 %v1259, 0.0
      %v1982 = vmax.f32 %v1264, 0.0
      %v1983 = vmax.f32 %v1267, 0.0
      %v1984 = vmax.f32 %v1272, 0.0
      %v1985 = vmax.f32 %v1275, 0.0
      %v1986 = vmax.f32 %v1280, 0.0
      %v1987 = vmax.f32 %v1283, 0.0
      %v1988 = vmax.f32 %v1288, 0.0
      %v1989 = vmax.f32 %v1291, 0.0
      %v1990 = vmax.f32 %v1296, 0.0
      %v1991 = vmax.f32 %v1299, 0.0
      %v1992 = vmax.f32 %v1304, 0.0
      %v1993 = vmax.f32 %v1307, 0.0
      %v1994 = vmax.f32 %v1312, 0.0
      %v1995 = vmax.f32 %v1315, 0.0
      %v1996 = vmax.f32 %v1320, 0.0
      %v1997 = vmax.f32 %v1323, 0.0
      %v1998 = vmax.f32 %v1328, 0.0
      %v1999 = vmax.f32 %v1331, 0.0
      %v2000 = vmax.f32 %v1336, 0.0
      %v2001 = vmax.f32 %v1339, 0.0
      %v2002 = vmax.f32 %v1344, 0.0
      %v2003 = vmax.f32 %v1347, 0.0
      %v2004 = vmax.f32 %v1352, 0.0
      %v2005 = vmax.f32 %v1355, 0.0
      %v2006 = vmax.f32 %v1360, 0.0
      %v2007 = vmax.f32 %v1363, 0.0
      %v2008 = vmax.f32 %v1368, 0.0
      %v2009 = vmax.f32 %v1371, 0.0
      %v2010 = vmax.f32 %v1376, 0.0
      %v2011 = vmax.f32 %v1379, 0.0
      %v2012 = vmax.f32 %v1384, 0.0
      %v2013 = vmax.f32 %v1387, 0.0
      %v2014 = vmax.f32 %v1392, 0.0
      %v2015 = vmax.f32 %v1395, 0.0
      %v2016 = vmax.f32 %v1400, 0.0
      %v2017 = vmax.f32 %v1403, 0.0
      %v2018 = vmax.f32 %v1408, 0.0
      %v2019 = vmax.f32 %v1411, 0.0
      %v2020 = vmax.f32 %v1416, 0.0
      %v2021 = vmax.f32 %v1419, 0.0
      %v2022 = vmax.f32 %v1424, 0.0
      %v2023 = vmax.f32 %v1427, 0.0
      %v2024 = vmax.f32 %v1432, 0.0
      %v2025 = vmax.f32 %v1435, 0.0
      %v2026 = vmax.f32 %v1440, 0.0
      %v2027 = vmax.f32 %v1443, 0.0
      %v2028 = vmax.f32 %v1448, 0.0
      %v2029 = vmax.f32 %v1451, 0.0
      %v2030 = vmax.f32 %v1456, 0.0
      %v2031 = vmax.f32 %v1459, 0.0
      %v2032 = vmax.f32 %v1464, 0.0
      %v2033 = vmax.f32 %v1467, 0.0
      %v2034 = vmax.f32 %v1472, 0.0
      %v2035 = vmax.f32 %v1475, 0.0
      %v2036 = vmax.f32 %v1480, 0.0
      %v2037 = vmax.f32 %v1483, 0.0
      %v2038 = vmax.f32 %v1488, 0.0
      %v2039 = vmax.f32 %v1491, 0.0
      %v2040 = vmax.f32 %v1496, 0.0
      %v2041 = vmax.f32 %v1499, 0.0
      %v2042 = vmax.f32 %v1504, 0.0
      %v2043 = vmax.f32 %v1507, 0.0
      %v2044 = vmax.f32 %v1512, 0.0
      %v2045 = vmax.f32 %v1515, 0.0
      %v2046 = vmax.f32 %v1520, 0.0
      %v2047 = vmax.f32 %v1523, 0.0
      %v2048 = vmax.f32 %v1528, 0.0
      %v2049 = vmax.f32 %v1531, 0.0
      %v2050 = vmax.f32 %v1536, 0.0
      %v2051 = vmax.f32 %v1539, 0.0
      %v2052 = vmax.f32 %v1544, 0.0
      %v2053 = vmax.f32 %v1547, 0.0
      %v2054 = vmax.f32 %v1552, 0.0
      %v2055 = vmax.f32 %v1555, 0.0
      %v2056 = vmax.f32 %v1560, 0.0
      %v2057 = vmax.f32 %v1563, 0.0
      %v2058 = vmax.f32 %v1568, 0.0
      %v2059 = vmax.f32 %v1571, 0.0
      %v2060 = vmax.f32 %v1576, 0.0
      %v2061 = vmax.f32 %v1579, 0.0
      %v2062 = vmax.f32 %v1584, 0.0
      %v2063 = vmax.f32 %v1587, 0.0
      %v2064 = vmax.f32 %v1592, 0.0
      %v2065 = vmax.f32 %v1595, 0.0
      %v2066 = vmax.f32 %v1600, 0.0
      %v2067 = vmax.f32 %v1603, 0.0
      %v2068 = vmax.f32 %v1608, 0.0
      %v2069 = vmax.f32 %v1611, 0.0
      %v2070 = vmax.f32 %v1616, 0.0
      %v2071 = vmax.f32 %v1619, 0.0
      %v2072 = vmax.f32 %v1624, 0.0
      %v2073 = vmax.f32 %v1627, 0.0
      %v2074 = vmax.f32 %v1632, 0.0
      %v2075 = vmax.f32 %v1635, 0.0
      %v2076 = vmax.f32 %v1640, 0.0
      %v2077 = vmax.f32 %v1643, 0.0
      %v2078 = vmax.f32 %v1648, 0.0
      %v2079 = vmax.f32 %v1651, 0.0
      %v2080 = vmax.f32 %v1656, 0.0
      %v2081 = vmax.f32 %v1659, 0.0
      %v2082 = vmax.f32 %v1664, 0.0
      %v2083 = vmax.f32 %v1667, 0.0
      %v2084 = vmax.f32 %v1672, 0.0
      %v2085 = vmax.f32 %v1675, 0.0
      %v2086 = vmax.f32 %v1680, 0.0
      %v2087 = vmax.f32 %v1683, 0.0
      %v2088 = vmax.f32 %v1688, 0.0
      %v2089 = vmax.f32 %v1691, 0.0
      %v2090 = vmax.f32 %v1696, 0.0
      %v2091 = vmax.f32 %v1699, 0.0
      %v2092 = vmax.f32 %v1704, 0.0
      %v2093 = vmax.f32 %v1707, 0.0
      %v2094 = vmax.f32 %v1712, 0.0
      %v2095 = vmax.f32 %v1715, 0.0
      %v2096 = vmax.f32 %v1720, 0.0
      %v2097 = vmax.f32 %v1723, 0.0
      %v2098 = vmax.f32 %v1728, 0.0
      %v2099 = vmax.f32 %v1731, 0.0
      %v2100 = vmax.f32 %v1736, 0.0
      %v2101 = vmax.f32 %v1739, 0.0
      %v2102 = vmax.f32 %v1744, 0.0
      %v2103 = vmax.f32 %v1747, 0.0
      %v2104 = vmax.f32 %v1752, 0.0
      %v2105 = vmax.f32 %v1755, 0.0
      %v2106 = vmax.f32 %v1760, 0.0
      %v2107 = vmax.f32 %v1763, 0.0
      %v2108 = vmax.f32 %v1768, 0.0
      %v2109 = vmax.f32 %v1771, 0.0
      %v2110 = vmax.f32 %v1776, 0.0
      %v2111 = vmax.f32 %v1779, 0.0
      %v2112 = vmax.f32 %v1784, 0.0
      %v2113 = vmax.f32 %v1787, 0.0
      %v2114 = vmax.f32 %v1792, 0.0
      %v2115 = vmax.f32 %v1795, 0.0
      %v2116 = vmax.f32 %v1800, 0.0
      %v2117 = vmax.f32 %v1803, 0.0
      %v2118 = vmax.f32 %v1808, 0.0
      %v2119 = vmax.f32 %v1811, 0.0
      %v2120 = vmax.f32 %v1816, 0.0
      %v2121 = vmax.f32 %v1819, 0.0
      %v2122 = vmax.f32 %v1824, 0.0
      %v2123 = vmax.f32 %v1827, 0.0
      %v2124 = vmax.f32 %v1832, 0.0
      %v2125 = vmax.f32 %v1835, 0.0
      %v2126 = vmax.f32 %v1840, 0.0
      %v2127 = vmax.f32 %v1843, 0.0
      %v2128 = vmax.f32 %v1848, 0.0
      %v2129 = vmax.f32 %v1851, 0.0
      %v2130 = vmax.f32 %v1856, 0.0
      %v2131 = vmax.f32 %v1859, 0.0
      %v2132 = vmax.f32 %v1864, 0.0
      %v2133 = vmax.f32 %v1867, 0.0
      %v2134 = vmax.f32 %v1872, 0.0
      %v2135 = vmax.f32 %v1875, 0.0
      %v2136 = vmax.f32 %v1880, 0.0
      %v2137 = vmax.f32 %v1883, 0.0
      %v2138 = vmax.f32 %v1888, 0.0
      %v2139 = vmax.f32 %v1891, 0.0
      %v2140 = vmax.f32 %v1896, 0.0
      %v2141 = vmax.f32 %v1899, 0.0
      %v2142 = vmax.f32 %v1904, 0.0
      %v2143 = vmax.f32 %v1907, 0.0
      %v2144 = vmax.f32 %v1912, 0.0
      %v2145 = vmax.f32 %v1915, 0.0
      %v2146 = vmax.f32 %v1920, 0.0
      %v2147 = vmax.f32 %v1923, 0.0
      %v2148 = vmax.f32 %v1928, 0.0
      %v2149 = vmax.f32 %v1931, 0.0
      %v2150 = vmax.f32 %v1936, 0.0
      %v2151 = vmax.f32 %v1939, 0.0
      %v2152 = vmax.f32 %v1944, 0.0
      %v2153 = vmax.f32 %v1947, 0.0
      %v2154 = vmax.f32 %v1952, 0.0
      %v2155 = vmax.f32 %v1955, 0.0
      %v2156 = vmax.f32 %v1960, 0.0
      %v2157 = vmax.f32 %v1963, 0.0
      %vm2158 = vcmask 48128
      %2159 = vst.msk [vmem:[%s172] sm:$0xff] %vm2158, %v1966
      %2160 = vst.msk [vmem:[%s172 + $0x8] sm:$0xff] %vm2158, %v1967
      %2161 = vst.msk [vmem:[%s172 + $0x10] sm:$0xff] %vm2158, %v1968
      %2162 = vst.msk [vmem:[%s172 + $0x18] sm:$0xff] %vm2158, %v1969
      %2163 = vst.msk [vmem:[%s172 + $0x20] sm:$0xff] %vm2158, %v1970
      %2164 = vst.msk [vmem:[%s172 + $0x28] sm:$0xff] %vm2158, %v1971
      %2165 = vst.msk [vmem:[%s172 + $0x30] sm:$0xff] %vm2158, %v1972
      %2166 = vst.msk [vmem:[%s172 + $0x38] sm:$0xff] %vm2158, %v1973
      %2167 = vst.msk [vmem:[%s172 + $0x40] sm:$0xff] %vm2158, %v1974
      %2168 = vst.msk [vmem:[%s172 + $0x48] sm:$0xff] %vm2158, %v1975
      %2169 = vst.msk [vmem:[%s172 + $0x50] sm:$0xff] %vm2158, %v1976
      %2170 = vst.msk [vmem:[%s172 + $0x58] sm:$0xff] %vm2158, %v1977
      %2171 = vst.msk [vmem:[%s172 + $0x60] sm:$0xff] %vm2158, %v1978
      %2172 = vst.msk [vmem:[%s172 + $0x68] sm:$0xff] %vm2158, %v1979
      %2173 = vst.msk [vmem:[%s172 + $0x70] sm:$0xff] %vm2158, %v1980
      %2174 = vst.msk [vmem:[%s172 + $0x78] sm:$0xff] %vm2158, %v1981
      %2175 = vst.msk [vmem:[%s172 + $0x80] sm:$0xff] %vm2158, %v1982
      %2176 = vst.msk [vmem:[%s172 + $0x88] sm:$0xff] %vm2158, %v1983
      %2177 = vst.msk [vmem:[%s172 + $0x90] sm:$0xff] %vm2158, %v1984
      %2178 = vst.msk [vmem:[%s172 + $0x98] sm:$0xff] %vm2158, %v1985
      %2179 = vst.msk [vmem:[%s172 + $0xa0] sm:$0xff] %vm2158, %v1986
      %2180 = vst.msk [vmem:[%s172 + $0xa8] sm:$0xff] %vm2158, %v1987
      %2181 = vst.msk [vmem:[%s172 + $0xb0] sm:$0xff] %vm2158, %v1988
      %2182 = vst.msk [vmem:[%s172 + $0xb8] sm:$0xff] %vm2158, %v1989
      %2183 = vst.msk [vmem:[%s172 + $0xc0] sm:$0xff] %vm2158, %v1990
      %2184 = vst.msk [vmem:[%s172 + $0xc8] sm:$0xff] %vm2158, %v1991
      %2185 = vst.msk [vmem:[%s172 + $0xd0] sm:$0xff] %vm2158, %v1992
      %2186 = vst.msk [vmem:[%s172 + $0xd8] sm:$0xff] %vm2158, %v1993
      %2187 = vst.msk [vmem:[%s172 + $0xe0] sm:$0xff] %vm2158, %v1994
      %2188 = vst.msk [vmem:[%s172 + $0xe8] sm:$0xff] %vm2158, %v1995
      %2189 = vst.msk [vmem:[%s172 + $0xf0] sm:$0xff] %vm2158, %v1996
      %2190 = vst.msk [vmem:[%s172 + $0xf8] sm:$0xff] %vm2158, %v1997
      %2191 = vst.msk [vmem:[%s172 + $0x100] sm:$0xff] %vm2158, %v1998
      %2192 = vst.msk [vmem:[%s172 + $0x108] sm:$0xff] %vm2158, %v1999
      %2193 = vst.msk [vmem:[%s172 + $0x110] sm:$0xff] %vm2158, %v2000
      %2194 = vst.msk [vmem:[%s172 + $0x118] sm:$0xff] %vm2158, %v2001
      %2195 = vst.msk [vmem:[%s172 + $0x120] sm:$0xff] %vm2158, %v2002
      %2196 = vst.msk [vmem:[%s172 + $0x128] sm:$0xff] %vm2158, %v2003
      %2197 = vst.msk [vmem:[%s172 + $0x130] sm:$0xff] %vm2158, %v2004
      %2198 = vst.msk [vmem:[%s172 + $0x138] sm:$0xff] %vm2158, %v2005
      %2199 = vst.msk [vmem:[%s172 + $0x140] sm:$0xff] %vm2158, %v2006
      %2200 = vst.msk [vmem:[%s172 + $0x148] sm:$0xff] %vm2158, %v2007
      %2201 = vst.msk [vmem:[%s172 + $0x150] sm:$0xff] %vm2158, %v2008
      %2202 = vst.msk [vmem:[%s172 + $0x158] sm:$0xff] %vm2158, %v2009
      %2203 = vst.msk [vmem:[%s172 + $0x160] sm:$0xff] %vm2158, %v2010
      %2204 = vst.msk [vmem:[%s172 + $0x168] sm:$0xff] %vm2158, %v2011
      %2205 = vst.msk [vmem:[%s172 + $0x170] sm:$0xff] %vm2158, %v2012
      %2206 = vst.msk [vmem:[%s172 + $0x178] sm:$0xff] %vm2158, %v2013
      %2207 = vst.msk [vmem:[%s172 + $0x180] sm:$0xff] %vm2158, %v2014
      %2208 = vst.msk [vmem:[%s172 + $0x188] sm:$0xff] %vm2158, %v2015
      %2209 = vst.msk [vmem:[%s172 + $0x190] sm:$0xff] %vm2158, %v2016
      %2210 = vst.msk [vmem:[%s172 + $0x198] sm:$0xff] %vm2158, %v2017
      %2211 = vst.msk [vmem:[%s172 + $0x1a0] sm:$0xff] %vm2158, %v2018
      %2212 = vst.msk [vmem:[%s172 + $0x1a8] sm:$0xff] %vm2158, %v2019
      %2213 = vst.msk [vmem:[%s172 + $0x1b0] sm:$0xff] %vm2158, %v2020
      %2214 = vst.msk [vmem:[%s172 + $0x1b8] sm:$0xff] %vm2158, %v2021
      %2215 = vst.msk [vmem:[%s172 + $0x1c0] sm:$0xff] %vm2158, %v2022
      %2216 = vst.msk [vmem:[%s172 + $0x1c8] sm:$0xff] %vm2158, %v2023
      %2217 = vst.msk [vmem:[%s172 + $0x1d0] sm:$0xff] %vm2158, %v2024
      %2218 = vst.msk [vmem:[%s172 + $0x1d8] sm:$0xff] %vm2158, %v2025
      %2219 = vst.msk [vmem:[%s172 + $0x1e0] sm:$0xff] %vm2158, %v2026
      %2220 = vst.msk [vmem:[%s172 + $0x1e8] sm:$0xff] %vm2158, %v2027
      %2221 = vst.msk [vmem:[%s172 + $0x1f0] sm:$0xff] %vm2158, %v2028
      %2222 = vst.msk [vmem:[%s172 + $0x1f8] sm:$0xff] %vm2158, %v2029
      %2223 = vst.msk [vmem:[%s172 + $0x200] sm:$0xff] %vm2158, %v2030
      %2224 = vst.msk [vmem:[%s172 + $0x208] sm:$0xff] %vm2158, %v2031
      %2225 = vst.msk [vmem:[%s172 + $0x210] sm:$0xff] %vm2158, %v2032
      %2226 = vst.msk [vmem:[%s172 + $0x218] sm:$0xff] %vm2158, %v2033
      %2227 = vst.msk [vmem:[%s172 + $0x220] sm:$0xff] %vm2158, %v2034
      %2228 = vst.msk [vmem:[%s172 + $0x228] sm:$0xff] %vm2158, %v2035
      %2229 = vst.msk [vmem:[%s172 + $0x230] sm:$0xff] %vm2158, %v2036
      %2230 = vst.msk [vmem:[%s172 + $0x238] sm:$0xff] %vm2158, %v2037
      %2231 = vst.msk [vmem:[%s172 + $0x240] sm:$0xff] %vm2158, %v2038
      %2232 = vst.msk [vmem:[%s172 + $0x248] sm:$0xff] %vm2158, %v2039
      %2233 = vst.msk [vmem:[%s172 + $0x250] sm:$0xff] %vm2158, %v2040
      %2234 = vst.msk [vmem:[%s172 + $0x258] sm:$0xff] %vm2158, %v2041
      %2235 = vst.msk [vmem:[%s172 + $0x260] sm:$0xff] %vm2158, %v2042
      %2236 = vst.msk [vmem:[%s172 + $0x268] sm:$0xff] %vm2158, %v2043
      %2237 = vst.msk [vmem:[%s172 + $0x270] sm:$0xff] %vm2158, %v2044
      %2238 = vst.msk [vmem:[%s172 + $0x278] sm:$0xff] %vm2158, %v2045
      %2239 = vst.msk [vmem:[%s172 + $0x280] sm:$0xff] %vm2158, %v2046
      %2240 = vst.msk [vmem:[%s172 + $0x288] sm:$0xff] %vm2158, %v2047
      %2241 = vst.msk [vmem:[%s172 + $0x290] sm:$0xff] %vm2158, %v2048
      %2242 = vst.msk [vmem:[%s172 + $0x298] sm:$0xff] %vm2158, %v2049
      %2243 = vst.msk [vmem:[%s172 + $0x2a0] sm:$0xff] %vm2158, %v2050
      %2244 = vst.msk [vmem:[%s172 + $0x2a8] sm:$0xff] %vm2158, %v2051
      %2245 = vst.msk [vmem:[%s172 + $0x2b0] sm:$0xff] %vm2158, %v2052
      %2246 = vst.msk [vmem:[%s172 + $0x2b8] sm:$0xff] %vm2158, %v2053
      %2247 = vst.msk [vmem:[%s172 + $0x2c0] sm:$0xff] %vm2158, %v2054
      %2248 = vst.msk [vmem:[%s172 + $0x2c8] sm:$0xff] %vm2158, %v2055
      %2249 = vst.msk [vmem:[%s172 + $0x2d0] sm:$0xff] %vm2158, %v2056
      %2250 = vst.msk [vmem:[%s172 + $0x2d8] sm:$0xff] %vm2158, %v2057
      %2251 = vst.msk [vmem:[%s172 + $0x2e0] sm:$0xff] %vm2158, %v2058
      %2252 = vst.msk [vmem:[%s172 + $0x2e8] sm:$0xff] %vm2158, %v2059
      %2253 = vst.msk [vmem:[%s172 + $0x2f0] sm:$0xff] %vm2158, %v2060
      %2254 = vst.msk [vmem:[%s172 + $0x2f8] sm:$0xff] %vm2158, %v2061
      %2255 = vst.msk [vmem:[%s172 + $0x300] sm:$0xff] %vm2158, %v2062
      %2256 = vst.msk [vmem:[%s172 + $0x308] sm:$0xff] %vm2158, %v2063
      %2257 = vst.msk [vmem:[%s172 + $0x310] sm:$0xff] %vm2158, %v2064
      %2258 = vst.msk [vmem:[%s172 + $0x318] sm:$0xff] %vm2158, %v2065
      %2259 = vst.msk [vmem:[%s172 + $0x320] sm:$0xff] %vm2158, %v2066
      %2260 = vst.msk [vmem:[%s172 + $0x328] sm:$0xff] %vm2158, %v2067
      %2261 = vst.msk [vmem:[%s172 + $0x330] sm:$0xff] %vm2158, %v2068
      %2262 = vst.msk [vmem:[%s172 + $0x338] sm:$0xff] %vm2158, %v2069
      %2263 = vst.msk [vmem:[%s172 + $0x340] sm:$0xff] %vm2158, %v2070
      %2264 = vst.msk [vmem:[%s172 + $0x348] sm:$0xff] %vm2158, %v2071
      %2265 = vst.msk [vmem:[%s172 + $0x350] sm:$0xff] %vm2158, %v2072
      %2266 = vst.msk [vmem:[%s172 + $0x358] sm:$0xff] %vm2158, %v2073
      %2267 = vst.msk [vmem:[%s172 + $0x360] sm:$0xff] %vm2158, %v2074
      %2268 = vst.msk [vmem:[%s172 + $0x368] sm:$0xff] %vm2158, %v2075
      %2269 = vst.msk [vmem:[%s172 + $0x370] sm:$0xff] %vm2158, %v2076
      %2270 = vst.msk [vmem:[%s172 + $0x378] sm:$0xff] %vm2158, %v2077
      %2271 = vst.msk [vmem:[%s172 + $0x380] sm:$0xff] %vm2158, %v2078
      %2272 = vst.msk [vmem:[%s172 + $0x388] sm:$0xff] %vm2158, %v2079
      %2273 = vst.msk [vmem:[%s172 + $0x390] sm:$0xff] %vm2158, %v2080
      %2274 = vst.msk [vmem:[%s172 + $0x398] sm:$0xff] %vm2158, %v2081
      %2275 = vst.msk [vmem:[%s172 + $0x3a0] sm:$0xff] %vm2158, %v2082
      %2276 = vst.msk [vmem:[%s172 + $0x3a8] sm:$0xff] %vm2158, %v2083
      %2277 = vst.msk [vmem:[%s172 + $0x3b0] sm:$0xff] %vm2158, %v2084
      %2278 = vst.msk [vmem:[%s172 + $0x3b8] sm:$0xff] %vm2158, %v2085
      %2279 = vst.msk [vmem:[%s172 + $0x3c0] sm:$0xff] %vm2158, %v2086
      %2280 = vst.msk [vmem:[%s172 + $0x3c8] sm:$0xff] %vm2158, %v2087
      %2281 = vst.msk [vmem:[%s172 + $0x3d0] sm:$0xff] %vm2158, %v2088
      %2282 = vst.msk [vmem:[%s172 + $0x3d8] sm:$0xff] %vm2158, %v2089
      %2283 = vst.msk [vmem:[%s172 + $0x3e0] sm:$0xff] %vm2158, %v2090
      %2284 = vst.msk [vmem:[%s172 + $0x3e8] sm:$0xff] %vm2158, %v2091
      %2285 = vst.msk [vmem:[%s172 + $0x3f0] sm:$0xff] %vm2158, %v2092
      %2286 = vst.msk [vmem:[%s172 + $0x3f8] sm:$0xff] %vm2158, %v2093
      %2287 = vst.msk [vmem:[%s172 + $0x400] sm:$0xff] %vm2158, %v2094
      %2288 = vst.msk [vmem:[%s172 + $0x408] sm:$0xff] %vm2158, %v2095
      %2289 = vst.msk [vmem:[%s172 + $0x410] sm:$0xff] %vm2158, %v2096
      %2290 = vst.msk [vmem:[%s172 + $0x418] sm:$0xff] %vm2158, %v2097
      %2291 = vst.msk [vmem:[%s172 + $0x420] sm:$0xff] %vm2158, %v2098
      %2292 = vst.msk [vmem:[%s172 + $0x428] sm:$0xff] %vm2158, %v2099
      %2293 = vst.msk [vmem:[%s172 + $0x430] sm:$0xff] %vm2158, %v2100
      %2294 = vst.msk [vmem:[%s172 + $0x438] sm:$0xff] %vm2158, %v2101
      %2295 = vst.msk [vmem:[%s172 + $0x440] sm:$0xff] %vm2158, %v2102
      %2296 = vst.msk [vmem:[%s172 + $0x448] sm:$0xff] %vm2158, %v2103
      %2297 = vst.msk [vmem:[%s172 + $0x450] sm:$0xff] %vm2158, %v2104
      %2298 = vst.msk [vmem:[%s172 + $0x458] sm:$0xff] %vm2158, %v2105
      %2299 = vst.msk [vmem:[%s172 + $0x460] sm:$0xff] %vm2158, %v2106
      %2300 = vst.msk [vmem:[%s172 + $0x468] sm:$0xff] %vm2158, %v2107
      %2301 = vst.msk [vmem:[%s172 + $0x470] sm:$0xff] %vm2158, %v2108
      %2302 = vst.msk [vmem:[%s172 + $0x478] sm:$0xff] %vm2158, %v2109
      %2303 = vst.msk [vmem:[%s172 + $0x480] sm:$0xff] %vm2158, %v2110
      %2304 = vst.msk [vmem:[%s172 + $0x488] sm:$0xff] %vm2158, %v2111
      %2305 = vst.msk [vmem:[%s172 + $0x490] sm:$0xff] %vm2158, %v2112
      %2306 = vst.msk [vmem:[%s172 + $0x498] sm:$0xff] %vm2158, %v2113
      %2307 = vst.msk [vmem:[%s172 + $0x4a0] sm:$0xff] %vm2158, %v2114
      %2308 = vst.msk [vmem:[%s172 + $0x4a8] sm:$0xff] %vm2158, %v2115
      %2309 = vst.msk [vmem:[%s172 + $0x4b0] sm:$0xff] %vm2158, %v2116
      %2310 = vst.msk [vmem:[%s172 + $0x4b8] sm:$0xff] %vm2158, %v2117
      %2311 = vst.msk [vmem:[%s172 + $0x4c0] sm:$0xff] %vm2158, %v2118
      %2312 = vst.msk [vmem:[%s172 + $0x4c8] sm:$0xff] %vm2158, %v2119
      %2313 = vst.msk [vmem:[%s172 + $0x4d0] sm:$0xff] %vm2158, %v2120
      %2314 = vst.msk [vmem:[%s172 + $0x4d8] sm:$0xff] %vm2158, %v2121
      %2315 = vst.msk [vmem:[%s172 + $0x4e0] sm:$0xff] %vm2158, %v2122
      %2316 = vst.msk [vmem:[%s172 + $0x4e8] sm:$0xff] %vm2158, %v2123
      %2317 = vst.msk [vmem:[%s172 + $0x4f0] sm:$0xff] %vm2158, %v2124
      %2318 = vst.msk [vmem:[%s172 + $0x4f8] sm:$0xff] %vm2158, %v2125
      %2319 = vst.msk [vmem:[%s172 + $0x500] sm:$0xff] %vm2158, %v2126
      %2320 = vst.msk [vmem:[%s172 + $0x508] sm:$0xff] %vm2158, %v2127
      %2321 = vst.msk [vmem:[%s172 + $0x510] sm:$0xff] %vm2158, %v2128
      %2322 = vst.msk [vmem:[%s172 + $0x518] sm:$0xff] %vm2158, %v2129
      %2323 = vst.msk [vmem:[%s172 + $0x520] sm:$0xff] %vm2158, %v2130
      %2324 = vst.msk [vmem:[%s172 + $0x528] sm:$0xff] %vm2158, %v2131
      %2325 = vst.msk [vmem:[%s172 + $0x530] sm:$0xff] %vm2158, %v2132
      %2326 = vst.msk [vmem:[%s172 + $0x538] sm:$0xff] %vm2158, %v2133
      %2327 = vst.msk [vmem:[%s172 + $0x540] sm:$0xff] %vm2158, %v2134
      %2328 = vst.msk [vmem:[%s172 + $0x548] sm:$0xff] %vm2158, %v2135
      %2329 = vst.msk [vmem:[%s172 + $0x550] sm:$0xff] %vm2158, %v2136
      %2330 = vst.msk [vmem:[%s172 + $0x558] sm:$0xff] %vm2158, %v2137
      %2331 = vst.msk [vmem:[%s172 + $0x560] sm:$0xff] %vm2158, %v2138
      %2332 = vst.msk [vmem:[%s172 + $0x568] sm:$0xff] %vm2158, %v2139
      %2333 = vst.msk [vmem:[%s172 + $0x570] sm:$0xff] %vm2158, %v2140
      %2334 = vst.msk [vmem:[%s172 + $0x578] sm:$0xff] %vm2158, %v2141
      %2335 = vst.msk [vmem:[%s172 + $0x580] sm:$0xff] %vm2158, %v2142
      %2336 = vst.msk [vmem:[%s172 + $0x588] sm:$0xff] %vm2158, %v2143
      %2337 = vst.msk [vmem:[%s172 + $0x590] sm:$0xff] %vm2158, %v2144
      %2338 = vst.msk [vmem:[%s172 + $0x598] sm:$0xff] %vm2158, %v2145
      %2339 = vst.msk [vmem:[%s172 + $0x5a0] sm:$0xff] %vm2158, %v2146
      %2340 = vst.msk [vmem:[%s172 + $0x5a8] sm:$0xff] %vm2158, %v2147
      %2341 = vst.msk [vmem:[%s172 + $0x5b0] sm:$0xff] %vm2158, %v2148
      %2342 = vst.msk [vmem:[%s172 + $0x5b8] sm:$0xff] %vm2158, %v2149
      %2343 = vst.msk [vmem:[%s172 + $0x5c0] sm:$0xff] %vm2158, %v2150
      %2344 = vst.msk [vmem:[%s172 + $0x5c8] sm:$0xff] %vm2158, %v2151
      %2345 = vst.msk [vmem:[%s172 + $0x5d0] sm:$0xff] %vm2158, %v2152
      %2346 = vst.msk [vmem:[%s172 + $0x5d8] sm:$0xff] %vm2158, %v2153
      %2347 = vst.msk [vmem:[%s172 + $0x5e0] sm:$0xff] %vm2158, %v2154
      %2348 = vst.msk [vmem:[%s172 + $0x5e8] sm:$0xff] %vm2158, %v2155
      %2349 = vst.msk [vmem:[%s172 + $0x5f0] sm:$0xff] %vm2158, %v2156
      %2350 = vst.msk [vmem:[%s172 + $0x5f8] sm:$0xff] %vm2158, %v2157
      %s2351 = smul.u32 192, %s14
      %p2352 = scmp.lt.s32.totalorder %s2351, 575
      %s2353 = scalar_select %p2352, %s2351, 575
      %s2354 = smul.addr %s2353, 8
      %s2355 = scalar_lea.vmem %s3, %s2354
      // Predicated region
      $region33: #{_lambda_.6} parent=31 // pred_check
        %p2356 = pneg %p100
      $region34: #{_lambda_.6} parent=31 // pred_check_branch
        %2358 = sbr.rel (%p2356) target = $region36
      $region35: #{_lambda_.6} parent=31 // pred_region
        %s2359 = smul.u32 192, %s14
      $region36: #{_lambda_.6} parent=31 // pred_fallthru
        _
    $region32: #{_lambda_.6} parent=5 // pred_fallthru
      _
    %p2360 = scmp.le.s32.totalorder 2, %s9
    // Predicated region
    $region37: #{_lambda_.6} parent=5 // pred_check
      %p2361 = pneg %p2360
    $region38: #{_lambda_.6} parent=5 // pred_check_branch
      %2363 = sbr.rel (%p2361) target = $region40
    $region39: #{_lambda_.6} parent=5 // pred_region
      %s2364 = ssub.s32 %s9, 2
      // Predicated region
      $region41: #{_lambda_.6} parent=39 // pred_check
        %p2365 = pneg %p106
      $region42: #{_lambda_.6} parent=39 // pred_check_branch
        %2367 = sbr.rel (%p2365) target = $region44
      $region43: #{_lambda_.6} parent=39 // pred_region
        %s2368 = smul.u32 192, %s15
        %p2369 = scmp.lt.s32.totalorder %s2368, 575
        %s2370 = scalar_select %p2369, %s2368, 575
        %s2371 = smul.addr %s2370, 8
        %s2372 = scalar_lea.vmem %s3, %s2371
      $region44: #{_lambda_.6} parent=39 // pred_fallthru
        _
    $region40: #{_lambda_.6} parent=5 // pred_fallthru
      _
  $region6: #{_lambda_.6} parent=0 // loop_footer
    %s13 = sadd.s32 1, %s9
  $region7: #{_lambda_.6} parent=0 // loop_footer_branch
    %8 = sbr.rel target = $region3
  $region8: #{_lambda_.6} parent=0 // loop_exit
    _

// kernel: _lambda_.7
$region0: #{_lambda_.7}
  #allocation0 [shape = 'u32[]', space=smem, size = 0x4, offset = 0x4, fixed_abs, tag = 'smem constant byte address 0x4 - core index']
  #allocation1 [shape = 'u32[144,128]{1,0:T(1,128)}', space=vmem, size = 0x12000, scoped, tag = 'internal scratch']
  %s0 = inlined_call_operand.vmem [shape: bf16[512,150], index: 0, kind: input, shape index: {}]
  %s1 = inlined_call_operand.vmem [shape: bf16[150,16], index: 1, kind: input, shape index: {}]
  %s2 = inlined_call_operand.vmem [shape: f32[1,16], index: 2, kind: input, shape index: {}]
  %s3 = inlined_call_operand.vmem [shape: f32[512,16], index: 3, kind: output, shape index: {}]
  %s4 = sld [smem:[#allocation0]]
  $region22: #{_lambda_.7} parent=0
    _
  %s6 = ssub.s32 1, %s4
  %s7 = scalar_select 0, %s6, %s4
  // Predicated region
  $region2: #{_lambda_.7} parent=0 // pred_check
    _
  $region3: #{_lambda_.7} parent=0 // pred_check_branch
    %9 = sbr.rel (0) target = $region5
  $region4: #{_lambda_.7} parent=0 // pred_region
    _
  $region5: #{_lambda_.7} parent=0 // pred_fallthru
    _
  // Predicated region
  $region6: #{_lambda_.7} parent=0 // pred_check
    _
  $region7: #{_lambda_.7} parent=0 // pred_check_branch
    %11 = sbr.rel (0) target = $region9
  $region8: #{_lambda_.7} parent=0 // pred_region
    _
  $region9: #{_lambda_.7} parent=0 // pred_fallthru
    _
  // Predicated region
  $region10: #{_lambda_.7} parent=0 // pred_check
    _
  $region11: #{_lambda_.7} parent=0 // pred_check_branch
    %13 = sbr.rel (0) target = $region13
  $region12: #{_lambda_.7} parent=0 // pred_region
    _
  $region13: #{_lambda_.7} parent=0 // pred_fallthru
    _
  %v15 = vld [vmem:[%s0] sm:$0xff]
  %v16 = vld [vmem:[%s0 + $0x8] sm:$0xff]
  %v17 = vld [vmem:[%s0 + $0x10] sm:$0xff]
  %v18 = vld [vmem:[%s0 + $0x18] sm:$0xff]
  %v19 = vld [vmem:[%s0 + $0x20] sm:$0xff]
  %v20 = vld [vmem:[%s0 + $0x28] sm:$0xff]
  %v21 = vld [vmem:[%s0 + $0x30] sm:$0xff]
  %v22 = vld [vmem:[%s0 + $0x38] sm:$0xff]
  %v23 = vld [vmem:[%s0 + $0x40] sm:$0xff]
  %v24 = vld [vmem:[%s0 + $0x48] sm:$0xff]
  %v25 = vld [vmem:[%s0 + $0x50] sm:$0xff]
  %v26 = vld [vmem:[%s0 + $0x58] sm:$0xff]
  %v27 = vld [vmem:[%s0 + $0x60] sm:$0xff]
  %v28 = vld [vmem:[%s0 + $0x68] sm:$0xff]
  %v29 = vld [vmem:[%s0 + $0x70] sm:$0xff]
  %v30 = vld [vmem:[%s0 + $0x78] sm:$0xff]
  %v31 = vld [vmem:[%s0 + $0x80] sm:$0xff]
  %v32 = vld [vmem:[%s0 + $0x88] sm:$0xff]
  %v33 = vld [vmem:[%s0 + $0x90] sm:$0xff]
  %v34 = vld [vmem:[%s0 + $0x98] sm:$0xff]
  %v35 = vld [vmem:[%s0 + $0xa0] sm:$0xff]
  %v36 = vld [vmem:[%s0 + $0xa8] sm:$0xff]
  %v37 = vld [vmem:[%s0 + $0xb0] sm:$0xff]
  %v38 = vld [vmem:[%s0 + $0xb8] sm:$0xff]
  %v39 = vld [vmem:[%s0 + $0xc0] sm:$0xff]
  %v40 = vld [vmem:[%s0 + $0xc8] sm:$0xff]
  %v41 = vld [vmem:[%s0 + $0xd0] sm:$0xff]
  %v42 = vld [vmem:[%s0 + $0xd8] sm:$0xff]
  %v43 = vld [vmem:[%s0 + $0xe0] sm:$0xff]
  %v44 = vld [vmem:[%s0 + $0xe8] sm:$0xff]
  %v45 = vld [vmem:[%s0 + $0xf0] sm:$0xff]
  %v46 = vld [vmem:[%s0 + $0xf8] sm:$0xff]
  %v47 = vld [vmem:[%s0 + $0x100] sm:$0xff]
  %v48 = vld [vmem:[%s0 + $0x108] sm:$0xff]
  %v49 = vld [vmem:[%s0 + $0x110] sm:$0xff]
  %v50 = vld [vmem:[%s0 + $0x118] sm:$0xff]
  %v51 = vld [vmem:[%s0 + $0x120] sm:$0xff]
  %v52 = vld [vmem:[%s0 + $0x128] sm:$0xff]
  %v53 = vld [vmem:[%s0 + $0x130] sm:$0xff]
  %v54 = vld [vmem:[%s0 + $0x138] sm:$0xff]
  %v55 = vld [vmem:[%s0 + $0x140] sm:$0xff]
  %v56 = vld [vmem:[%s0 + $0x148] sm:$0xff]
  %v57 = vld [vmem:[%s0 + $0x150] sm:$0xff]
  %v58 = vld [vmem:[%s0 + $0x158] sm:$0xff]
  %v59 = vld [vmem:[%s0 + $0x160] sm:$0xff]
  %v60 = vld [vmem:[%s0 + $0x168] sm:$0xff]
  %v61 = vld [vmem:[%s0 + $0x170] sm:$0xff]
  %v62 = vld [vmem:[%s0 + $0x178] sm:$0xff]
  %v63 = vld [vmem:[%s0 + $0x180] sm:$0xff]
  %v64 = vld [vmem:[%s0 + $0x188] sm:$0xff]
  %v65 = vld [vmem:[%s0 + $0x190] sm:$0xff]
  %v66 = vld [vmem:[%s0 + $0x198] sm:$0xff]
  %v67 = vld [vmem:[%s0 + $0x1a0] sm:$0xff]
  %v68 = vld [vmem:[%s0 + $0x1a8] sm:$0xff]
  %v69 = vld [vmem:[%s0 + $0x1b0] sm:$0xff]
  %v70 = vld [vmem:[%s0 + $0x1b8] sm:$0xff]
  %v71 = vld [vmem:[%s0 + $0x1c0] sm:$0xff]
  %v72 = vld [vmem:[%s0 + $0x1c8] sm:$0xff]
  %v73 = vld [vmem:[%s0 + $0x1d0] sm:$0xff]
  %v74 = vld [vmem:[%s0 + $0x1d8] sm:$0xff]
  %v75 = vld [vmem:[%s0 + $0x1e0] sm:$0xff]
  %v76 = vld [vmem:[%s0 + $0x1e8] sm:$0xff]
  %v77 = vld [vmem:[%s0 + $0x1f0] sm:$0xff]
  %v78 = vld [vmem:[%s0 + $0x1f8] sm:$0xff]
  %v79 = vld [vmem:[%s1] sm:$0xf]
  %v80 = vld [vmem:[%s1 + $0x4] sm:$0xf]
  %v81 = vld [vmem:[%s1 + $0x8] sm:$0xf]
  %v82 = vld [vmem:[%s1 + $0xc] sm:$0xf]
  %v83 = vld [vmem:[%s1 + $0x10] sm:$0xf]
  %v84 = vld [vmem:[%s1 + $0x14] sm:$0xf]
  %v85 = vld [vmem:[%s1 + $0x18] sm:$0xf]
  %v86 = vld [vmem:[%s1 + $0x1c] sm:$0xf]
  %v87 = vld [vmem:[%s1 + $0x20] sm:$0xf]
  %v88 = vld [vmem:[%s1 + $0x24] sm:$0xf]
  %v89 = vld [vmem:[%s1 + $0x28] sm:$0xf]
  %v90 = vld [vmem:[%s1 + $0x2c] sm:$0xf]
  %v91 = vld [vmem:[%s1 + $0x30] sm:$0xf]
  %v92 = vld [vmem:[%s1 + $0x34] sm:$0xf]
  %v93 = vld [vmem:[%s1 + $0x38] sm:$0xf]
  %v94 = vld [vmem:[%s1 + $0x3c] sm:$0xf]
  %v95 = vld [vmem:[%s1 + $0x40] sm:$0xf]
  %v96 = vld [vmem:[%s1 + $0x44] sm:$0xf]
  %v97 = vld [vmem:[%s1 + $0x48] sm:$0x7]
  %v98 = vld [vmem:[%s2] sm:$0x1]
  %v100 = vlaneseq
  %v101 = vshrl.u32 %v100, 7
  %v102 = vsub.s32 0, %v101
  %v103 = vrot.slane %v98, %v102
  %v169 = vunpack.c.l.b16 %v15
  %v170 = vunpack.c.h.b16 %v15
  %v171 = vunpack.c.l.b16 %v16
  %v172 = vunpack.c.h.b16 %v16
  %v173 = vunpack.c.l.b16 %v17
  %v174 = vunpack.c.h.b16 %v17
  %v175 = vunpack.c.l.b16 %v18
  %v176 = vunpack.c.h.b16 %v18
  %v177 = vunpack.c.l.b16 %v19
  %v178 = vunpack.c.h.b16 %v19
  %v179 = vunpack.c.l.b16 %v20
  %v180 = vunpack.c.h.b16 %v20
  %v181 = vunpack.c.l.b16 %v21
  %v182 = vunpack.c.h.b16 %v21
  %v183 = vunpack.c.l.b16 %v22
  %v184 = vunpack.c.h.b16 %v22
  %v185 = vunpack.c.l.b16 %v23
  %v186 = vunpack.c.h.b16 %v23
  %v187 = vunpack.c.l.b16 %v24
  %v188 = vunpack.c.h.b16 %v24
  %v189 = vunpack.c.l.b16 %v25
  %v190 = vunpack.c.h.b16 %v25
  %v191 = vunpack.c.l.b16 %v26
  %v192 = vunpack.c.h.b16 %v26
  %v193 = vunpack.c.l.b16 %v27
  %v194 = vunpack.c.h.b16 %v27
  %v195 = vunpack.c.l.b16 %v28
  %v196 = vunpack.c.h.b16 %v28
  %v197 = vunpack.c.l.b16 %v29
  %v198 = vunpack.c.h.b16 %v29
  %v199 = vunpack.c.l.b16 %v30
  %v200 = vunpack.c.h.b16 %v30
  %v201 = vunpack.c.l.b16 %v31
  %v202 = vunpack.c.h.b16 %v31
  %v203 = vunpack.c.l.b16 %v32
  %v204 = vunpack.c.h.b16 %v32
  %v205 = vunpack.c.l.b16 %v33
  %v206 = vunpack.c.h.b16 %v33
  %v207 = vunpack.c.l.b16 %v34
  %v208 = vunpack.c.h.b16 %v34
  %v209 = vunpack.c.l.b16 %v35
  %v210 = vunpack.c.h.b16 %v35
  %v211 = vunpack.c.l.b16 %v36
  %v212 = vunpack.c.h.b16 %v36
  %v213 = vunpack.c.l.b16 %v37
  %v214 = vunpack.c.h.b16 %v37
  %v215 = vunpack.c.l.b16 %v38
  %v216 = vunpack.c.h.b16 %v38
  %v217 = vunpack.c.l.b16 %v39
  %v218 = vunpack.c.h.b16 %v39
  %v219 = vunpack.c.l.b16 %v40
  %v220 = vunpack.c.h.b16 %v40
  %v221 = vunpack.c.l.b16 %v41
  %v222 = vunpack.c.h.b16 %v41
  %v223 = vunpack.c.l.b16 %v42
  %v224 = vunpack.c.h.b16 %v42
  %v225 = vunpack.c.l.b16 %v43
  %v226 = vunpack.c.h.b16 %v43
  %v227 = vunpack.c.l.b16 %v44
  %v228 = vunpack.c.h.b16 %v44
  %v229 = vunpack.c.l.b16 %v45
  %v230 = vunpack.c.h.b16 %v45
  %v231 = vunpack.c.l.b16 %v46
  %v232 = vunpack.c.h.b16 %v46
  %v233 = vunpack.c.l.b16 %v47
  %v234 = vunpack.c.h.b16 %v47
  %v235 = vunpack.c.l.b16 %v48
  %v236 = vunpack.c.h.b16 %v48
  %v237 = vunpack.c.l.b16 %v49
  %v238 = vunpack.c.h.b16 %v49
  %v239 = vunpack.c.l.b16 %v50
  %v240 = vunpack.c.h.b16 %v50
  %v241 = vunpack.c.l.b16 %v51
  %v242 = vunpack.c.h.b16 %v51
  %v243 = vunpack.c.l.b16 %v52
  %v244 = vunpack.c.h.b16 %v52
  %v245 = vunpack.c.l.b16 %v53
  %v246 = vunpack.c.h.b16 %v53
  %v247 = vunpack.c.l.b16 %v54
  %v248 = vunpack.c.h.b16 %v54
  %v249 = vunpack.c.l.b16 %v55
  %v250 = vunpack.c.h.b16 %v55
  %v251 = vunpack.c.l.b16 %v56
  %v252 = vunpack.c.h.b16 %v56
  %v253 = vunpack.c.l.b16 %v57
  %v254 = vunpack.c.h.b16 %v57
  %v255 = vunpack.c.l.b16 %v58
  %v256 = vunpack.c.h.b16 %v58
  %v257 = vunpack.c.l.b16 %v59
  %v258 = vunpack.c.h.b16 %v59
  %v259 = vunpack.c.l.b16 %v60
  %v260 = vunpack.c.h.b16 %v60
  %v261 = vunpack.c.l.b16 %v61
  %v262 = vunpack.c.h.b16 %v61
  %v263 = vunpack.c.l.b16 %v62
  %v264 = vunpack.c.h.b16 %v62
  %v265 = vunpack.c.l.b16 %v63
  %v266 = vunpack.c.h.b16 %v63
  %v267 = vunpack.c.l.b16 %v64
  %v268 = vunpack.c.h.b16 %v64
  %v269 = vunpack.c.l.b16 %v65
  %v270 = vunpack.c.h.b16 %v65
  %v271 = vunpack.c.l.b16 %v66
  %v272 = vunpack.c.h.b16 %v66
  %v273 = vunpack.c.l.b16 %v67
  %v274 = vunpack.c.h.b16 %v67
  %v275 = vunpack.c.l.b16 %v68
  %v276 = vunpack.c.h.b16 %v68
  %v277 = vunpack.c.l.b16 %v69
  %v278 = vunpack.c.h.b16 %v69
  %v279 = vunpack.c.l.b16 %v70
  %v280 = vunpack.c.h.b16 %v70
  %v281 = vunpack.c.l.b16 %v71
  %v282 = vunpack.c.h.b16 %v71
  %v283 = vunpack.c.l.b16 %v72
  %v284 = vunpack.c.h.b16 %v72
  %v285 = vunpack.c.l.b16 %v73
  %v286 = vunpack.c.h.b16 %v73
  %v287 = vunpack.c.l.b16 %v74
  %v288 = vunpack.c.h.b16 %v74
  %v289 = vunpack.c.l.b16 %v75
  %v290 = vunpack.c.h.b16 %v75
  %v291 = vunpack.c.l.b16 %v76
  %v292 = vunpack.c.h.b16 %v76
  %v293 = vunpack.c.l.b16 %v77
  %v294 = vunpack.c.h.b16 %v77
  %v295 = vunpack.c.l.b16 %v78
  %v296 = vunpack.c.h.b16 %v78
  %v297 = vpack.c.b16 %v171, %v169
  %v298 = vpack.c.b16 %v172, %v170
  %v299 = vpack.c.b16 %v175, %v173
  %v300 = vpack.c.b16 %v176, %v174
  %v301 = vpack.c.b16 %v179, %v177
  %v302 = vpack.c.b16 %v180, %v178
  %v303 = vpack.c.b16 %v183, %v181
  %v304 = vpack.c.b16 %v184, %v182
  %v305 = vpack.c.b16 %v187, %v185
  %v306 = vpack.c.b16 %v188, %v186
  %v307 = vpack.c.b16 %v191, %v189
  %v308 = vpack.c.b16 %v192, %v190
  %v309 = vpack.c.b16 %v195, %v193
  %v310 = vpack.c.b16 %v196, %v194
  %v311 = vpack.c.b16 %v199, %v197
  %v312 = vpack.c.b16 %v200, %v198
  %v313 = vpack.c.b16 %v203, %v201
  %v314 = vpack.c.b16 %v204, %v202
  %v315 = vpack.c.b16 %v207, %v205
  %v316 = vpack.c.b16 %v208, %v206
  %v317 = vpack.c.b16 %v211, %v209
  %v318 = vpack.c.b16 %v212, %v210
  %v319 = vpack.c.b16 %v215, %v213
  %v320 = vpack.c.b16 %v216, %v214
  %v321 = vpack.c.b16 %v219, %v217
  %v322 = vpack.c.b16 %v220, %v218
  %v323 = vpack.c.b16 %v223, %v221
  %v324 = vpack.c.b16 %v224, %v222
  %v325 = vpack.c.b16 %v227, %v225
  %v326 = vpack.c.b16 %v228, %v226
  %v327 = vpack.c.b16 %v231, %v229
  %v328 = vpack.c.b16 %v232, %v230
  %v329 = vpack.c.b16 %v235, %v233
  %v330 = vpack.c.b16 %v236, %v234
  %v331 = vpack.c.b16 %v239, %v237
  %v332 = vpack.c.b16 %v240, %v238
  %v333 = vpack.c.b16 %v243, %v241
  %v334 = vpack.c.b16 %v244, %v242
  %v335 = vpack.c.b16 %v247, %v245
  %v336 = vpack.c.b16 %v248, %v246
  %v337 = vpack.c.b16 %v251, %v249
  %v338 = vpack.c.b16 %v252, %v250
  %v339 = vpack.c.b16 %v255, %v253
  %v340 = vpack.c.b16 %v256, %v254
  %v341 = vpack.c.b16 %v259, %v257
  %v342 = vpack.c.b16 %v260, %v258
  %v343 = vpack.c.b16 %v263, %v261
  %v344 = vpack.c.b16 %v264, %v262
  %v345 = vpack.c.b16 %v267, %v265
  %v346 = vpack.c.b16 %v268, %v266
  %v347 = vpack.c.b16 %v271, %v269
  %v348 = vpack.c.b16 %v272, %v270
  %v349 = vpack.c.b16 %v275, %v273
  %v350 = vpack.c.b16 %v276, %v274
  %v351 = vpack.c.b16 %v279, %v277
  %v352 = vpack.c.b16 %v280, %v278
  %v353 = vpack.c.b16 %v283, %v281
  %v354 = vpack.c.b16 %v284, %v282
  %v355 = vpack.c.b16 %v287, %v285
  %v356 = vpack.c.b16 %v288, %v286
  %v357 = vpack.c.b16 %v291, %v289
  %v358 = vpack.c.b16 %v292, %v290
  %v359 = vpack.c.b16 %v295, %v293
  %v360 = vpack.c.b16 %v296, %v294
  %v412 = vunpack.c.l.b16 %v79
  %v413 = vunpack.c.l.b16 %v80
  %v414 = vunpack.c.l.b16 %v81
  %v415 = vunpack.c.l.b16 %v82
  %v416 = vunpack.c.l.b16 %v83
  %v417 = vunpack.c.l.b16 %v84
  %v418 = vunpack.c.l.b16 %v85
  %v419 = vunpack.c.l.b16 %v86
  %v420 = vunpack.c.l.b16 %v87
  %v421 = vunpack.c.l.b16 %v88
  %v422 = vunpack.c.l.b16 %v89
  %v423 = vunpack.c.l.b16 %v90
  %v424 = vunpack.c.l.b16 %v91
  %v425 = vunpack.c.l.b16 %v92
  %v426 = vunpack.c.l.b16 %v93
  %v427 = vunpack.c.l.b16 %v94
  %v428 = vunpack.c.l.b16 %v95
  %v429 = vunpack.c.l.b16 %v96
  %v430 = vunpack.c.l.b16 %v97
  %v431 = vpack.c.b16 %v413, %v412
  %v432 = vpack.c.b16 %v415, %v414
  %v433 = vpack.c.b16 %v417, %v416
  %v434 = vpack.c.b16 %v419, %v418
  %v435 = vpack.c.b16 %v421, %v420
  %v436 = vpack.c.b16 %v423, %v422
  %v437 = vpack.c.b16 %v425, %v424
  %v438 = vpack.c.b16 %v427, %v426
  %v439 = vpack.c.b16 %v429, %v428
  %v440 = vpack.c.b16 %v430, %v430
  %vm450 = vcmask 179200
  %v452 = vsel %vm450, %v298, 0
  %v455 = vsel %vm450, %v300, 0
  %v458 = vsel %vm450, %v302, 0
  %v461 = vsel %vm450, %v304, 0
  %v464 = vsel %vm450, %v306, 0
  %v467 = vsel %vm450, %v308, 0
  %v470 = vsel %vm450, %v310, 0
  %v473 = vsel %vm450, %v312, 0
  %v476 = vsel %vm450, %v314, 0
  %v479 = vsel %vm450, %v316, 0
  %v482 = vsel %vm450, %v318, 0
  %v485 = vsel %vm450, %v320, 0
  %v488 = vsel %vm450, %v322, 0
  %v491 = vsel %vm450, %v324, 0
  %v494 = vsel %vm450, %v326, 0
  %v497 = vsel %vm450, %v328, 0
  %v500 = vsel %vm450, %v330, 0
  %v503 = vsel %vm450, %v332, 0
  %v506 = vsel %vm450, %v334, 0
  %v509 = vsel %vm450, %v336, 0
  %v512 = vsel %vm450, %v338, 0
  %v515 = vsel %vm450, %v340, 0
  %v518 = vsel %vm450, %v342, 0
  %v521 = vsel %vm450, %v344, 0
  %v524 = vsel %vm450, %v346, 0
  %v527 = vsel %vm450, %v348, 0
  %v530 = vsel %vm450, %v350, 0
  %v533 = vsel %vm450, %v352, 0
  %v536 = vsel %vm450, %v354, 0
  %v539 = vsel %vm450, %v356, 0
  %v542 = vsel %vm450, %v358, 0
  %v545 = vsel %vm450, %v360, 0
  %vm547 = vcmask 1042432
  %v549 = vsel %vm547, %v440, 0
  %551 = vmatprep.subr.bf16.mxu0 0
  %552 = vmatpush1.bf16.msra.mxu0 %v431
  %553 = vmatprep.subr.bf16.mxu0 0
  %554 = vmatpush1.bf16.msra.mxu0 %v432
  %555 = vmatprep.subr.bf16.mxu0 0
  %556 = vmatpush1.bf16.msra.mxu0 %v433
  %557 = vmatprep.subr.bf16.mxu0 0
  %558 = vmatpush1.bf16.msra.mxu0 %v434
  %559 = vmatprep.subr.bf16.mxu0 0
  %560 = vmatpush1.bf16.msra.mxu0 %v435
  %561 = vmatprep.subr.bf16.mxu0 0
  %562 = vmatpush1.bf16.msra.mxu0 %v436
  %563 = vmatprep.subr.bf16.mxu0 0
  %564 = vmatpush1.bf16.msra.mxu0 %v437
  %565 = vmatprep.subr.bf16.mxu0 0
  %566 = vmatpush1.bf16.msra.mxu0 %v438
  %567 = vmatprep.subr.bf16.mxu0 0
  %568 = vmatpush1.bf16.msra.mxu0 %v439
  %569 = vmatprep.subr.bf16.mxu0 0
  %570 = vmatpush1.bf16.msra.mxu0 %v549
  %571 = vmatprep.subr.bf16.mxu0 0
  %572 = vmatpush1.bf16.msra.mxu0 0
  %573 = vmatprep.subr.bf16.mxu0 0
  %574 = vmatpush1.bf16.msra.mxu0 0
  %575 = vmatprep.subr.bf16.mxu0 0
  %576 = vmatpush1.bf16.msra.mxu0 0
  %577 = vmatprep.subr.bf16.mxu0 0
  %578 = vmatpush1.bf16.msra.mxu0 0
  %579 = vmatprep.subr.bf16.mxu0 0
  %580 = vmatpush1.bf16.msra.mxu0 0
  %581 = vmatprep.subr.bf16.mxu0 0
  %582 = vmatpush1.bf16.msra.mxu0 0
  %583 = vmatprep.mubr.bf16.mxu0 %v452
  %584 = vmatmul.mubr.bf16.gmra.mrb[0].mxu0 %v297
  %v585 = vpop.f32.mrb[0].mxu0
  %v586 = vadd.f32 %v103, %v585
  %v587 = vpop.f32.mrb[0].mxu0
  %v588 = vpop.f32.mrb[0].mxu0
  %v589 = vadd.f32 %v103, %v588
  %v590 = vpop.f32.mrb[0].mxu0
  %591 = vmatprep.mubr.bf16.mxu0 %v455
  %592 = vmatmul.mubr.bf16.gmra.mrb[0].mxu0 %v299
  %v593 = vpop.f32.mrb[0].mxu0
  %v594 = vadd.f32 %v103, %v593
  %v595 = vpop.f32.mrb[0].mxu0
  %v596 = vpop.f32.mrb[0].mxu0
  %v597 = vadd.f32 %v103, %v596
  %v598 = vpop.f32.mrb[0].mxu0
  %599 = vmatprep.mubr.bf16.mxu0 %v458
  %600 = vmatmul.mubr.bf16.gmra.mrb[0].mxu0 %v301
  %v601 = vpop.f32.mrb[0].mxu0
  %v602 = vadd.f32 %v103, %v601
  %v603 = vpop.f32.mrb[0].mxu0
  %v604 = vpop.f32.mrb[0].mxu0
  %v605 = vadd.f32 %v103, %v604
  %v606 = vpop.f32.mrb[0].mxu0
  %607 = vmatprep.mubr.bf16.mxu0 %v461
  %608 = vmatmul.mubr.bf16.gmra.mrb[0].mxu0 %v303
  %v609 = vpop.f32.mrb[0].mxu0
  %v610 = vadd.f32 %v103, %v609
  %v611 = vpop.f32.mrb[0].mxu0
  %v612 = vpop.f32.mrb[0].mxu0
  %v613 = vadd.f32 %v103, %v612
  %v614 = vpop.f32.mrb[0].mxu0
  %615 = vmatprep.mubr.bf16.mxu0 %v464
  %616 = vmatmul.mubr.bf16.gmra.mrb[0].mxu0 %v305
  %v617 = vpop.f32.mrb[0].mxu0
  %v618 = vadd.f32 %v103, %v617
  %v619 = vpop.f32.mrb[0].mxu0
  %v620 = vpop.f32.mrb[0].mxu0
  %v621 = vadd.f32 %v103, %v620
  %v622 = vpop.f32.mrb[0].mxu0
  %623 = vmatprep.mubr.bf16.mxu0 %v467
  %624 = vmatmul.mubr.bf16.gmra.mrb[0].mxu0 %v307
  %v625 = vpop.f32.mrb[0].mxu0
  %v626 = vadd.f32 %v103, %v625
  %v627 = vpop.f32.mrb[0].mxu0
  %v628 = vpop.f32.mrb[0].mxu0
  %v629 = vadd.f32 %v103, %v628
  %v630 = vpop.f32.mrb[0].mxu0
  %631 = vmatprep.mubr.bf16.mxu0 %v470
  %632 = vmatmul.mubr.bf16.gmra.mrb[0].mxu0 %v309
  %v633 = vpop.f32.mrb[0].mxu0
  %v634 = vadd.f32 %v103, %v633
  %v635 = vpop.f32.mrb[0].mxu0
  %v636 = vpop.f32.mrb[0].mxu0
  %v637 = vadd.f32 %v103, %v636
  %v638 = vpop.f32.mrb[0].mxu0
  %639 = vmatprep.mubr.bf16.mxu0 %v473
  %640 = vmatmul.mubr.bf16.gmra.mrb[0].mxu0 %v311
  %v641 = vpop.f32.mrb[0].mxu0
  %v642 = vadd.f32 %v103, %v641
  %v643 = vpop.f32.mrb[0].mxu0
  %v644 = vpop.f32.mrb[0].mxu0
  %v645 = vadd.f32 %v103, %v644
  %v646 = vpop.f32.mrb[0].mxu0
  %647 = vmatprep.mubr.bf16.mxu0 %v476
  %648 = vmatmul.mubr.bf16.gmra.mrb[0].mxu0 %v313
  %v649 = vpop.f32.mrb[0].mxu0
  %v650 = vadd.f32 %v103, %v649
  %v651 = vpop.f32.mrb[0].mxu0
  %v652 = vpop.f32.mrb[0].mxu0
  %v653 = vadd.f32 %v103, %v652
  %v654 = vpop.f32.mrb[0].mxu0
  %655 = vmatprep.mubr.bf16.mxu0 %v479
  %656 = vmatmul.mubr.bf16.gmra.mrb[0].mxu0 %v315
  %v657 = vpop.f32.mrb[0].mxu0
  %v658 = vadd.f32 %v103, %v657
  %v659 = vpop.f32.mrb[0].mxu0
  %v660 = vpop.f32.mrb[0].mxu0
  %v661 = vadd.f32 %v103, %v660
  %v662 = vpop.f32.mrb[0].mxu0
  %663 = vmatprep.mubr.bf16.mxu0 %v482
  %664 = vmatmul.mubr.bf16.gmra.mrb[0].mxu0 %v317
  %v665 = vpop.f32.mrb[0].mxu0
  %v666 = vadd.f32 %v103, %v665
  %v667 = vpop.f32.mrb[0].mxu0
  %v668 = vpop.f32.mrb[0].mxu0
  %v669 = vadd.f32 %v103, %v668
  %v670 = vpop.f32.mrb[0].mxu0
  %671 = vmatprep.mubr.bf16.mxu0 %v485
  %672 = vmatmul.mubr.bf16.gmra.mrb[0].mxu0 %v319
  %v673 = vpop.f32.mrb[0].mxu0
  %v674 = vadd.f32 %v103, %v673
  %v675 = vpop.f32.mrb[0].mxu0
  %v676 = vpop.f32.mrb[0].mxu0
  %v677 = vadd.f32 %v103, %v676
  %v678 = vpop.f32.mrb[0].mxu0
  %679 = vmatprep.mubr.bf16.mxu0 %v488
  %680 = vmatmul.mubr.bf16.gmra.mrb[0].mxu0 %v321
  %v681 = vpop.f32.mrb[0].mxu0
  %v682 = vadd.f32 %v103, %v681
  %v683 = vpop.f32.mrb[0].mxu0
  %v684 = vpop.f32.mrb[0].mxu0
  %v685 = vadd.f32 %v103, %v684
  %v686 = vpop.f32.mrb[0].mxu0
  %687 = vmatprep.mubr.bf16.mxu0 %v491
  %688 = vmatmul.mubr.bf16.gmra.mrb[0].mxu0 %v323
  %v689 = vpop.f32.mrb[0].mxu0
  %v690 = vadd.f32 %v103, %v689
  %v691 = vpop.f32.mrb[0].mxu0
  %v692 = vpop.f32.mrb[0].mxu0
  %v693 = vadd.f32 %v103, %v692
  %v694 = vpop.f32.mrb[0].mxu0
  %695 = vmatprep.mubr.bf16.mxu0 %v494
  %696 = vmatmul.mubr.bf16.gmra.mrb[0].mxu0 %v325
  %v697 = vpop.f32.mrb[0].mxu0
  %v698 = vadd.f32 %v103, %v697
  %v699 = vpop.f32.mrb[0].mxu0
  %v700 = vpop.f32.mrb[0].mxu0
  %v701 = vadd.f32 %v103, %v700
  %v702 = vpop.f32.mrb[0].mxu0
  %703 = vmatprep.mubr.bf16.mxu0 %v497
  %704 = vmatmul.mubr.bf16.gmra.mrb[0].mxu0 %v327
  %v705 = vpop.f32.mrb[0].mxu0
  %v706 = vadd.f32 %v103, %v705
  %v707 = vpop.f32.mrb[0].mxu0
  %v708 = vpop.f32.mrb[0].mxu0
  %v709 = vadd.f32 %v103, %v708
  %v710 = vpop.f32.mrb[0].mxu0
  %711 = vmatprep.mubr.bf16.mxu0 %v500
  %712 = vmatmul.mubr.bf16.gmra.mrb[0].mxu0 %v329
  %v713 = vpop.f32.mrb[0].mxu0
  %v714 = vadd.f32 %v103, %v713
  %v715 = vpop.f32.mrb[0].mxu0
  %v716 = vpop.f32.mrb[0].mxu0
  %v717 = vadd.f32 %v103, %v716
  %v718 = vpop.f32.mrb[0].mxu0
  %719 = vmatprep.mubr.bf16.mxu0 %v503
  %720 = vmatmul.mubr.bf16.gmra.mrb[0].mxu0 %v331
  %v721 = vpop.f32.mrb[0].mxu0
  %v722 = vadd.f32 %v103, %v721
  %v723 = vpop.f32.mrb[0].mxu0
  %v724 = vpop.f32.mrb[0].mxu0
  %v725 = vadd.f32 %v103, %v724
  %v726 = vpop.f32.mrb[0].mxu0
  %727 = vmatprep.mubr.bf16.mxu0 %v506
  %728 = vmatmul.mubr.bf16.gmra.mrb[0].mxu0 %v333
  %v729 = vpop.f32.mrb[0].mxu0
  %v730 = vadd.f32 %v103, %v729
  %v731 = vpop.f32.mrb[0].mxu0
  %v732 = vpop.f32.mrb[0].mxu0
  %v733 = vadd.f32 %v103, %v732
  %v734 = vpop.f32.mrb[0].mxu0
  %735 = vmatprep.mubr.bf16.mxu0 %v509
  %736 = vmatmul.mubr.bf16.gmra.mrb[0].mxu0 %v335
  %v737 = vpop.f32.mrb[0].mxu0
  %v738 = vadd.f32 %v103, %v737
  %v739 = vpop.f32.mrb[0].mxu0
  %v740 = vpop.f32.mrb[0].mxu0
  %v741 = vadd.f32 %v103, %v740
  %v742 = vpop.f32.mrb[0].mxu0
  %743 = vmatprep.mubr.bf16.mxu0 %v512
  %744 = vmatmul.mubr.bf16.gmra.mrb[0].mxu0 %v337
  %v745 = vpop.f32.mrb[0].mxu0
  %v746 = vadd.f32 %v103, %v745
  %v747 = vpop.f32.mrb[0].mxu0
  %v748 = vpop.f32.mrb[0].mxu0
  %v749 = vadd.f32 %v103, %v748
  %v750 = vpop.f32.mrb[0].mxu0
  %751 = vmatprep.mubr.bf16.mxu0 %v515
  %752 = vmatmul.mubr.bf16.gmra.mrb[0].mxu0 %v339
  %v753 = vpop.f32.mrb[0].mxu0
  %v754 = vadd.f32 %v103, %v753
  %v755 = vpop.f32.mrb[0].mxu0
  %v756 = vpop.f32.mrb[0].mxu0
  %v757 = vadd.f32 %v103, %v756
  %v758 = vpop.f32.mrb[0].mxu0
  %759 = vmatprep.mubr.bf16.mxu0 %v518
  %760 = vmatmul.mubr.bf16.gmra.mrb[0].mxu0 %v341
  %v761 = vpop.f32.mrb[0].mxu0
  %v762 = vadd.f32 %v103, %v761
  %v763 = vpop.f32.mrb[0].mxu0
  %v764 = vpop.f32.mrb[0].mxu0
  %v765 = vadd.f32 %v103, %v764
  %v766 = vpop.f32.mrb[0].mxu0
  %767 = vmatprep.mubr.bf16.mxu0 %v521
  %768 = vmatmul.mubr.bf16.gmra.mrb[0].mxu0 %v343
  %v769 = vpop.f32.mrb[0].mxu0
  %v770 = vadd.f32 %v103, %v769
  %v771 = vpop.f32.mrb[0].mxu0
  %v772 = vpop.f32.mrb[0].mxu0
  %v773 = vadd.f32 %v103, %v772
  %v774 = vpop.f32.mrb[0].mxu0
  %775 = vmatprep.mubr.bf16.mxu0 %v524
  %776 = vmatmul.mubr.bf16.gmra.mrb[0].mxu0 %v345
  %v777 = vpop.f32.mrb[0].mxu0
  %v778 = vadd.f32 %v103, %v777
  %v779 = vpop.f32.mrb[0].mxu0
  %v780 = vpop.f32.mrb[0].mxu0
  %v781 = vadd.f32 %v103, %v780
  %v782 = vpop.f32.mrb[0].mxu0
  %783 = vmatprep.mubr.bf16.mxu0 %v527
  %784 = vmatmul.mubr.bf16.gmra.mrb[0].mxu0 %v347
  %v785 = vpop.f32.mrb[0].mxu0
  %v786 = vadd.f32 %v103, %v785
  %v787 = vpop.f32.mrb[0].mxu0
  %v788 = vpop.f32.mrb[0].mxu0
  %v789 = vadd.f32 %v103, %v788
  %v790 = vpop.f32.mrb[0].mxu0
  %791 = vmatprep.mubr.bf16.mxu0 %v530
  %792 = vmatmul.mubr.bf16.gmra.mrb[0].mxu0 %v349
  %v793 = vpop.f32.mrb[0].mxu0
  %v794 = vadd.f32 %v103, %v793
  %v795 = vpop.f32.mrb[0].mxu0
  %v796 = vpop.f32.mrb[0].mxu0
  %v797 = vadd.f32 %v103, %v796
  %v798 = vpop.f32.mrb[0].mxu0
  %799 = vmatprep.mubr.bf16.mxu0 %v533
  %800 = vmatmul.mubr.bf16.gmra.mrb[0].mxu0 %v351
  %v801 = vpop.f32.mrb[0].mxu0
  %v802 = vadd.f32 %v103, %v801
  %v803 = vpop.f32.mrb[0].mxu0
  %v804 = vpop.f32.mrb[0].mxu0
  %v805 = vadd.f32 %v103, %v804
  %v806 = vpop.f32.mrb[0].mxu0
  %807 = vmatprep.mubr.bf16.mxu0 %v536
  %808 = vmatmul.mubr.bf16.gmra.mrb[0].mxu0 %v353
  %v809 = vpop.f32.mrb[0].mxu0
  %v810 = vadd.f32 %v103, %v809
  %v811 = vpop.f32.mrb[0].mxu0
  %v812 = vpop.f32.mrb[0].mxu0
  %v813 = vadd.f32 %v103, %v812
  %v814 = vpop.f32.mrb[0].mxu0
  %815 = vmatprep.mubr.bf16.mxu0 %v539
  %816 = vmatmul.mubr.bf16.gmra.mrb[0].mxu0 %v355
  %v817 = vpop.f32.mrb[0].mxu0
  %v818 = vadd.f32 %v103, %v817
  %v819 = vpop.f32.mrb[0].mxu0
  %v820 = vpop.f32.mrb[0].mxu0
  %v821 = vadd.f32 %v103, %v820
  %v822 = vpop.f32.mrb[0].mxu0
  %823 = vmatprep.mubr.bf16.mxu0 %v542
  %824 = vmatmul.mubr.bf16.gmra.mrb[0].mxu0 %v357
  %v825 = vpop.f32.mrb[0].mxu0
  %v826 = vadd.f32 %v103, %v825
  %v827 = vpop.f32.mrb[0].mxu0
  %v828 = vpop.f32.mrb[0].mxu0
  %v829 = vadd.f32 %v103, %v828
  %v830 = vpop.f32.mrb[0].mxu0
  %831 = vmatprep.mubr.bf16.mxu0 %v545
  %832 = vmatmul.mubr.bf16.gmra.mrb[0].mxu0 %v359
  %v833 = vpop.f32.mrb[0].mxu0
  %v834 = vadd.f32 %v103, %v833
  %v835 = vpop.f32.mrb[0].mxu0
  %v836 = vpop.f32.mrb[0].mxu0
  %v837 = vadd.f32 %v103, %v836
  %v838 = vpop.f32.mrb[0].mxu0
  %839 = vdwg.mxu0
  %v840 = vmax.f32 %v586, 0.0
  %v841 = vmax.f32 %v589, 0.0
  %v842 = vmax.f32 %v594, 0.0
  %v843 = vmax.f32 %v597, 0.0
  %v844 = vmax.f32 %v602, 0.0
  %v845 = vmax.f32 %v605, 0.0
  %v846 = vmax.f32 %v610, 0.0
  %v847 = vmax.f32 %v613, 0.0
  %v848 = vmax.f32 %v618, 0.0
  %v849 = vmax.f32 %v621, 0.0
  %v850 = vmax.f32 %v626, 0.0
  %v851 = vmax.f32 %v629, 0.0
  %v852 = vmax.f32 %v634, 0.0
  %v853 = vmax.f32 %v637, 0.0
  %v854 = vmax.f32 %v642, 0.0
  %v855 = vmax.f32 %v645, 0.0
  %v856 = vmax.f32 %v650, 0.0
  %v857 = vmax.f32 %v653, 0.0
  %v858 = vmax.f32 %v658, 0.0
  %v859 = vmax.f32 %v661, 0.0
  %v860 = vmax.f32 %v666, 0.0
  %v861 = vmax.f32 %v669, 0.0
  %v862 = vmax.f32 %v674, 0.0
  %v863 = vmax.f32 %v677, 0.0
  %v864 = vmax.f32 %v682, 0.0
  %v865 = vmax.f32 %v685, 0.0
  %v866 = vmax.f32 %v690, 0.0
  %v867 = vmax.f32 %v693, 0.0
  %v868 = vmax.f32 %v698, 0.0
  %v869 = vmax.f32 %v701, 0.0
  %v870 = vmax.f32 %v706, 0.0
  %v871 = vmax.f32 %v709, 0.0
  %v872 = vmax.f32 %v714, 0.0
  %v873 = vmax.f32 %v717, 0.0
  %v874 = vmax.f32 %v722, 0.0
  %v875 = vmax.f32 %v725, 0.0
  %v876 = vmax.f32 %v730, 0.0
  %v877 = vmax.f32 %v733, 0.0
  %v878 = vmax.f32 %v738, 0.0
  %v879 = vmax.f32 %v741, 0.0
  %v880 = vmax.f32 %v746, 0.0
  %v881 = vmax.f32 %v749, 0.0
  %v882 = vmax.f32 %v754, 0.0
  %v883 = vmax.f32 %v757, 0.0
  %v884 = vmax.f32 %v762, 0.0
  %v885 = vmax.f32 %v765, 0.0
  %v886 = vmax.f32 %v770, 0.0
  %v887 = vmax.f32 %v773, 0.0
  %v888 = vmax.f32 %v778, 0.0
  %v889 = vmax.f32 %v781, 0.0
  %v890 = vmax.f32 %v786, 0.0
  %v891 = vmax.f32 %v789, 0.0
  %v892 = vmax.f32 %v794, 0.0
  %v893 = vmax.f32 %v797, 0.0
  %v894 = vmax.f32 %v802, 0.0
  %v895 = vmax.f32 %v805, 0.0
  %v896 = vmax.f32 %v810, 0.0
  %v897 = vmax.f32 %v813, 0.0
  %v898 = vmax.f32 %v818, 0.0
  %v899 = vmax.f32 %v821, 0.0
  %v900 = vmax.f32 %v826, 0.0
  %v901 = vmax.f32 %v829, 0.0
  %v902 = vmax.f32 %v834, 0.0
  %v903 = vmax.f32 %v837, 0.0
  %vm904 = vcmask 130048
  %905 = vst.msk [vmem:[%s3] sm:$0xff] %vm904, %v840
  %906 = vst.msk [vmem:[%s3 + $0x8] sm:$0xff] %vm904, %v841
  %907 = vst.msk [vmem:[%s3 + $0x10] sm:$0xff] %vm904, %v842
  %908 = vst.msk [vmem:[%s3 + $0x18] sm:$0xff] %vm904, %v843
  %909 = vst.msk [vmem:[%s3 + $0x20] sm:$0xff] %vm904, %v844
  %910 = vst.msk [vmem:[%s3 + $0x28] sm:$0xff] %vm904, %v845
  %911 = vst.msk [vmem:[%s3 + $0x30] sm:$0xff] %vm904, %v846
  %912 = vst.msk [vmem:[%s3 + $0x38] sm:$0xff] %vm904, %v847
  %913 = vst.msk [vmem:[%s3 + $0x40] sm:$0xff] %vm904, %v848
  %914 = vst.msk [vmem:[%s3 + $0x48] sm:$0xff] %vm904, %v849
  %915 = vst.msk [vmem:[%s3 + $0x50] sm:$0xff] %vm904, %v850
  %916 = vst.msk [vmem:[%s3 + $0x58] sm:$0xff] %vm904, %v851
  %917 = vst.msk [vmem:[%s3 + $0x60] sm:$0xff] %vm904, %v852
  %918 = vst.msk [vmem:[%s3 + $0x68] sm:$0xff] %vm904, %v853
  %919 = vst.msk [vmem:[%s3 + $0x70] sm:$0xff] %vm904, %v854
  %920 = vst.msk [vmem:[%s3 + $0x78] sm:$0xff] %vm904, %v855
  %921 = vst.msk [vmem:[%s3 + $0x80] sm:$0xff] %vm904, %v856
  %922 = vst.msk [vmem:[%s3 + $0x88] sm:$0xff] %vm904, %v857
  %923 = vst.msk [vmem:[%s3 + $0x90] sm:$0xff] %vm904, %v858
  %924 = vst.msk [vmem:[%s3 + $0x98] sm:$0xff] %vm904, %v859
  %925 = vst.msk [vmem:[%s3 + $0xa0] sm:$0xff] %vm904, %v860
  %926 = vst.msk [vmem:[%s3 + $0xa8] sm:$0xff] %vm904, %v861
  %927 = vst.msk [vmem:[%s3 + $0xb0] sm:$0xff] %vm904, %v862
  %928 = vst.msk [vmem:[%s3 + $0xb8] sm:$0xff] %vm904, %v863
  %929 = vst.msk [vmem:[%s3 + $0xc0] sm:$0xff] %vm904, %v864
  %930 = vst.msk [vmem:[%s3 + $0xc8] sm:$0xff] %vm904, %v865
  %931 = vst.msk [vmem:[%s3 + $0xd0] sm:$0xff] %vm904, %v866
  %932 = vst.msk [vmem:[%s3 + $0xd8] sm:$0xff] %vm904, %v867
  %933 = vst.msk [vmem:[%s3 + $0xe0] sm:$0xff] %vm904, %v868
  %934 = vst.msk [vmem:[%s3 + $0xe8] sm:$0xff] %vm904, %v869
  %935 = vst.msk [vmem:[%s3 + $0xf0] sm:$0xff] %vm904, %v870
  %936 = vst.msk [vmem:[%s3 + $0xf8] sm:$0xff] %vm904, %v871
  %937 = vst.msk [vmem:[%s3 + $0x100] sm:$0xff] %vm904, %v872
  %938 = vst.msk [vmem:[%s3 + $0x108] sm:$0xff] %vm904, %v873
  %939 = vst.msk [vmem:[%s3 + $0x110] sm:$0xff] %vm904, %v874
  %940 = vst.msk [vmem:[%s3 + $0x118] sm:$0xff] %vm904, %v875
  %941 = vst.msk [vmem:[%s3 + $0x120] sm:$0xff] %vm904, %v876
  %942 = vst.msk [vmem:[%s3 + $0x128] sm:$0xff] %vm904, %v877
  %943 = vst.msk [vmem:[%s3 + $0x130] sm:$0xff] %vm904, %v878
  %944 = vst.msk [vmem:[%s3 + $0x138] sm:$0xff] %vm904, %v879
  %945 = vst.msk [vmem:[%s3 + $0x140] sm:$0xff] %vm904, %v880
  %946 = vst.msk [vmem:[%s3 + $0x148] sm:$0xff] %vm904, %v881
  %947 = vst.msk [vmem:[%s3 + $0x150] sm:$0xff] %vm904, %v882
  %948 = vst.msk [vmem:[%s3 + $0x158] sm:$0xff] %vm904, %v883
  %949 = vst.msk [vmem:[%s3 + $0x160] sm:$0xff] %vm904, %v884
  %950 = vst.msk [vmem:[%s3 + $0x168] sm:$0xff] %vm904, %v885
  %951 = vst.msk [vmem:[%s3 + $0x170] sm:$0xff] %vm904, %v886
  %952 = vst.msk [vmem:[%s3 + $0x178] sm:$0xff] %vm904, %v887
  %953 = vst.msk [vmem:[%s3 + $0x180] sm:$0xff] %vm904, %v888
  %954 = vst.msk [vmem:[%s3 + $0x188] sm:$0xff] %vm904, %v889
  %955 = vst.msk [vmem:[%s3 + $0x190] sm:$0xff] %vm904, %v890
  %956 = vst.msk [vmem:[%s3 + $0x198] sm:$0xff] %vm904, %v891
  %957 = vst.msk [vmem:[%s3 + $0x1a0] sm:$0xff] %vm904, %v892
  %958 = vst.msk [vmem:[%s3 + $0x1a8] sm:$0xff] %vm904, %v893
  %959 = vst.msk [vmem:[%s3 + $0x1b0] sm:$0xff] %vm904, %v894
  %960 = vst.msk [vmem:[%s3 + $0x1b8] sm:$0xff] %vm904, %v895
  %961 = vst.msk [vmem:[%s3 + $0x1c0] sm:$0xff] %vm904, %v896
  %962 = vst.msk [vmem:[%s3 + $0x1c8] sm:$0xff] %vm904, %v897
  %963 = vst.msk [vmem:[%s3 + $0x1d0] sm:$0xff] %vm904, %v898
  %964 = vst.msk [vmem:[%s3 + $0x1d8] sm:$0xff] %vm904, %v899
  %965 = vst.msk [vmem:[%s3 + $0x1e0] sm:$0xff] %vm904, %v900
  %966 = vst.msk [vmem:[%s3 + $0x1e8] sm:$0xff] %vm904, %v901
  %967 = vst.msk [vmem:[%s3 + $0x1f0] sm:$0xff] %vm904, %v902
  %968 = vst.msk [vmem:[%s3 + $0x1f8] sm:$0xff] %vm904, %v903
  // Predicated region
  $region14: #{_lambda_.7} parent=0 // pred_check
    _
  $region15: #{_lambda_.7} parent=0 // pred_check_branch
    %970 = sbr.rel (0) target = $region17
  $region16: #{_lambda_.7} parent=0 // pred_region
    _
  $region17: #{_lambda_.7} parent=0 // pred_fallthru
    _
  // Predicated region
  $region18: #{_lambda_.7} parent=0 // pred_check
    _
  $region19: #{_lambda_.7} parent=0 // pred_check_branch
    %972 = sbr.rel (0) target = $region21
  $region20: #{_lambda_.7} parent=0 // pred_region
    _
  $region21: #{_lambda_.7} parent=0 // pred_fallthru
    _

// kernel: _lambda_.9
$region0: #{_lambda_.9}
  #allocation0 [shape = 'u32[]', space=smem, size = 0x4, offset = 0x4, fixed_abs, tag = 'smem constant byte address 0x4 - core index']
  #allocation1 [shape = 'u32[144,128]{1,0:T(1,128)}', space=vmem, size = 0x12000, scoped, tag = 'internal scratch']
  %s0 = inlined_call_operand.vmem [shape: bf16[8,120], index: 0, kind: input, shape index: {}]
  %s1 = inlined_call_operand.vmem [shape: bf16[120,84], index: 1, kind: input, shape index: {}]
  %s2 = inlined_call_operand.vmem [shape: f32[1,84], index: 2, kind: input, shape index: {}]
  %s3 = inlined_call_operand.vmem [shape: f32[8,84], index: 3, kind: output, shape index: {}]
  %s4 = sld [smem:[#allocation0]]
  $region22: #{_lambda_.9} parent=0
    _
  %s6 = ssub.s32 1, %s4
  %s7 = scalar_select 0, %s6, %s4
  // Predicated region
  $region2: #{_lambda_.9} parent=0 // pred_check
    _
  $region3: #{_lambda_.9} parent=0 // pred_check_branch
    %9 = sbr.rel (0) target = $region5
  $region4: #{_lambda_.9} parent=0 // pred_region
    _
  $region5: #{_lambda_.9} parent=0 // pred_fallthru
    _
  // Predicated region
  $region6: #{_lambda_.9} parent=0 // pred_check
    _
  $region7: #{_lambda_.9} parent=0 // pred_check_branch
    %11 = sbr.rel (0) target = $region9
  $region8: #{_lambda_.9} parent=0 // pred_region
    _
  $region9: #{_lambda_.9} parent=0 // pred_fallthru
    _
  // Predicated region
  $region10: #{_lambda_.9} parent=0 // pred_check
    _
  $region11: #{_lambda_.9} parent=0 // pred_check_branch
    %13 = sbr.rel (0) target = $region13
  $region12: #{_lambda_.9} parent=0 // pred_region
    _
  $region13: #{_lambda_.9} parent=0 // pred_fallthru
    _
  %v15 = vld [vmem:[%s0] sm:$0xf]
  %v16 = vld [vmem:[%s1] sm:$0xf]
  %v17 = vld [vmem:[%s1 + $0x4] sm:$0xf]
  %v18 = vld [vmem:[%s1 + $0x8] sm:$0xf]
  %v19 = vld [vmem:[%s1 + $0xc] sm:$0xf]
  %v20 = vld [vmem:[%s1 + $0x10] sm:$0xf]
  %v21 = vld [vmem:[%s1 + $0x14] sm:$0xf]
  %v22 = vld [vmem:[%s1 + $0x18] sm:$0xf]
  %v23 = vld [vmem:[%s1 + $0x1c] sm:$0xf]
  %v24 = vld [vmem:[%s1 + $0x20] sm:$0xf]
  %v25 = vld [vmem:[%s1 + $0x24] sm:$0xf]
  %v26 = vld [vmem:[%s1 + $0x28] sm:$0xf]
  %v27 = vld [vmem:[%s1 + $0x2c] sm:$0xf]
  %v28 = vld [vmem:[%s1 + $0x30] sm:$0xf]
  %v29 = vld [vmem:[%s1 + $0x34] sm:$0xf]
  %v30 = vld [vmem:[%s1 + $0x38] sm:$0xf]
  %v31 = vld [vmem:[%s2] sm:$0x1]
  %v33 = vlaneseq
  %v34 = vshrl.u32 %v33, 7
  %v35 = vsub.s32 0, %v34
  %v36 = vrot.slane %v31, %v35
  %v53 = vunpack.c.l.b16 %v16
  %v54 = vunpack.c.l.b16 %v17
  %v55 = vunpack.c.l.b16 %v18
  %v56 = vunpack.c.l.b16 %v19
  %v57 = vunpack.c.l.b16 %v20
  %v58 = vunpack.c.l.b16 %v21
  %v59 = vunpack.c.l.b16 %v22
  %v60 = vunpack.c.l.b16 %v23
  %v61 = vunpack.c.l.b16 %v24
  %v62 = vunpack.c.l.b16 %v25
  %v63 = vunpack.c.l.b16 %v26
  %v64 = vunpack.c.l.b16 %v27
  %v65 = vunpack.c.l.b16 %v28
  %v66 = vunpack.c.l.b16 %v29
  %v67 = vunpack.c.l.b16 %v30
  %v68 = vpack.c.b16 %v54, %v53
  %v69 = vpack.c.b16 %v56, %v55
  %v70 = vpack.c.b16 %v58, %v57
  %v71 = vpack.c.b16 %v60, %v59
  %v72 = vpack.c.b16 %v62, %v61
  %v73 = vpack.c.b16 %v64, %v63
  %v74 = vpack.c.b16 %v66, %v65
  %v75 = vpack.c.b16 %v67, %v67
  %vm83 = vcmask 982016
  %v85 = vsel %vm83, %v15, 0
  %vm87 = vcmask 1043456
  %v89 = vsel %vm87, %v75, 0
  %91 = vmatprep.subr.bf16.mxu0 0
  %92 = vmatpush1.bf16.msra.mxu0 %v68
  %93 = vmatprep.subr.bf16.mxu0 0
  %94 = vmatpush1.bf16.msra.mxu0 %v69
  %95 = vmatprep.subr.bf16.mxu0 0
  %96 = vmatpush1.bf16.msra.mxu0 %v70
  %97 = vmatprep.subr.bf16.mxu0 0
  %98 = vmatpush1.bf16.msra.mxu0 %v71
  %99 = vmatprep.subr.bf16.mxu0 0
  %100 = vmatpush1.bf16.msra.mxu0 %v72
  %101 = vmatprep.subr.bf16.mxu0 0
  %102 = vmatpush1.bf16.msra.mxu0 %v73
  %103 = vmatprep.subr.bf16.mxu0 0
  %104 = vmatpush1.bf16.msra.mxu0 %v74
  %105 = vmatprep.subr.bf16.mxu0 0
  %106 = vmatpush1.bf16.msra.mxu0 %v89
  %107 = vmatprep.subr.bf16.mxu0 0
  %108 = vmatpush1.bf16.msra.mxu0 0
  %109 = vmatprep.subr.bf16.mxu0 0
  %110 = vmatpush1.bf16.msra.mxu0 0
  %111 = vmatprep.subr.bf16.mxu0 0
  %112 = vmatpush1.bf16.msra.mxu0 0
  %113 = vmatprep.subr.bf16.mxu0 0
  %114 = vmatpush1.bf16.msra.mxu0 0
  %115 = vmatprep.subr.bf16.mxu0 0
  %116 = vmatpush1.bf16.msra.mxu0 0
  %117 = vmatprep.subr.bf16.mxu0 0
  %118 = vmatpush1.bf16.msra.mxu0 0
  %119 = vmatprep.subr.bf16.mxu0 0
  %120 = vmatpush1.bf16.msra.mxu0 0
  %121 = vmatprep.subr.bf16.mxu0 0
  %122 = vmatpush1.bf16.msra.mxu0 0
  %123 = vmatprep.mubr.bf16.mxu0 0
  %124 = vmatmul.mubr.bf16.gmra.mrb[0].mxu0 %v85
  %v125 = vpop.f32.mrb[0].mxu0
  %v126 = vadd.f32 %v36, %v125
  %v127 = vpop.f32.mrb[0].mxu0
  %v128 = vpop.f32.mrb[0].mxu0
  %v129 = vpop.f32.mrb[0].mxu0
  %130 = vdwg.mxu0
  %v131 = vmax.f32 %v126, 0.0
  %vm132 = vcmask 687104
  %133 = vst.msk [vmem:[%s3] sm:$0xff] %vm132, %v131
  // Predicated region
  $region14: #{_lambda_.9} parent=0 // pred_check
    _
  $region15: #{_lambda_.9} parent=0 // pred_check_branch
    %135 = sbr.rel (0) target = $region17
  $region16: #{_lambda_.9} parent=0 // pred_region
    _
  $region17: #{_lambda_.9} parent=0 // pred_fallthru
    _
  // Predicated region
  $region18: #{_lambda_.9} parent=0 // pred_check
    _
  $region19: #{_lambda_.9} parent=0 // pred_check_branch
    %137 = sbr.rel (0) target = $region21
  $region20: #{_lambda_.9} parent=0 // pred_region
    _
  $region21: #{_lambda_.9} parent=0 // pred_fallthru
    _

// kernel: _lambda_.8
$region0: #{_lambda_.8}
  #allocation0 [shape = 'u32[]', space=smem, size = 0x4, offset = 0x4, fixed_abs, tag = 'smem constant byte address 0x4 - core index']
  #allocation1 [shape = 'u32[144,128]{1,0:T(1,128)}', space=vmem, size = 0x12000, scoped, tag = 'internal scratch']
  %s0 = inlined_call_operand.vmem [shape: bf16[8,256], index: 0, kind: input, shape index: {}]
  %s1 = inlined_call_operand.vmem [shape: bf16[256,120], index: 1, kind: input, shape index: {}]
  %s2 = inlined_call_operand.vmem [shape: f32[1,120], index: 2, kind: input, shape index: {}]
  %s3 = inlined_call_operand.vmem [shape: f32[8,120], index: 3, kind: output, shape index: {}]
  %s4 = sld [smem:[#allocation0]]
  $region22: #{_lambda_.8} parent=0
    _
  %s6 = ssub.s32 1, %s4
  %s7 = scalar_select 0, %s6, %s4
  // Predicated region
  $region2: #{_lambda_.8} parent=0 // pred_check
    _
  $region3: #{_lambda_.8} parent=0 // pred_check_branch
    %9 = sbr.rel (0) target = $region5
  $region4: #{_lambda_.8} parent=0 // pred_region
    _
  $region5: #{_lambda_.8} parent=0 // pred_fallthru
    _
  // Predicated region
  $region6: #{_lambda_.8} parent=0 // pred_check
    _
  $region7: #{_lambda_.8} parent=0 // pred_check_branch
    %11 = sbr.rel (0) target = $region9
  $region8: #{_lambda_.8} parent=0 // pred_region
    _
  $region9: #{_lambda_.8} parent=0 // pred_fallthru
    _
  // Predicated region
  $region10: #{_lambda_.8} parent=0 // pred_check
    _
  $region11: #{_lambda_.8} parent=0 // pred_check_branch
    %13 = sbr.rel (0) target = $region13
  $region12: #{_lambda_.8} parent=0 // pred_region
    _
  $region13: #{_lambda_.8} parent=0 // pred_fallthru
    _
  %v15 = vld [vmem:[%s0] sm:$0xff]
  %v16 = vld [vmem:[%s1] sm:$0xf]
  %v17 = vld [vmem:[%s1 + $0x4] sm:$0xf]
  %v18 = vld [vmem:[%s1 + $0x8] sm:$0xf]
  %v19 = vld [vmem:[%s1 + $0xc] sm:$0xf]
  %v20 = vld [vmem:[%s1 + $0x10] sm:$0xf]
  %v21 = vld [vmem:[%s1 + $0x14] sm:$0xf]
  %v22 = vld [vmem:[%s1 + $0x18] sm:$0xf]
  %v23 = vld [vmem:[%s1 + $0x1c] sm:$0xf]
  %v24 = vld [vmem:[%s1 + $0x20] sm:$0xf]
  %v25 = vld [vmem:[%s1 + $0x24] sm:$0xf]
  %v26 = vld [vmem:[%s1 + $0x28] sm:$0xf]
  %v27 = vld [vmem:[%s1 + $0x2c] sm:$0xf]
  %v28 = vld [vmem:[%s1 + $0x30] sm:$0xf]
  %v29 = vld [vmem:[%s1 + $0x34] sm:$0xf]
  %v30 = vld [vmem:[%s1 + $0x38] sm:$0xf]
  %v31 = vld [vmem:[%s1 + $0x3c] sm:$0xf]
  %v32 = vld [vmem:[%s1 + $0x40] sm:$0xf]
  %v33 = vld [vmem:[%s1 + $0x44] sm:$0xf]
  %v34 = vld [vmem:[%s1 + $0x48] sm:$0xf]
  %v35 = vld [vmem:[%s1 + $0x4c] sm:$0xf]
  %v36 = vld [vmem:[%s1 + $0x50] sm:$0xf]
  %v37 = vld [vmem:[%s1 + $0x54] sm:$0xf]
  %v38 = vld [vmem:[%s1 + $0x58] sm:$0xf]
  %v39 = vld [vmem:[%s1 + $0x5c] sm:$0xf]
  %v40 = vld [vmem:[%s1 + $0x60] sm:$0xf]
  %v41 = vld [vmem:[%s1 + $0x64] sm:$0xf]
  %v42 = vld [vmem:[%s1 + $0x68] sm:$0xf]
  %v43 = vld [vmem:[%s1 + $0x6c] sm:$0xf]
  %v44 = vld [vmem:[%s1 + $0x70] sm:$0xf]
  %v45 = vld [vmem:[%s1 + $0x74] sm:$0xf]
  %v46 = vld [vmem:[%s1 + $0x78] sm:$0xf]
  %v47 = vld [vmem:[%s1 + $0x7c] sm:$0xf]
  %v48 = vld [vmem:[%s2] sm:$0x1]
  %v50 = vlaneseq
  %v51 = vshrl.u32 %v50, 7
  %v52 = vsub.s32 0, %v51
  %v53 = vrot.slane %v48, %v52
  %v56 = vunpack.c.l.b16 %v15
  %v57 = vunpack.c.h.b16 %v15
  %v58 = vpack.c.b16 %v56, %v56
  %v59 = vpack.c.b16 %v57, %v57
  %v94 = vunpack.c.l.b16 %v16
  %v95 = vunpack.c.l.b16 %v17
  %v96 = vunpack.c.l.b16 %v18
  %v97 = vunpack.c.l.b16 %v19
  %v98 = vunpack.c.l.b16 %v20
  %v99 = vunpack.c.l.b16 %v21
  %v100 = vunpack.c.l.b16 %v22
  %v101 = vunpack.c.l.b16 %v23
  %v102 = vunpack.c.l.b16 %v24
  %v103 = vunpack.c.l.b16 %v25
  %v104 = vunpack.c.l.b16 %v26
  %v105 = vunpack.c.l.b16 %v27
  %v106 = vunpack.c.l.b16 %v28
  %v107 = vunpack.c.l.b16 %v29
  %v108 = vunpack.c.l.b16 %v30
  %v109 = vunpack.c.l.b16 %v31
  %v110 = vunpack.c.l.b16 %v32
  %v111 = vunpack.c.l.b16 %v33
  %v112 = vunpack.c.l.b16 %v34
  %v113 = vunpack.c.l.b16 %v35
  %v114 = vunpack.c.l.b16 %v36
  %v115 = vunpack.c.l.b16 %v37
  %v116 = vunpack.c.l.b16 %v38
  %v117 = vunpack.c.l.b16 %v39
  %v118 = vunpack.c.l.b16 %v40
  %v119 = vunpack.c.l.b16 %v41
  %v120 = vunpack.c.l.b16 %v42
  %v121 = vunpack.c.l.b16 %v43
  %v122 = vunpack.c.l.b16 %v44
  %v123 = vunpack.c.l.b16 %v45
  %v124 = vunpack.c.l.b16 %v46
  %v125 = vunpack.c.l.b16 %v47
  %v126 = vpack.c.b16 %v95, %v94
  %v127 = vpack.c.b16 %v97, %v96
  %v128 = vpack.c.b16 %v99, %v98
  %v129 = vpack.c.b16 %v101, %v100
  %v130 = vpack.c.b16 %v103, %v102
  %v131 = vpack.c.b16 %v105, %v104
  %v132 = vpack.c.b16 %v107, %v106
  %v133 = vpack.c.b16 %v109, %v108
  %v134 = vpack.c.b16 %v111, %v110
  %v135 = vpack.c.b16 %v113, %v112
  %v136 = vpack.c.b16 %v115, %v114
  %v137 = vpack.c.b16 %v117, %v116
  %v138 = vpack.c.b16 %v119, %v118
  %v139 = vpack.c.b16 %v121, %v120
  %v140 = vpack.c.b16 %v123, %v122
  %v141 = vpack.c.b16 %v125, %v124
  %158 = vmatprep.subr.bf16.mxu0 0
  %159 = vmatpush1.bf16.msra.mxu0 %v126
  %160 = vmatprep.subr.bf16.mxu0 0
  %161 = vmatpush1.bf16.msra.mxu0 %v127
  %162 = vmatprep.subr.bf16.mxu0 0
  %163 = vmatpush1.bf16.msra.mxu0 %v128
  %164 = vmatprep.subr.bf16.mxu0 0
  %165 = vmatpush1.bf16.msra.mxu0 %v129
  %166 = vmatprep.subr.bf16.mxu0 0
  %167 = vmatpush1.bf16.msra.mxu0 %v130
  %168 = vmatprep.subr.bf16.mxu0 0
  %169 = vmatpush1.bf16.msra.mxu0 %v131
  %170 = vmatprep.subr.bf16.mxu0 0
  %171 = vmatpush1.bf16.msra.mxu0 %v132
  %172 = vmatprep.subr.bf16.mxu0 0
  %173 = vmatpush1.bf16.msra.mxu0 %v133
  %174 = vmatprep.subr.bf16.mxu0 0
  %175 = vmatpush1.bf16.msra.mxu0 %v134
  %176 = vmatprep.subr.bf16.mxu0 0
  %177 = vmatpush1.bf16.msra.mxu0 %v135
  %178 = vmatprep.subr.bf16.mxu0 0
  %179 = vmatpush1.bf16.msra.mxu0 %v136
  %180 = vmatprep.subr.bf16.mxu0 0
  %181 = vmatpush1.bf16.msra.mxu0 %v137
  %182 = vmatprep.subr.bf16.mxu0 0
  %183 = vmatpush1.bf16.msra.mxu0 %v138
  %184 = vmatprep.subr.bf16.mxu0 0
  %185 = vmatpush1.bf16.msra.mxu0 %v139
  %186 = vmatprep.subr.bf16.mxu0 0
  %187 = vmatpush1.bf16.msra.mxu0 %v140
  %188 = vmatprep.subr.bf16.mxu0 0
  %189 = vmatpush1.bf16.msra.mxu0 %v141
  %190 = vmatprep.mubr.bf16.mxu0 %v59
  %191 = vmatmul.mubr.bf16.gmra.mrb[0].mxu0 %v58
  %v192 = vpop.f32.mrb[0].mxu0
  %v193 = vadd.f32 %v53, %v192
  %v194 = vpop.f32.mrb[0].mxu0
  %v195 = vpop.f32.mrb[0].mxu0
  %v196 = vpop.f32.mrb[0].mxu0
  %197 = vdwg.mxu0
  %v198 = vmax.f32 %v193, 0.0
  %vm199 = vcmask 982016
  %200 = vst.msk [vmem:[%s3] sm:$0xff] %vm199, %v198
  // Predicated region
  $region14: #{_lambda_.8} parent=0 // pred_check
    _
  $region15: #{_lambda_.8} parent=0 // pred_check_branch
    %202 = sbr.rel (0) target = $region17
  $region16: #{_lambda_.8} parent=0 // pred_region
    _
  $region17: #{_lambda_.8} parent=0 // pred_fallthru
    _
  // Predicated region
  $region18: #{_lambda_.8} parent=0 // pred_check
    _
  $region19: #{_lambda_.8} parent=0 // pred_check_branch
    %204 = sbr.rel (0) target = $region21
  $region20: #{_lambda_.8} parent=0 // pred_region
    _
  $region21: #{_lambda_.8} parent=0 // pred_fallthru
    _

// kernel: _lambda_.10
$region0: #{_lambda_.10}
  #allocation0 [shape = 'u32[]', space=smem, size = 0x4, offset = 0x4, fixed_abs, tag = 'smem constant byte address 0x4 - core index']
  #allocation1 [shape = 'u32[144,128]{1,0:T(1,128)}', space=vmem, size = 0x12000, scoped, tag = 'internal scratch']
  %s0 = inlined_call_operand.vmem [shape: bf16[8,84], index: 0, kind: input, shape index: {}]
  %s1 = inlined_call_operand.vmem [shape: bf16[84,10], index: 1, kind: input, shape index: {}]
  %s2 = inlined_call_operand.vmem [shape: f32[1,10], index: 2, kind: input, shape index: {}]
  %s3 = inlined_call_operand.vmem [shape: f32[8,10], index: 3, kind: output, shape index: {}]
  %s4 = sld [smem:[#allocation0]]
  $region22: #{_lambda_.10} parent=0
    _
  %s6 = ssub.s32 1, %s4
  %s7 = scalar_select 0, %s6, %s4
  // Predicated region
  $region2: #{_lambda_.10} parent=0 // pred_check
    _
  $region3: #{_lambda_.10} parent=0 // pred_check_branch
    %9 = sbr.rel (0) target = $region5
  $region4: #{_lambda_.10} parent=0 // pred_region
    _
  $region5: #{_lambda_.10} parent=0 // pred_fallthru
    _
  // Predicated region
  $region6: #{_lambda_.10} parent=0 // pred_check
    _
  $region7: #{_lambda_.10} parent=0 // pred_check_branch
    %11 = sbr.rel (0) target = $region9
  $region8: #{_lambda_.10} parent=0 // pred_region
    _
  $region9: #{_lambda_.10} parent=0 // pred_fallthru
    _
  // Predicated region
  $region10: #{_lambda_.10} parent=0 // pred_check
    _
  $region11: #{_lambda_.10} parent=0 // pred_check_branch
    %13 = sbr.rel (0) target = $region13
  $region12: #{_lambda_.10} parent=0 // pred_region
    _
  $region13: #{_lambda_.10} parent=0 // pred_fallthru
    _
  %v15 = vld [vmem:[%s0] sm:$0xf]
  %v16 = vld [vmem:[%s1] sm:$0xf]
  %v17 = vld [vmem:[%s1 + $0x4] sm:$0xf]
  %v18 = vld [vmem:[%s1 + $0x8] sm:$0xf]
  %v19 = vld [vmem:[%s1 + $0xc] sm:$0xf]
  %v20 = vld [vmem:[%s1 + $0x10] sm:$0xf]
  %v21 = vld [vmem:[%s1 + $0x14] sm:$0xf]
  %v22 = vld [vmem:[%s1 + $0x18] sm:$0xf]
  %v23 = vld [vmem:[%s1 + $0x1c] sm:$0xf]
  %v24 = vld [vmem:[%s1 + $0x20] sm:$0xf]
  %v25 = vld [vmem:[%s1 + $0x24] sm:$0xf]
  %v26 = vld [vmem:[%s1 + $0x28] sm:$0x3]
  %v27 = vld [vmem:[%s2] sm:$0x1]
  %v29 = vlaneseq
  %v30 = vshrl.u32 %v29, 7
  %v31 = vsub.s32 0, %v30
  %v32 = vrot.slane %v27, %v31
  %v45 = vunpack.c.l.b16 %v16
  %v46 = vunpack.c.l.b16 %v17
  %v47 = vunpack.c.l.b16 %v18
  %v48 = vunpack.c.l.b16 %v19
  %v49 = vunpack.c.l.b16 %v20
  %v50 = vunpack.c.l.b16 %v21
  %v51 = vunpack.c.l.b16 %v22
  %v52 = vunpack.c.l.b16 %v23
  %v53 = vunpack.c.l.b16 %v24
  %v54 = vunpack.c.l.b16 %v25
  %v55 = vunpack.c.l.b16 %v26
  %v56 = vpack.c.b16 %v46, %v45
  %v57 = vpack.c.b16 %v48, %v47
  %v58 = vpack.c.b16 %v50, %v49
  %v59 = vpack.c.b16 %v52, %v51
  %v60 = vpack.c.b16 %v54, %v53
  %v61 = vpack.c.b16 %v55, %v55
  %vm67 = vcmask 687104
  %v69 = vsel %vm67, %v15, 0
  %vm71 = vcmask 1041408
  %v73 = vsel %vm71, %v61, 0
  %75 = vmatprep.subr.bf16.mxu0 0
  %76 = vmatpush1.bf16.msra.mxu0 %v56
  %77 = vmatprep.subr.bf16.mxu0 0
  %78 = vmatpush1.bf16.msra.mxu0 %v57
  %79 = vmatprep.subr.bf16.mxu0 0
  %80 = vmatpush1.bf16.msra.mxu0 %v58
  %81 = vmatprep.subr.bf16.mxu0 0
  %82 = vmatpush1.bf16.msra.mxu0 %v59
  %83 = vmatprep.subr.bf16.mxu0 0
  %84 = vmatpush1.bf16.msra.mxu0 %v60
  %85 = vmatprep.subr.bf16.mxu0 0
  %86 = vmatpush1.bf16.msra.mxu0 %v73
  %87 = vmatprep.subr.bf16.mxu0 0
  %88 = vmatpush1.bf16.msra.mxu0 0
  %89 = vmatprep.subr.bf16.mxu0 0
  %90 = vmatpush1.bf16.msra.mxu0 0
  %91 = vmatprep.subr.bf16.mxu0 0
  %92 = vmatpush1.bf16.msra.mxu0 0
  %93 = vmatprep.subr.bf16.mxu0 0
  %94 = vmatpush1.bf16.msra.mxu0 0
  %95 = vmatprep.subr.bf16.mxu0 0
  %96 = vmatpush1.bf16.msra.mxu0 0
  %97 = vmatprep.subr.bf16.mxu0 0
  %98 = vmatpush1.bf16.msra.mxu0 0
  %99 = vmatprep.subr.bf16.mxu0 0
  %100 = vmatpush1.bf16.msra.mxu0 0
  %101 = vmatprep.subr.bf16.mxu0 0
  %102 = vmatpush1.bf16.msra.mxu0 0
  %103 = vmatprep.subr.bf16.mxu0 0
  %104 = vmatpush1.bf16.msra.mxu0 0
  %105 = vmatprep.subr.bf16.mxu0 0
  %106 = vmatpush1.bf16.msra.mxu0 0
  %107 = vmatprep.mubr.bf16.mxu0 0
  %108 = vmatmul.mubr.bf16.gmra.mrb[0].mxu0 %v69
  %v109 = vpop.f32.mrb[0].mxu0
  %v110 = vadd.f32 %v32, %v109
  %v111 = vpop.f32.mrb[0].mxu0
  %v112 = vpop.f32.mrb[0].mxu0
  %v113 = vpop.f32.mrb[0].mxu0
  %114 = vdwg.mxu0
  %vm115 = vcmask 80896
  %v116 = vsel %vm115, %v110, -inf
  %117 = vmax.xlane.f32.xlu0 %v116
  %v118 = vpop.xlane.xlu0 %117
  %v119 = vsub.f32 %v110, %v118
  %v120 = vmul.f32 %v119, 1.442695
  %v121 = vpow.pop %v120
  %v122 = vsel %vm115, %v121, 0.0
  %123 = vadd.xlane.f32.xlu0 %v122
  %v124 = vpop.xlane.xlu0 %123
  %v125 = vrcp.pop %v124
  %v126 = vmul.f32 %v121, %v125
  %127 = vst.msk [vmem:[%s3] sm:$0xff] %vm115, %v126
  // Predicated region
  $region14: #{_lambda_.10} parent=0 // pred_check
    _
  $region15: #{_lambda_.10} parent=0 // pred_check_branch
    %129 = sbr.rel (0) target = $region17
  $region16: #{_lambda_.10} parent=0 // pred_region
    _
  $region17: #{_lambda_.10} parent=0 // pred_fallthru
    _
  // Predicated region
  $region18: #{_lambda_.10} parent=0 // pred_check
    _
  $region19: #{_lambda_.10} parent=0 // pred_check_branch
    %131 = sbr.rel (0) target = $region21
  $region20: #{_lambda_.10} parent=0 // pred_region
    _
  $region21: #{_lambda_.10} parent=0 // pred_fallthru
    _

// kernel: _lambda_.11
$region0: #{_lambda_.11}
  #allocation0 [shape = 'u32[]', space=smem, size = 0x4, offset = 0x4, fixed_abs, tag = 'smem constant byte address 0x4 - core index']
  #allocation1 [shape = 'u32[144,128]{1,0:T(1,128)}', space=vmem, size = 0x12000, scoped, tag = 'internal scratch']
  %s0 = inlined_call_operand.vmem [shape: f32[2,10], index: 0, kind: input, shape index: {}]
  %s1 = inlined_call_operand.vmem [shape: f32[2,10], index: 1, kind: input, shape index: {}]
  %s2 = inlined_call_operand.vmem [shape: f32[2,10], index: 2, kind: input, shape index: {}]
  %s3 = inlined_call_operand.vmem [shape: f32[2,10], index: 3, kind: input, shape index: {}]
  %s4 = inlined_call_operand.vmem [shape: f32[10,100], index: 4, kind: input, shape index: {}]
  %s5 = inlined_call_operand.vmem [shape: f32[10,100], index: 5, kind: input, shape index: {}]
  %s6 = inlined_call_operand.vmem [shape: f32[100,19], index: 6, kind: input, shape index: {}]
  %s7 = inlined_call_operand.vmem [shape: f32[19,10], index: 7, kind: input, shape index: {}]
  %s8 = inlined_call_operand.vmem [shape: f32[19,10], index: 8, kind: input, shape index: {}]
  %s9 = inlined_call_operand.vmem [shape: f32[19,2], index: 9, kind: input, shape index: {}]
  %s10 = inlined_call_operand.vmem [shape: f32[19,2], index: 10, kind: input, shape index: {}]
  %s11 = inlined_call_operand.hbm [shape: f32[2,10], index: 11, kind: output, shape index: {0}]
  %s12 = inlined_call_operand.hbm [shape: f32[2,10], index: 12, kind: output, shape index: {1}]
  %s13 = inlined_call_operand.hbm [shape: f32[2,2], index: 13, kind: output, shape index: {2}]
  %14 = xla_tuple %s11, %s12, %s13
  %s15 = sld [smem:[#allocation0]]
  $region70: #{_lambda_.11} parent=0
    _
  %s17 = ssub.s32 1, %s15
  %s18 = scalar_select 0, %s17, %s15
  $region1: #{_lambda_.11} parent=0
    #allocation2 [shape = 'u8[1024]{0}', space=vmem, size = 0x400, scoped, tag = 'output window, operand 0, single buffered']
    #allocation3 [shape = 's32[1]{0}', space=sflag, size = 0x4, scoped, tag = 'scoped memory for _lambda_.11']
    #allocation4 [shape = 'u8[1024]{0}', space=vmem, size = 0x400, scoped, tag = 'output window, operand 1, single buffered']
    #allocation5 [shape = 's32[1]{0}', space=sflag, size = 0x4, scoped, tag = 'scoped memory for _lambda_.11']
    #allocation6 [shape = 'u8[1024]{0}', space=vmem, size = 0x400, scoped, tag = 'output window, operand 2, single buffered']
    %19 = vsyncpa [#allocation3], 0
    %20 = vsyncpa [#allocation5], 0
    // Predicated region
    $region2: #{_lambda_.11} parent=1 // pred_check
      _
    $region3: #{_lambda_.11} parent=1 // pred_check_branch
      %22 = sbr.rel (0) target = $region5
    $region4: #{_lambda_.11} parent=1 // pred_region
      _
    $region5: #{_lambda_.11} parent=1 // pred_fallthru
      _
    // Predicated region
    $region6: #{_lambda_.11} parent=1 // pred_check
      _
    $region7: #{_lambda_.11} parent=1 // pred_check_branch
      %24 = sbr.rel (0) target = $region9
    $region8: #{_lambda_.11} parent=1 // pred_region
      _
    $region9: #{_lambda_.11} parent=1 // pred_fallthru
      _
    // Predicated region
    $region10: #{_lambda_.11} parent=1 // pred_check
      _
    $region11: #{_lambda_.11} parent=1 // pred_check_branch
      %26 = sbr.rel (0) target = $region13
    $region12: #{_lambda_.11} parent=1 // pred_region
      _
    $region13: #{_lambda_.11} parent=1 // pred_fallthru
      _
    // Predicated region
    $region14: #{_lambda_.11} parent=1 // pred_check
      _
    $region15: #{_lambda_.11} parent=1 // pred_check_branch
      %28 = sbr.rel (0) target = $region17
    $region16: #{_lambda_.11} parent=1 // pred_region
      _
    $region17: #{_lambda_.11} parent=1 // pred_fallthru
      _
    // Predicated region
    $region18: #{_lambda_.11} parent=1 // pred_check
      _
    $region19: #{_lambda_.11} parent=1 // pred_check_branch
      %30 = sbr.rel (0) target = $region21
    $region20: #{_lambda_.11} parent=1 // pred_region
      _
    $region21: #{_lambda_.11} parent=1 // pred_fallthru
      _
    // Predicated region
    $region22: #{_lambda_.11} parent=1 // pred_check
      _
    $region23: #{_lambda_.11} parent=1 // pred_check_branch
      %32 = sbr.rel (0) target = $region25
    $region24: #{_lambda_.11} parent=1 // pred_region
      _
    $region25: #{_lambda_.11} parent=1 // pred_fallthru
      _
    // Predicated region
    $region26: #{_lambda_.11} parent=1 // pred_check
      _
    $region27: #{_lambda_.11} parent=1 // pred_check_branch
      %34 = sbr.rel (0) target = $region29
    $region28: #{_lambda_.11} parent=1 // pred_region
      _
    $region29: #{_lambda_.11} parent=1 // pred_fallthru
      _
    // Predicated region
    $region30: #{_lambda_.11} parent=1 // pred_check
      _
    $region31: #{_lambda_.11} parent=1 // pred_check_branch
      %36 = sbr.rel (0) target = $region33
    $region32: #{_lambda_.11} parent=1 // pred_region
      _
    $region33: #{_lambda_.11} parent=1 // pred_fallthru
      _
    // Predicated region
    $region34: #{_lambda_.11} parent=1 // pred_check
      _
    $region35: #{_lambda_.11} parent=1 // pred_check_branch
      %38 = sbr.rel (0) target = $region37
    $region36: #{_lambda_.11} parent=1 // pred_region
      _
    $region37: #{_lambda_.11} parent=1 // pred_fallthru
      _
    // Predicated region
    $region38: #{_lambda_.11} parent=1 // pred_check
      _
    $region39: #{_lambda_.11} parent=1 // pred_check_branch
      %40 = sbr.rel (0) target = $region41
    $region40: #{_lambda_.11} parent=1 // pred_region
      _
    $region41: #{_lambda_.11} parent=1 // pred_fallthru
      _
    // Predicated region
    $region42: #{_lambda_.11} parent=1 // pred_check
      _
    $region43: #{_lambda_.11} parent=1 // pred_check_branch
      %42 = sbr.rel (0) target = $region45
    $region44: #{_lambda_.11} parent=1 // pred_region
      _
    $region45: #{_lambda_.11} parent=1 // pred_fallthru
      _
    %v43 = vld [vmem:[%s4] sm:$0xff]
    %v44 = vld [vmem:[%s4 + $0x8] sm:$0x3]
    %v45 = vld [vmem:[%s5] sm:$0xff]
    %v46 = vld [vmem:[%s5 + $0x8] sm:$0x3]
    %v47 = vld [vmem:[%s6] sm:$0xff]
    %v48 = vld [vmem:[%s6 + $0x8] sm:$0xff]
    %v49 = vld [vmem:[%s6 + $0x10] sm:$0xff]
    %v50 = vld [vmem:[%s6 + $0x18] sm:$0xff]
    %v51 = vld [vmem:[%s6 + $0x20] sm:$0xff]
    %v52 = vld [vmem:[%s6 + $0x28] sm:$0xff]
    %v53 = vld [vmem:[%s6 + $0x30] sm:$0xff]
    %v54 = vld [vmem:[%s6 + $0x38] sm:$0xff]
    %v55 = vld [vmem:[%s6 + $0x40] sm:$0xff]
    %v56 = vld [vmem:[%s6 + $0x48] sm:$0xff]
    %v57 = vld [vmem:[%s6 + $0x50] sm:$0xff]
    %v58 = vld [vmem:[%s6 + $0x58] sm:$0xff]
    %v59 = vld [vmem:[%s6 + $0x60] sm:$0xf]
    %v60 = vld [vmem:[%s7] sm:$0xff]
    %v61 = vld [vmem:[%s7 + $0x8] sm:$0xff]
    %v62 = vld [vmem:[%s7 + $0x10] sm:$0x7]
    %v63 = vld [vmem:[%s8] sm:$0xff]
    %v64 = vld [vmem:[%s8 + $0x8] sm:$0xff]
    %v65 = vld [vmem:[%s8 + $0x10] sm:$0x7]
    %v66 = vld [vmem:[%s9] sm:$0xff]
    %v67 = vld [vmem:[%s9 + $0x8] sm:$0xff]
    %v68 = vld [vmem:[%s9 + $0x10] sm:$0x7]
    %v69 = vld [vmem:[%s10] sm:$0xff]
    %v70 = vld [vmem:[%s10 + $0x8] sm:$0xff]
    %v71 = vld [vmem:[%s10 + $0x10] sm:$0x7]
    %v72 = vld [vmem:[%s1] sm:$0x3]
    %vm73 = vcmask 80896
    %v75 = vsel %vm73, %v72, 0
    %vm77 = vcmask 1041408
    %v79 = vsel %vm77, %v44, 0
    %81 = vmatprep.subr.mxu0 0.0
    %82 = vmatpush1.msra.mxu0 %v43
    %83 = vmatprep.subr.mxu0 0.0
    %84 = vmatpush1.msra.mxu0 %v79
    %85 = vmatprep.subr.mxu0 0.0
    %86 = vmatpush1.msra.mxu0 0.0
    %87 = vmatprep.subr.mxu0 0.0
    %88 = vmatpush1.msra.mxu0 0.0
    %89 = vmatprep.subr.mxu0 0.0
    %90 = vmatpush1.msra.mxu0 0.0
    %91 = vmatprep.subr.mxu0 0.0
    %92 = vmatpush1.msra.mxu0 0.0
    %93 = vmatprep.subr.mxu0 0.0
    %94 = vmatpush1.msra.mxu0 0.0
    %95 = vmatprep.subr.mxu0 0.0
    %96 = vmatpush1.msra.mxu0 0.0
    %97 = vmatprep.subr.mxu0 0.0
    %98 = vmatpush1.msra.mxu0 0.0
    %99 = vmatprep.subr.mxu0 0.0
    %100 = vmatpush1.msra.mxu0 0.0
    %101 = vmatprep.subr.mxu0 0.0
    %102 = vmatpush1.msra.mxu0 0.0
    %103 = vmatprep.subr.mxu0 0.0
    %104 = vmatpush1.msra.mxu0 0.0
    %105 = vmatprep.subr.mxu0 0.0
    %106 = vmatpush1.msra.mxu0 0.0
    %107 = vmatprep.subr.mxu0 0.0
    %108 = vmatpush1.msra.mxu0 0.0
    %109 = vmatprep.subr.mxu0 0.0
    %110 = vmatpush1.msra.mxu0 0.0
    %111 = vmatprep.subr.mxu0 0.0
    %112 = vmatpush1.msra.mxu0 0.0
    %113 = vmatprep.subr.mxu0 0.0
    %114 = vmatpush1.msra.mxu0 0.0
    %115 = vmatprep.subr.mxu0 0.0
    %116 = vmatpush1.msra.mxu0 0.0
    %117 = vmatprep.subr.mxu0 0.0
    %118 = vmatpush1.msra.mxu0 0.0
    %119 = vmatprep.subr.mxu0 0.0
    %120 = vmatpush1.msra.mxu0 0.0
    %121 = vmatprep.subr.mxu0 0.0
    %122 = vmatpush1.msra.mxu0 0.0
    %123 = vmatprep.subr.mxu0 0.0
    %124 = vmatpush1.msra.mxu0 0.0
    %125 = vmatprep.subr.mxu0 0.0
    %126 = vmatpush1.msra.mxu0 0.0
    %127 = vmatprep.subr.mxu0 0.0
    %128 = vmatpush1.msra.mxu0 0.0
    %129 = vmatprep.subr.mxu0 0.0
    %130 = vmatpush1.msra.mxu0 0.0
    %131 = vmatprep.subr.mxu0 0.0
    %132 = vmatpush1.msra.mxu0 0.0
    %133 = vmatprep.subr.mxu0 0.0
    %134 = vmatpush1.msra.mxu0 0.0
    %135 = vmatprep.subr.mxu0 0.0
    %136 = vmatpush1.msra.mxu0 0.0
    %137 = vmatprep.subr.mxu0 0.0
    %138 = vmatpush1.msra.mxu0 0.0
    %139 = vmatprep.subr.mxu0 0.0
    %140 = vmatpush1.msra.mxu0 0.0
    %141 = vmatprep.subr.mxu0 0.0
    %142 = vmatpush1.msra.mxu0 0.0
    %143 = vmatprep.subr.mxu0 0.0
    %144 = vmatpush1.msra.mxu0 0.0
    %145 = vmatprep.mubr.f32.mxu0 0.0
    %146 = vmatmul.mubr.f32.gmra.mrb[0].mxu0 %v75
    %v147 = vpop.f32.mrb[0].mxu0
    %v148 = vadd.f32 0.0, %v147
    %v149 = vpop.f32.mrb[0].mxu0
    %150 = vdwg.mxu0
    %v151 = vld [vmem:[%s3] sm:$0x3]
    %v153 = vsel %vm73, %v151, 0
    %v156 = vsel %vm77, %v46, 0
    %158 = vmatprep.subr.mxu0 0.0
    %159 = vmatpush1.msra.mxu0 %v45
    %160 = vmatprep.subr.mxu0 0.0
    %161 = vmatpush1.msra.mxu0 %v156
    %162 = vmatprep.subr.mxu0 0.0
    %163 = vmatpush1.msra.mxu0 0.0
    %164 = vmatprep.subr.mxu0 0.0
    %165 = vmatpush1.msra.mxu0 0.0
    %166 = vmatprep.subr.mxu0 0.0
    %167 = vmatpush1.msra.mxu0 0.0
    %168 = vmatprep.subr.mxu0 0.0
    %169 = vmatpush1.msra.mxu0 0.0
    %170 = vmatprep.subr.mxu0 0.0
    %171 = vmatpush1.msra.mxu0 0.0
    %172 = vmatprep.subr.mxu0 0.0
    %173 = vmatpush1.msra.mxu0 0.0
    %174 = vmatprep.subr.mxu0 0.0
    %175 = vmatpush1.msra.mxu0 0.0
    %176 = vmatprep.subr.mxu0 0.0
    %177 = vmatpush1.msra.mxu0 0.0
    %178 = vmatprep.subr.mxu0 0.0
    %179 = vmatpush1.msra.mxu0 0.0
    %180 = vmatprep.subr.mxu0 0.0
    %181 = vmatpush1.msra.mxu0 0.0
    %182 = vmatprep.subr.mxu0 0.0
    %183 = vmatpush1.msra.mxu0 0.0
    %184 = vmatprep.subr.mxu0 0.0
    %185 = vmatpush1.msra.mxu0 0.0
    %186 = vmatprep.subr.mxu0 0.0
    %187 = vmatpush1.msra.mxu0 0.0
    %188 = vmatprep.subr.mxu0 0.0
    %189 = vmatpush1.msra.mxu0 0.0
    %190 = vmatprep.subr.mxu0 0.0
    %191 = vmatpush1.msra.mxu0 0.0
    %192 = vmatprep.subr.mxu0 0.0
    %193 = vmatpush1.msra.mxu0 0.0
    %194 = vmatprep.subr.mxu0 0.0
    %195 = vmatpush1.msra.mxu0 0.0
    %196 = vmatprep.subr.mxu0 0.0
    %197 = vmatpush1.msra.mxu0 0.0
    %198 = vmatprep.subr.mxu0 0.0
    %199 = vmatpush1.msra.mxu0 0.0
    %200 = vmatprep.subr.mxu0 0.0
    %201 = vmatpush1.msra.mxu0 0.0
    %202 = vmatprep.subr.mxu0 0.0
    %203 = vmatpush1.msra.mxu0 0.0
    %204 = vmatprep.subr.mxu0 0.0
    %205 = vmatpush1.msra.mxu0 0.0
    %206 = vmatprep.subr.mxu0 0.0
    %207 = vmatpush1.msra.mxu0 0.0
    %208 = vmatprep.subr.mxu0 0.0
    %209 = vmatpush1.msra.mxu0 0.0
    %210 = vmatprep.subr.mxu0 0.0
    %211 = vmatpush1.msra.mxu0 0.0
    %212 = vmatprep.subr.mxu0 0.0
    %213 = vmatpush1.msra.mxu0 0.0
    %214 = vmatprep.subr.mxu0 0.0
    %215 = vmatpush1.msra.mxu0 0.0
    %216 = vmatprep.subr.mxu0 0.0
    %217 = vmatpush1.msra.mxu0 0.0
    %218 = vmatprep.subr.mxu0 0.0
    %219 = vmatpush1.msra.mxu0 0.0
    %220 = vmatprep.subr.mxu0 0.0
    %221 = vmatpush1.msra.mxu0 0.0
    %222 = vmatprep.mubr.f32.mxu0 0.0
    %223 = vmatmul.mubr.f32.gmra.mrb[0].mxu0 %v153
    %v224 = vpop.f32.mrb[0].mxu0
    %v225 = vadd.f32 0.0, %v224
    %v226 = vpop.f32.mrb[0].mxu0
    %227 = vdwg.mxu0
    %v228 = vmul.f32 %v148, %v225
    %vm229 = vcmask 818176
    %v231 = vsel %vm229, %v228, 0
    %vm233 = vcmask 1043456
    %v235 = vsel %vm233, %v59, 0
    %237 = vmatprep.subr.mxu0 0.0
    %238 = vmatpush1.msra.mxu0 %v47
    %239 = vmatprep.subr.mxu0 0.0
    %240 = vmatpush1.msra.mxu0 %v48
    %241 = vmatprep.subr.mxu0 0.0
    %242 = vmatpush1.msra.mxu0 %v49
    %243 = vmatprep.subr.mxu0 0.0
    %244 = vmatpush1.msra.mxu0 %v50
    %245 = vmatprep.subr.mxu0 0.0
    %246 = vmatpush1.msra.mxu0 %v51
    %247 = vmatprep.subr.mxu0 0.0
    %248 = vmatpush1.msra.mxu0 %v52
    %249 = vmatprep.subr.mxu0 0.0
    %250 = vmatpush1.msra.mxu0 %v53
    %251 = vmatprep.subr.mxu0 0.0
    %252 = vmatpush1.msra.mxu0 %v54
    %253 = vmatprep.subr.mxu0 0.0
    %254 = vmatpush1.msra.mxu0 %v55
    %255 = vmatprep.subr.mxu0 0.0
    %256 = vmatpush1.msra.mxu0 %v56
    %257 = vmatprep.subr.mxu0 0.0
    %258 = vmatpush1.msra.mxu0 %v57
    %259 = vmatprep.subr.mxu0 0.0
    %260 = vmatpush1.msra.mxu0 %v58
    %261 = vmatprep.subr.mxu0 0.0
    %262 = vmatpush1.msra.mxu0 %v235
    %263 = vmatprep.subr.mxu0 0.0
    %264 = vmatpush1.msra.mxu0 0.0
    %265 = vmatprep.subr.mxu0 0.0
    %266 = vmatpush1.msra.mxu0 0.0
    %267 = vmatprep.subr.mxu0 0.0
    %268 = vmatpush1.msra.mxu0 0.0
    %269 = vmatprep.subr.mxu0 0.0
    %270 = vmatpush1.msra.mxu0 0.0
    %271 = vmatprep.subr.mxu0 0.0
    %272 = vmatpush1.msra.mxu0 0.0
    %273 = vmatprep.subr.mxu0 0.0
    %274 = vmatpush1.msra.mxu0 0.0
    %275 = vmatprep.subr.mxu0 0.0
    %276 = vmatpush1.msra.mxu0 0.0
    %277 = vmatprep.subr.mxu0 0.0
    %278 = vmatpush1.msra.mxu0 0.0
    %279 = vmatprep.subr.mxu0 0.0
    %280 = vmatpush1.msra.mxu0 0.0
    %281 = vmatprep.subr.mxu0 0.0
    %282 = vmatpush1.msra.mxu0 0.0
    %283 = vmatprep.subr.mxu0 0.0
    %284 = vmatpush1.msra.mxu0 0.0
    %285 = vmatprep.subr.mxu0 0.0
    %286 = vmatpush1.msra.mxu0 0.0
    %287 = vmatprep.subr.mxu0 0.0
    %288 = vmatpush1.msra.mxu0 0.0
    %289 = vmatprep.subr.mxu0 0.0
    %290 = vmatpush1.msra.mxu0 0.0
    %291 = vmatprep.subr.mxu0 0.0
    %292 = vmatpush1.msra.mxu0 0.0
    %293 = vmatprep.subr.mxu0 0.0
    %294 = vmatpush1.msra.mxu0 0.0
    %295 = vmatprep.subr.mxu0 0.0
    %296 = vmatpush1.msra.mxu0 0.0
    %297 = vmatprep.subr.mxu0 0.0
    %298 = vmatpush1.msra.mxu0 0.0
    %299 = vmatprep.subr.mxu0 0.0
    %300 = vmatpush1.msra.mxu0 0.0
    %301 = vmatprep.mubr.f32.mxu0 0.0
    %302 = vmatmul.mubr.f32.gmra.mrb[0].mxu0 %v231
    %v303 = vpop.f32.mrb[0].mxu0
    %v304 = vadd.f32 0.0, %v303
    %v305 = vpop.f32.mrb[0].mxu0
    %306 = vdwg.mxu0
    %v307 = vld [vmem:[%s0] sm:$0x3]
    %v309 = vsel %vm73, %v307, 0
    %311 = vmatprep.subr.mxu0 0.0
    %312 = vmatpush1.msra.mxu0 %v43
    %313 = vmatprep.subr.mxu0 0.0
    %314 = vmatpush1.msra.mxu0 %v79
    %315 = vmatprep.subr.mxu0 0.0
    %316 = vmatpush1.msra.mxu0 0.0
    %317 = vmatprep.subr.mxu0 0.0
    %318 = vmatpush1.msra.mxu0 0.0
    %319 = vmatprep.subr.mxu0 0.0
    %320 = vmatpush1.msra.mxu0 0.0
    %321 = vmatprep.subr.mxu0 0.0
    %322 = vmatpush1.msra.mxu0 0.0
    %323 = vmatprep.subr.mxu0 0.0
    %324 = vmatpush1.msra.mxu0 0.0
    %325 = vmatprep.subr.mxu0 0.0
    %326 = vmatpush1.msra.mxu0 0.0
    %327 = vmatprep.subr.mxu0 0.0
    %328 = vmatpush1.msra.mxu0 0.0
    %329 = vmatprep.subr.mxu0 0.0
    %330 = vmatpush1.msra.mxu0 0.0
    %331 = vmatprep.subr.mxu0 0.0
    %332 = vmatpush1.msra.mxu0 0.0
    %333 = vmatprep.subr.mxu0 0.0
    %334 = vmatpush1.msra.mxu0 0.0
    %335 = vmatprep.subr.mxu0 0.0
    %336 = vmatpush1.msra.mxu0 0.0
    %337 = vmatprep.subr.mxu0 0.0
    %338 = vmatpush1.msra.mxu0 0.0
    %339 = vmatprep.subr.mxu0 0.0
    %340 = vmatpush1.msra.mxu0 0.0
    %341 = vmatprep.subr.mxu0 0.0
    %342 = vmatpush1.msra.mxu0 0.0
    %343 = vmatprep.subr.mxu0 0.0
    %344 = vmatpush1.msra.mxu0 0.0
    %345 = vmatprep.subr.mxu0 0.0
    %346 = vmatpush1.msra.mxu0 0.0
    %347 = vmatprep.subr.mxu0 0.0
    %348 = vmatpush1.msra.mxu0 0.0
    %349 = vmatprep.subr.mxu0 0.0
    %350 = vmatpush1.msra.mxu0 0.0
    %351 = vmatprep.subr.mxu0 0.0
    %352 = vmatpush1.msra.mxu0 0.0
    %353 = vmatprep.subr.mxu0 0.0
    %354 = vmatpush1.msra.mxu0 0.0
    %355 = vmatprep.subr.mxu0 0.0
    %356 = vmatpush1.msra.mxu0 0.0
    %357 = vmatprep.subr.mxu0 0.0
    %358 = vmatpush1.msra.mxu0 0.0
    %359 = vmatprep.subr.mxu0 0.0
    %360 = vmatpush1.msra.mxu0 0.0
    %361 = vmatprep.subr.mxu0 0.0
    %362 = vmatpush1.msra.mxu0 0.0
    %363 = vmatprep.subr.mxu0 0.0
    %364 = vmatpush1.msra.mxu0 0.0
    %365 = vmatprep.subr.mxu0 0.0
    %366 = vmatpush1.msra.mxu0 0.0
    %367 = vmatprep.subr.mxu0 0.0
    %368 = vmatpush1.msra.mxu0 0.0
    %369 = vmatprep.subr.mxu0 0.0
    %370 = vmatpush1.msra.mxu0 0.0
    %371 = vmatprep.subr.mxu0 0.0
    %372 = vmatpush1.msra.mxu0 0.0
    %373 = vmatprep.subr.mxu0 0.0
    %374 = vmatpush1.msra.mxu0 0.0
    %375 = vmatprep.mubr.f32.mxu0 0.0
    %376 = vmatmul.mubr.f32.gmra.mrb[0].mxu0 %v309
    %v377 = vpop.f32.mrb[0].mxu0
    %v378 = vadd.f32 0.0, %v377
    %v379 = vpop.f32.mrb[0].mxu0
    %380 = vdwg.mxu0
    %v381 = vld [vmem:[%s2] sm:$0x3]
    %v383 = vsel %vm73, %v381, 0
    %385 = vmatprep.subr.mxu0 0.0
    %386 = vmatpush1.msra.mxu0 %v45
    %387 = vmatprep.subr.mxu0 0.0
    %388 = vmatpush1.msra.mxu0 %v156
    %389 = vmatprep.subr.mxu0 0.0
    %390 = vmatpush1.msra.mxu0 0.0
    %391 = vmatprep.subr.mxu0 0.0
    %392 = vmatpush1.msra.mxu0 0.0
    %393 = vmatprep.subr.mxu0 0.0
    %394 = vmatpush1.msra.mxu0 0.0
    %395 = vmatprep.subr.mxu0 0.0
    %396 = vmatpush1.msra.mxu0 0.0
    %397 = vmatprep.subr.mxu0 0.0
    %398 = vmatpush1.msra.mxu0 0.0
    %399 = vmatprep.subr.mxu0 0.0
    %400 = vmatpush1.msra.mxu0 0.0
    %401 = vmatprep.subr.mxu0 0.0
    %402 = vmatpush1.msra.mxu0 0.0
    %403 = vmatprep.subr.mxu0 0.0
    %404 = vmatpush1.msra.mxu0 0.0
    %405 = vmatprep.subr.mxu0 0.0
    %406 = vmatpush1.msra.mxu0 0.0
    %407 = vmatprep.subr.mxu0 0.0
    %408 = vmatpush1.msra.mxu0 0.0
    %409 = vmatprep.subr.mxu0 0.0
    %410 = vmatpush1.msra.mxu0 0.0
    %411 = vmatprep.subr.mxu0 0.0
    %412 = vmatpush1.msra.mxu0 0.0
    %413 = vmatprep.subr.mxu0 0.0
    %414 = vmatpush1.msra.mxu0 0.0
    %415 = vmatprep.subr.mxu0 0.0
    %416 = vmatpush1.msra.mxu0 0.0
    %417 = vmatprep.subr.mxu0 0.0
    %418 = vmatpush1.msra.mxu0 0.0
    %419 = vmatprep.subr.mxu0 0.0
    %420 = vmatpush1.msra.mxu0 0.0
    %421 = vmatprep.subr.mxu0 0.0
    %422 = vmatpush1.msra.mxu0 0.0
    %423 = vmatprep.subr.mxu0 0.0
    %424 = vmatpush1.msra.mxu0 0.0
    %425 = vmatprep.subr.mxu0 0.0
    %426 = vmatpush1.msra.mxu0 0.0
    %427 = vmatprep.subr.mxu0 0.0
    %428 = vmatpush1.msra.mxu0 0.0
    %429 = vmatprep.subr.mxu0 0.0
    %430 = vmatpush1.msra.mxu0 0.0
    %431 = vmatprep.subr.mxu0 0.0
    %432 = vmatpush1.msra.mxu0 0.0
    %433 = vmatprep.subr.mxu0 0.0
    %434 = vmatpush1.msra.mxu0 0.0
    %435 = vmatprep.subr.mxu0 0.0
    %436 = vmatpush1.msra.mxu0 0.0
    %437 = vmatprep.subr.mxu0 0.0
    %438 = vmatpush1.msra.mxu0 0.0
    %439 = vmatprep.subr.mxu0 0.0
    %440 = vmatpush1.msra.mxu0 0.0
    %441 = vmatprep.subr.mxu0 0.0
    %442 = vmatpush1.msra.mxu0 0.0
    %443 = vmatprep.subr.mxu0 0.0
    %444 = vmatpush1.msra.mxu0 0.0
    %445 = vmatprep.subr.mxu0 0.0
    %446 = vmatpush1.msra.mxu0 0.0
    %447 = vmatprep.subr.mxu0 0.0
    %448 = vmatpush1.msra.mxu0 0.0
    %449 = vmatprep.mubr.f32.mxu0 0.0
    %450 = vmatmul.mubr.f32.gmra.mrb[0].mxu0 %v383
    %v451 = vpop.f32.mrb[0].mxu0
    %v452 = vadd.f32 0.0, %v451
    %v453 = vpop.f32.mrb[0].mxu0
    %454 = vdwg.mxu0
    %v455 = vmul.f32 %v378, %v452
    %v457 = vsel %vm229, %v455, 0
    %459 = vmatprep.subr.mxu0 0.0
    %460 = vmatpush1.msra.mxu0 %v47
    %461 = vmatprep.subr.mxu0 0.0
    %462 = vmatpush1.msra.mxu0 %v48
    %463 = vmatprep.subr.mxu0 0.0
    %464 = vmatpush1.msra.mxu0 %v49
    %465 = vmatprep.subr.mxu0 0.0
    %466 = vmatpush1.msra.mxu0 %v50
    %467 = vmatprep.subr.mxu0 0.0
    %468 = vmatpush1.msra.mxu0 %v51
    %469 = vmatprep.subr.mxu0 0.0
    %470 = vmatpush1.msra.mxu0 %v52
    %471 = vmatprep.subr.mxu0 0.0
    %472 = vmatpush1.msra.mxu0 %v53
    %473 = vmatprep.subr.mxu0 0.0
    %474 = vmatpush1.msra.mxu0 %v54
    %475 = vmatprep.subr.mxu0 0.0
    %476 = vmatpush1.msra.mxu0 %v55
    %477 = vmatprep.subr.mxu0 0.0
    %478 = vmatpush1.msra.mxu0 %v56
    %479 = vmatprep.subr.mxu0 0.0
    %480 = vmatpush1.msra.mxu0 %v57
    %481 = vmatprep.subr.mxu0 0.0
    %482 = vmatpush1.msra.mxu0 %v58
    %483 = vmatprep.subr.mxu0 0.0
    %484 = vmatpush1.msra.mxu0 %v235
    %485 = vmatprep.subr.mxu0 0.0
    %486 = vmatpush1.msra.mxu0 0.0
    %487 = vmatprep.subr.mxu0 0.0
    %488 = vmatpush1.msra.mxu0 0.0
    %489 = vmatprep.subr.mxu0 0.0
    %490 = vmatpush1.msra.mxu0 0.0
    %491 = vmatprep.subr.mxu0 0.0
    %492 = vmatpush1.msra.mxu0 0.0
    %493 = vmatprep.subr.mxu0 0.0
    %494 = vmatpush1.msra.mxu0 0.0
    %495 = vmatprep.subr.mxu0 0.0
    %496 = vmatpush1.msra.mxu0 0.0
    %497 = vmatprep.subr.mxu0 0.0
    %498 = vmatpush1.msra.mxu0 0.0
    %499 = vmatprep.subr.mxu0 0.0
    %500 = vmatpush1.msra.mxu0 0.0
    %501 = vmatprep.subr.mxu0 0.0
    %502 = vmatpush1.msra.mxu0 0.0
    %503 = vmatprep.subr.mxu0 0.0
    %504 = vmatpush1.msra.mxu0 0.0
    %505 = vmatprep.subr.mxu0 0.0
    %506 = vmatpush1.msra.mxu0 0.0
    %507 = vmatprep.subr.mxu0 0.0
    %508 = vmatpush1.msra.mxu0 0.0
    %509 = vmatprep.subr.mxu0 0.0
    %510 = vmatpush1.msra.mxu0 0.0
    %511 = vmatprep.subr.mxu0 0.0
    %512 = vmatpush1.msra.mxu0 0.0
    %513 = vmatprep.subr.mxu0 0.0
    %514 = vmatpush1.msra.mxu0 0.0
    %515 = vmatprep.subr.mxu0 0.0
    %516 = vmatpush1.msra.mxu0 0.0
    %517 = vmatprep.subr.mxu0 0.0
    %518 = vmatpush1.msra.mxu0 0.0
    %519 = vmatprep.subr.mxu0 0.0
    %520 = vmatpush1.msra.mxu0 0.0
    %521 = vmatprep.subr.mxu0 0.0
    %522 = vmatpush1.msra.mxu0 0.0
    %523 = vmatprep.mubr.f32.mxu0 0.0
    %524 = vmatmul.mubr.f32.gmra.mrb[0].mxu0 %v457
    %v525 = vpop.f32.mrb[0].mxu0
    %v526 = vadd.f32 0.0, %v525
    %v527 = vpop.f32.mrb[0].mxu0
    %528 = vdwg.mxu0
    %vm529 = vcmask 148480
    %v530 = vsel %vm529, %v526, 0.0
    %531 = vadd.xlane.f32.xlu0 %v530
    %v532 = vpop.xlane.xlu0 %531
    %vm533 = vcmask 154624
    %v535 = vsel %vm533, %v304, 0
    %vm537 = vcmask 1042432
    %v539 = vsel %vm537, %v68, 0
    %541 = vmatprep.subr.mxu0 0.0
    %542 = vmatpush1.msra.mxu0 %v66
    %543 = vmatprep.subr.mxu0 0.0
    %544 = vmatpush1.msra.mxu0 %v67
    %545 = vmatprep.subr.mxu0 0.0
    %546 = vmatpush1.msra.mxu0 %v539
    %547 = vmatprep.subr.mxu0 0.0
    %548 = vmatpush1.msra.mxu0 0.0
    %549 = vmatprep.subr.mxu0 0.0
    %550 = vmatpush1.msra.mxu0 0.0
    %551 = vmatprep.subr.mxu0 0.0
    %552 = vmatpush1.msra.mxu0 0.0
    %553 = vmatprep.subr.mxu0 0.0
    %554 = vmatpush1.msra.mxu0 0.0
    %555 = vmatprep.subr.mxu0 0.0
    %556 = vmatpush1.msra.mxu0 0.0
    %557 = vmatprep.subr.mxu0 0.0
    %558 = vmatpush1.msra.mxu0 0.0
    %559 = vmatprep.subr.mxu0 0.0
    %560 = vmatpush1.msra.mxu0 0.0
    %561 = vmatprep.subr.mxu0 0.0
    %562 = vmatpush1.msra.mxu0 0.0
    %563 = vmatprep.subr.mxu0 0.0
    %564 = vmatpush1.msra.mxu0 0.0
    %565 = vmatprep.subr.mxu0 0.0
    %566 = vmatpush1.msra.mxu0 0.0
    %567 = vmatprep.subr.mxu0 0.0
    %568 = vmatpush1.msra.mxu0 0.0
    %569 = vmatprep.subr.mxu0 0.0
    %570 = vmatpush1.msra.mxu0 0.0
    %571 = vmatprep.subr.mxu0 0.0
    %572 = vmatpush1.msra.mxu0 0.0
    %573 = vmatprep.subr.mxu0 0.0
    %574 = vmatpush1.msra.mxu0 0.0
    %575 = vmatprep.subr.mxu0 0.0
    %576 = vmatpush1.msra.mxu0 0.0
    %577 = vmatprep.subr.mxu0 0.0
    %578 = vmatpush1.msra.mxu0 0.0
    %579 = vmatprep.subr.mxu0 0.0
    %580 = vmatpush1.msra.mxu0 0.0
    %581 = vmatprep.subr.mxu0 0.0
    %582 = vmatpush1.msra.mxu0 0.0
    %583 = vmatprep.subr.mxu0 0.0
    %584 = vmatpush1.msra.mxu0 0.0
    %585 = vmatprep.subr.mxu0 0.0
    %586 = vmatpush1.msra.mxu0 0.0
    %587 = vmatprep.subr.mxu0 0.0
    %588 = vmatpush1.msra.mxu0 0.0
    %589 = vmatprep.subr.mxu0 0.0
    %590 = vmatpush1.msra.mxu0 0.0
    %591 = vmatprep.subr.mxu0 0.0
    %592 = vmatpush1.msra.mxu0 0.0
    %593 = vmatprep.subr.mxu0 0.0
    %594 = vmatpush1.msra.mxu0 0.0
    %595 = vmatprep.subr.mxu0 0.0
    %596 = vmatpush1.msra.mxu0 0.0
    %597 = vmatprep.subr.mxu0 0.0
    %598 = vmatpush1.msra.mxu0 0.0
    %599 = vmatprep.subr.mxu0 0.0
    %600 = vmatpush1.msra.mxu0 0.0
    %601 = vmatprep.subr.mxu0 0.0
    %602 = vmatpush1.msra.mxu0 0.0
    %603 = vmatprep.subr.mxu0 0.0
    %604 = vmatpush1.msra.mxu0 0.0
    %605 = vmatprep.mubr.f32.mxu0 0.0
    %606 = vmatmul.mubr.f32.gmra.mrb[0].mxu0 %v535
    %v607 = vpop.f32.mrb[0].mxu0
    %v608 = vadd.f32 0.0, %v607
    %v609 = vpop.f32.mrb[0].mxu0
    %610 = vdwg.mxu0
    %v612 = vsel %vm537, %v62, 0
    %614 = vmatprep.subr.mxu0 0.0
    %615 = vmatpush1.msra.mxu0 %v60
    %616 = vmatprep.subr.mxu0 0.0
    %617 = vmatpush1.msra.mxu0 %v61
    %618 = vmatprep.subr.mxu0 0.0
    %619 = vmatpush1.msra.mxu0 %v612
    %620 = vmatprep.subr.mxu0 0.0
    %621 = vmatpush1.msra.mxu0 0.0
    %622 = vmatprep.subr.mxu0 0.0
    %623 = vmatpush1.msra.mxu0 0.0
    %624 = vmatprep.subr.mxu0 0.0
    %625 = vmatpush1.msra.mxu0 0.0
    %626 = vmatprep.subr.mxu0 0.0
    %627 = vmatpush1.msra.mxu0 0.0
    %628 = vmatprep.subr.mxu0 0.0
    %629 = vmatpush1.msra.mxu0 0.0
    %630 = vmatprep.subr.mxu0 0.0
    %631 = vmatpush1.msra.mxu0 0.0
    %632 = vmatprep.subr.mxu0 0.0
    %633 = vmatpush1.msra.mxu0 0.0
    %634 = vmatprep.subr.mxu0 0.0
    %635 = vmatpush1.msra.mxu0 0.0
    %636 = vmatprep.subr.mxu0 0.0
    %637 = vmatpush1.msra.mxu0 0.0
    %638 = vmatprep.subr.mxu0 0.0
    %639 = vmatpush1.msra.mxu0 0.0
    %640 = vmatprep.subr.mxu0 0.0
    %641 = vmatpush1.msra.mxu0 0.0
    %642 = vmatprep.subr.mxu0 0.0
    %643 = vmatpush1.msra.mxu0 0.0
    %644 = vmatprep.subr.mxu0 0.0
    %645 = vmatpush1.msra.mxu0 0.0
    %646 = vmatprep.subr.mxu0 0.0
    %647 = vmatpush1.msra.mxu0 0.0
    %648 = vmatprep.subr.mxu0 0.0
    %649 = vmatpush1.msra.mxu0 0.0
    %650 = vmatprep.subr.mxu0 0.0
    %651 = vmatpush1.msra.mxu0 0.0
    %652 = vmatprep.subr.mxu0 0.0
    %653 = vmatpush1.msra.mxu0 0.0
    %654 = vmatprep.subr.mxu0 0.0
    %655 = vmatpush1.msra.mxu0 0.0
    %656 = vmatprep.subr.mxu0 0.0
    %657 = vmatpush1.msra.mxu0 0.0
    %658 = vmatprep.subr.mxu0 0.0
    %659 = vmatpush1.msra.mxu0 0.0
    %660 = vmatprep.subr.mxu0 0.0
    %661 = vmatpush1.msra.mxu0 0.0
    %662 = vmatprep.subr.mxu0 0.0
    %663 = vmatpush1.msra.mxu0 0.0
    %664 = vmatprep.subr.mxu0 0.0
    %665 = vmatpush1.msra.mxu0 0.0
    %666 = vmatprep.subr.mxu0 0.0
    %667 = vmatpush1.msra.mxu0 0.0
    %668 = vmatprep.subr.mxu0 0.0
    %669 = vmatpush1.msra.mxu0 0.0
    %670 = vmatprep.subr.mxu0 0.0
    %671 = vmatpush1.msra.mxu0 0.0
    %672 = vmatprep.subr.mxu0 0.0
    %673 = vmatpush1.msra.mxu0 0.0
    %674 = vmatprep.subr.mxu0 0.0
    %675 = vmatpush1.msra.mxu0 0.0
    %676 = vmatprep.subr.mxu0 0.0
    %677 = vmatpush1.msra.mxu0 0.0
    %678 = vmatprep.mubr.f32.mxu0 0.0
    %679 = vmatmul.mubr.f32.gmra.mrb[0].mxu0 %v535
    %v680 = vpop.f32.mrb[0].mxu0
    %v681 = vadd.f32 0.0, %v680
    %v682 = vpop.f32.mrb[0].mxu0
    %683 = vdwg.mxu0
    %v684 = vmul.f32 %v532, %v681
    %vm685 = vcmask 74752
    %686 = vst.msk [vmem:[#allocation2] sm:$0x3] %vm685, %v684
    %v688 = vsel %vm533, %v526, 0
    %690 = vmatprep.subr.mxu0 0.0
    %691 = vmatpush1.msra.mxu0 %v60
    %692 = vmatprep.subr.mxu0 0.0
    %693 = vmatpush1.msra.mxu0 %v61
    %694 = vmatprep.subr.mxu0 0.0
    %695 = vmatpush1.msra.mxu0 %v612
    %696 = vmatprep.subr.mxu0 0.0
    %697 = vmatpush1.msra.mxu0 0.0
    %698 = vmatprep.subr.mxu0 0.0
    %699 = vmatpush1.msra.mxu0 0.0
    %700 = vmatprep.subr.mxu0 0.0
    %701 = vmatpush1.msra.mxu0 0.0
    %702 = vmatprep.subr.mxu0 0.0
    %703 = vmatpush1.msra.mxu0 0.0
    %704 = vmatprep.subr.mxu0 0.0
    %705 = vmatpush1.msra.mxu0 0.0
    %706 = vmatprep.subr.mxu0 0.0
    %707 = vmatpush1.msra.mxu0 0.0
    %708 = vmatprep.subr.mxu0 0.0
    %709 = vmatpush1.msra.mxu0 0.0
    %710 = vmatprep.subr.mxu0 0.0
    %711 = vmatpush1.msra.mxu0 0.0
    %712 = vmatprep.subr.mxu0 0.0
    %713 = vmatpush1.msra.mxu0 0.0
    %714 = vmatprep.subr.mxu0 0.0
    %715 = vmatpush1.msra.mxu0 0.0
    %716 = vmatprep.subr.mxu0 0.0
    %717 = vmatpush1.msra.mxu0 0.0
    %718 = vmatprep.subr.mxu0 0.0
    %719 = vmatpush1.msra.mxu0 0.0
    %720 = vmatprep.subr.mxu0 0.0
    %721 = vmatpush1.msra.mxu0 0.0
    %722 = vmatprep.subr.mxu0 0.0
    %723 = vmatpush1.msra.mxu0 0.0
    %724 = vmatprep.subr.mxu0 0.0
    %725 = vmatpush1.msra.mxu0 0.0
    %726 = vmatprep.subr.mxu0 0.0
    %727 = vmatpush1.msra.mxu0 0.0
    %728 = vmatprep.subr.mxu0 0.0
    %729 = vmatpush1.msra.mxu0 0.0
    %730 = vmatprep.subr.mxu0 0.0
    %731 = vmatpush1.msra.mxu0 0.0
    %732 = vmatprep.subr.mxu0 0.0
    %733 = vmatpush1.msra.mxu0 0.0
    %734 = vmatprep.subr.mxu0 0.0
    %735 = vmatpush1.msra.mxu0 0.0
    %736 = vmatprep.subr.mxu0 0.0
    %737 = vmatpush1.msra.mxu0 0.0
    %738 = vmatprep.subr.mxu0 0.0
    %739 = vmatpush1.msra.mxu0 0.0
    %740 = vmatprep.subr.mxu0 0.0
    %741 = vmatpush1.msra.mxu0 0.0
    %742 = vmatprep.subr.mxu0 0.0
    %743 = vmatpush1.msra.mxu0 0.0
    %744 = vmatprep.subr.mxu0 0.0
    %745 = vmatpush1.msra.mxu0 0.0
    %746 = vmatprep.subr.mxu0 0.0
    %747 = vmatpush1.msra.mxu0 0.0
    %748 = vmatprep.subr.mxu0 0.0
    %749 = vmatpush1.msra.mxu0 0.0
    %750 = vmatprep.subr.mxu0 0.0
    %751 = vmatpush1.msra.mxu0 0.0
    %752 = vmatprep.subr.mxu0 0.0
    %753 = vmatpush1.msra.mxu0 0.0
    %754 = vmatprep.mubr.f32.mxu0 0.0
    %755 = vmatmul.mubr.f32.gmra.mrb[0].mxu0 %v688
    %v756 = vpop.f32.mrb[0].mxu0
    %v757 = vadd.f32 0.0, %v756
    %v758 = vpop.f32.mrb[0].mxu0
    %759 = vdwg.mxu0
    %761 = vset.pattern.permute.xlu0 0
    %762 = vperm.xlu0 %761, %v608
    %v763 = vpop.permute.xlu0 %762
    %v765 = vmul.f32 %v763, %v757
    %v767 = vsel %vm537, %v65, 0
    %769 = vmatprep.subr.mxu0 0.0
    %770 = vmatpush1.msra.mxu0 %v63
    %771 = vmatprep.subr.mxu0 0.0
    %772 = vmatpush1.msra.mxu0 %v64
    %773 = vmatprep.subr.mxu0 0.0
    %774 = vmatpush1.msra.mxu0 %v767
    %775 = vmatprep.subr.mxu0 0.0
    %776 = vmatpush1.msra.mxu0 0.0
    %777 = vmatprep.subr.mxu0 0.0
    %778 = vmatpush1.msra.mxu0 0.0
    %779 = vmatprep.subr.mxu0 0.0
    %780 = vmatpush1.msra.mxu0 0.0
    %781 = vmatprep.subr.mxu0 0.0
    %782 = vmatpush1.msra.mxu0 0.0
    %783 = vmatprep.subr.mxu0 0.0
    %784 = vmatpush1.msra.mxu0 0.0
    %785 = vmatprep.subr.mxu0 0.0
    %786 = vmatpush1.msra.mxu0 0.0
    %787 = vmatprep.subr.mxu0 0.0
    %788 = vmatpush1.msra.mxu0 0.0
    %789 = vmatprep.subr.mxu0 0.0
    %790 = vmatpush1.msra.mxu0 0.0
    %791 = vmatprep.subr.mxu0 0.0
    %792 = vmatpush1.msra.mxu0 0.0
    %793 = vmatprep.subr.mxu0 0.0
    %794 = vmatpush1.msra.mxu0 0.0
    %795 = vmatprep.subr.mxu0 0.0
    %796 = vmatpush1.msra.mxu0 0.0
    %797 = vmatprep.subr.mxu0 0.0
    %798 = vmatpush1.msra.mxu0 0.0
    %799 = vmatprep.subr.mxu0 0.0
    %800 = vmatpush1.msra.mxu0 0.0
    %801 = vmatprep.subr.mxu0 0.0
    %802 = vmatpush1.msra.mxu0 0.0
    %803 = vmatprep.subr.mxu0 0.0
    %804 = vmatpush1.msra.mxu0 0.0
    %805 = vmatprep.subr.mxu0 0.0
    %806 = vmatpush1.msra.mxu0 0.0
    %807 = vmatprep.subr.mxu0 0.0
    %808 = vmatpush1.msra.mxu0 0.0
    %809 = vmatprep.subr.mxu0 0.0
    %810 = vmatpush1.msra.mxu0 0.0
    %811 = vmatprep.subr.mxu0 0.0
    %812 = vmatpush1.msra.mxu0 0.0
    %813 = vmatprep.subr.mxu0 0.0
    %814 = vmatpush1.msra.mxu0 0.0
    %815 = vmatprep.subr.mxu0 0.0
    %816 = vmatpush1.msra.mxu0 0.0
    %817 = vmatprep.subr.mxu0 0.0
    %818 = vmatpush1.msra.mxu0 0.0
    %819 = vmatprep.subr.mxu0 0.0
    %820 = vmatpush1.msra.mxu0 0.0
    %821 = vmatprep.subr.mxu0 0.0
    %822 = vmatpush1.msra.mxu0 0.0
    %823 = vmatprep.subr.mxu0 0.0
    %824 = vmatpush1.msra.mxu0 0.0
    %825 = vmatprep.subr.mxu0 0.0
    %826 = vmatpush1.msra.mxu0 0.0
    %827 = vmatprep.subr.mxu0 0.0
    %828 = vmatpush1.msra.mxu0 0.0
    %829 = vmatprep.subr.mxu0 0.0
    %830 = vmatpush1.msra.mxu0 0.0
    %831 = vmatprep.subr.mxu0 0.0
    %832 = vmatpush1.msra.mxu0 0.0
    %833 = vmatprep.mubr.f32.mxu0 0.0
    %834 = vmatmul.mubr.f32.gmra.mrb[0].mxu0 %v688
    %v835 = vpop.f32.mrb[0].mxu0
    %v836 = vadd.f32 0.0, %v835
    %v837 = vpop.f32.mrb[0].mxu0
    %838 = vdwg.mxu0
    %839 = vset.pattern.permute.xlu0 1
    %840 = vperm.xlu0 %839, %v608
    %v841 = vpop.permute.xlu0 %840
    %v843 = vmul.f32 %v841, %v836
    %v844 = vadd.f32 %v765, %v843
    %845 = vst.msk [vmem:[#allocation4] sm:$0x3] %vm685, %v844
    %846 = vmatprep.subr.mxu0 0.0
    %847 = vmatpush1.msra.mxu0 %v66
    %848 = vmatprep.subr.mxu0 0.0
    %849 = vmatpush1.msra.mxu0 %v67
    %850 = vmatprep.subr.mxu0 0.0
    %851 = vmatpush1.msra.mxu0 %v539
    %852 = vmatprep.subr.mxu0 0.0
    %853 = vmatpush1.msra.mxu0 0.0
    %854 = vmatprep.subr.mxu0 0.0
    %855 = vmatpush1.msra.mxu0 0.0
    %856 = vmatprep.subr.mxu0 0.0
    %857 = vmatpush1.msra.mxu0 0.0
    %858 = vmatprep.subr.mxu0 0.0
    %859 = vmatpush1.msra.mxu0 0.0
    %860 = vmatprep.subr.mxu0 0.0
    %861 = vmatpush1.msra.mxu0 0.0
    %862 = vmatprep.subr.mxu0 0.0
    %863 = vmatpush1.msra.mxu0 0.0
    %864 = vmatprep.subr.mxu0 0.0
    %865 = vmatpush1.msra.mxu0 0.0
    %866 = vmatprep.subr.mxu0 0.0
    %867 = vmatpush1.msra.mxu0 0.0
    %868 = vmatprep.subr.mxu0 0.0
    %869 = vmatpush1.msra.mxu0 0.0
    %870 = vmatprep.subr.mxu0 0.0
    %871 = vmatpush1.msra.mxu0 0.0
    %872 = vmatprep.subr.mxu0 0.0
    %873 = vmatpush1.msra.mxu0 0.0
    %874 = vmatprep.subr.mxu0 0.0
    %875 = vmatpush1.msra.mxu0 0.0
    %876 = vmatprep.subr.mxu0 0.0
    %877 = vmatpush1.msra.mxu0 0.0
    %878 = vmatprep.subr.mxu0 0.0
    %879 = vmatpush1.msra.mxu0 0.0
    %880 = vmatprep.subr.mxu0 0.0
    %881 = vmatpush1.msra.mxu0 0.0
    %882 = vmatprep.subr.mxu0 0.0
    %883 = vmatpush1.msra.mxu0 0.0
    %884 = vmatprep.subr.mxu0 0.0
    %885 = vmatpush1.msra.mxu0 0.0
    %886 = vmatprep.subr.mxu0 0.0
    %887 = vmatpush1.msra.mxu0 0.0
    %888 = vmatprep.subr.mxu0 0.0
    %889 = vmatpush1.msra.mxu0 0.0
    %890 = vmatprep.subr.mxu0 0.0
    %891 = vmatpush1.msra.mxu0 0.0
    %892 = vmatprep.subr.mxu0 0.0
    %893 = vmatpush1.msra.mxu0 0.0
    %894 = vmatprep.subr.mxu0 0.0
    %895 = vmatpush1.msra.mxu0 0.0
    %896 = vmatprep.subr.mxu0 0.0
    %897 = vmatpush1.msra.mxu0 0.0
    %898 = vmatprep.subr.mxu0 0.0
    %899 = vmatpush1.msra.mxu0 0.0
    %900 = vmatprep.subr.mxu0 0.0
    %901 = vmatpush1.msra.mxu0 0.0
    %902 = vmatprep.subr.mxu0 0.0
    %903 = vmatpush1.msra.mxu0 0.0
    %904 = vmatprep.subr.mxu0 0.0
    %905 = vmatpush1.msra.mxu0 0.0
    %906 = vmatprep.subr.mxu0 0.0
    %907 = vmatpush1.msra.mxu0 0.0
    %908 = vmatprep.subr.mxu0 0.0
    %909 = vmatpush1.msra.mxu0 0.0
    %910 = vmatprep.mubr.f32.mxu0 0.0
    %911 = vmatmul.mubr.f32.gmra.mrb[0].mxu0 %v688
    %v912 = vpop.f32.mrb[0].mxu0
    %v913 = vadd.f32 0.0, %v912
    %v914 = vpop.f32.mrb[0].mxu0
    %915 = vdwg.mxu0
    %v916 = vmul.f32 %v763, %v913
    %v918 = vsel %vm537, %v71, 0
    %920 = vmatprep.subr.mxu0 0.0
    %921 = vmatpush1.msra.mxu0 %v69
    %922 = vmatprep.subr.mxu0 0.0
    %923 = vmatpush1.msra.mxu0 %v70
    %924 = vmatprep.subr.mxu0 0.0
    %925 = vmatpush1.msra.mxu0 %v918
    %926 = vmatprep.subr.mxu0 0.0
    %927 = vmatpush1.msra.mxu0 0.0
    %928 = vmatprep.subr.mxu0 0.0
    %929 = vmatpush1.msra.mxu0 0.0
    %930 = vmatprep.subr.mxu0 0.0
    %931 = vmatpush1.msra.mxu0 0.0
    %932 = vmatprep.subr.mxu0 0.0
    %933 = vmatpush1.msra.mxu0 0.0
    %934 = vmatprep.subr.mxu0 0.0
    %935 = vmatpush1.msra.mxu0 0.0
    %936 = vmatprep.subr.mxu0 0.0
    %937 = vmatpush1.msra.mxu0 0.0
    %938 = vmatprep.subr.mxu0 0.0
    %939 = vmatpush1.msra.mxu0 0.0
    %940 = vmatprep.subr.mxu0 0.0
    %941 = vmatpush1.msra.mxu0 0.0
    %942 = vmatprep.subr.mxu0 0.0
    %943 = vmatpush1.msra.mxu0 0.0
    %944 = vmatprep.subr.mxu0 0.0
    %945 = vmatpush1.msra.mxu0 0.0
    %946 = vmatprep.subr.mxu0 0.0
    %947 = vmatpush1.msra.mxu0 0.0
    %948 = vmatprep.subr.mxu0 0.0
    %949 = vmatpush1.msra.mxu0 0.0
    %950 = vmatprep.subr.mxu0 0.0
    %951 = vmatpush1.msra.mxu0 0.0
    %952 = vmatprep.subr.mxu0 0.0
    %953 = vmatpush1.msra.mxu0 0.0
    %954 = vmatprep.subr.mxu0 0.0
    %955 = vmatpush1.msra.mxu0 0.0
    %956 = vmatprep.subr.mxu0 0.0
    %957 = vmatpush1.msra.mxu0 0.0
    %958 = vmatprep.subr.mxu0 0.0
    %959 = vmatpush1.msra.mxu0 0.0
    %960 = vmatprep.subr.mxu0 0.0
    %961 = vmatpush1.msra.mxu0 0.0
    %962 = vmatprep.subr.mxu0 0.0
    %963 = vmatpush1.msra.mxu0 0.0
    %964 = vmatprep.subr.mxu0 0.0
    %965 = vmatpush1.msra.mxu0 0.0
    %966 = vmatprep.subr.mxu0 0.0
    %967 = vmatpush1.msra.mxu0 0.0
    %968 = vmatprep.subr.mxu0 0.0
    %969 = vmatpush1.msra.mxu0 0.0
    %970 = vmatprep.subr.mxu0 0.0
    %971 = vmatpush1.msra.mxu0 0.0
    %972 = vmatprep.subr.mxu0 0.0
    %973 = vmatpush1.msra.mxu0 0.0
    %974 = vmatprep.subr.mxu0 0.0
    %975 = vmatpush1.msra.mxu0 0.0
    %976 = vmatprep.subr.mxu0 0.0
    %977 = vmatpush1.msra.mxu0 0.0
    %978 = vmatprep.subr.mxu0 0.0
    %979 = vmatpush1.msra.mxu0 0.0
    %980 = vmatprep.subr.mxu0 0.0
    %981 = vmatpush1.msra.mxu0 0.0
    %982 = vmatprep.subr.mxu0 0.0
    %983 = vmatpush1.msra.mxu0 0.0
    %984 = vmatprep.mubr.f32.mxu0 0.0
    %985 = vmatmul.mubr.f32.gmra.mrb[0].mxu0 %v688
    %v986 = vpop.f32.mrb[0].mxu0
    %v987 = vadd.f32 0.0, %v986
    %v988 = vpop.f32.mrb[0].mxu0
    %989 = vdwg.mxu0
    %v990 = vmul.f32 %v841, %v987
    %v991 = vadd.f32 %v916, %v990
    %vm992 = vcmask 9216
    %993 = vst.msk [vmem:[#allocation6] sm:$0x3] %vm992, %v991
    // Predicated region
    $region46: #{_lambda_.11} parent=1 // pred_check
      _
    $region47: #{_lambda_.11} parent=1 // pred_check_branch
      %995 = sbr.rel (0) target = $region49
    $region48: #{_lambda_.11} parent=1 // pred_region
      %s997 = ssub.s32 32, 32
      %998 = vsyncadd [#allocation3], %s997
      %s1000 = sshll.u32 [#allocation2], 4
      %s1001 = int_to_ptr.vmem [resolvable:$true] %s1000
      %1003 = dma.vmem_to_hbm [thread:$0]  %s1001, 32, %s11, [#allocation3]
    $region49: #{_lambda_.11} parent=1 // pred_fallthru
      _
    // Predicated region
    $region50: #{_lambda_.11} parent=1 // pred_check
      _
    $region51: #{_lambda_.11} parent=1 // pred_check_branch
      %1005 = sbr.rel (0) target = $region53
    $region52: #{_lambda_.11} parent=1 // pred_region
      %s1007 = ssub.s32 32, 32
      %1008 = vsyncadd [#allocation5], %s1007
      %s1010 = sshll.u32 [#allocation4], 4
      %s1011 = int_to_ptr.vmem [resolvable:$true] %s1010
      %1013 = dma.vmem_to_hbm [thread:$0]  %s1011, 32, %s12, [#allocation5]
    $region53: #{_lambda_.11} parent=1 // pred_fallthru
      _
    // Predicated region
    $region54: #{_lambda_.11} parent=1 // pred_check
      _
    $region55: #{_lambda_.11} parent=1 // pred_check_branch
      %1015 = sbr.rel (0) target = $region57
    $region56: #{_lambda_.11} parent=1 // pred_region
      %s1017 = ssub.s32 32, 32
      %1018 = vsyncadd [#allocation5], %s1017
      %s1020 = sshll.u32 [#allocation6], 4
      %s1021 = int_to_ptr.vmem [resolvable:$true] %s1020
      %1023 = dma.vmem_to_hbm [thread:$0]  %s1021, 32, %s13, [#allocation5]
    $region57: #{_lambda_.11} parent=1 // pred_fallthru
      _
    // Predicated region
    $region58: #{_lambda_.11} parent=1 // pred_check
      _
    $region59: #{_lambda_.11} parent=1 // pred_check_branch
      %1025 = sbr.rel (0) target = $region61
    $region60: #{_lambda_.11} parent=1 // pred_region
      %1026 = dma.done [#allocation3], 32
    $region61: #{_lambda_.11} parent=1 // pred_fallthru
      _
    // Predicated region
    $region62: #{_lambda_.11} parent=1 // pred_check
      _
    $region63: #{_lambda_.11} parent=1 // pred_check_branch
      %1028 = sbr.rel (0) target = $region65
    $region64: #{_lambda_.11} parent=1 // pred_region
      %1029 = dma.done [#allocation5], 32
    $region65: #{_lambda_.11} parent=1 // pred_fallthru
      _
    // Predicated region
    $region66: #{_lambda_.11} parent=1 // pred_check
      _
    $region67: #{_lambda_.11} parent=1 // pred_check_branch
      %1031 = sbr.rel (0) target = $region69
    $region68: #{_lambda_.11} parent=1 // pred_region
      %1032 = dma.done [#allocation5], 32
    $region69: #{_lambda_.11} parent=1 // pred_fallthru
      _
    %1033 = vsyncpa [#allocation3], 1
    %1034 = vsyncpa [#allocation5], 1

</llo_original>
